<compile_context>
chip_gen: v6e
topology: v6e:2x2x1
jax: 0.10.0
libtpu: 0.0.40
codegen_flags: <defaults>
</compile_context>

<pallas_src>
import functools

import jax
import jax.numpy as jnp
from jax.experimental import pallas as pl
from jax.experimental.pallas import tpu as pltpu


# ----------------------------------------------------------------------------
# Tiled fused matmul kernel:  out = act(x @ w + b)
# ----------------------------------------------------------------------------
def _matmul_bias_act_kernel(x_ref, w_ref, b_ref, o_ref, acc_ref, *, apply_relu):
    k = pl.program_id(2)

    @pl.when(k == 0)
    def _():
        acc_ref[...] = jnp.zeros_like(acc_ref)

    acc_ref[...] += jnp.dot(x_ref[...], w_ref[...],
                            preferred_element_type=jnp.float32)

    @pl.when(k == pl.num_programs(2) - 1)
    def _():
        out = acc_ref[...] + b_ref[...]          # bias only in the epilogue
        if apply_relu:
            out = jnp.maximum(out, 0.0)
        o_ref[...] = out.astype(o_ref.dtype)


def _round_up(x, m):
    return ((x + m - 1) // m) * m


def fused_linear(x, w, b, *, relu=False, tm_max=128, tn_max=128, tk_max=256):
    """x: (M, K), w: (K, N) (already in matmul layout), b: (N,) -> (M, N)."""
    M, K = x.shape
    Kw, N = w.shape
    assert K == Kw, (K, Kw)

    tm = min(tm_max, _round_up(M, 8))       # sublane-aligned row tile
    tn = min(tn_max, _round_up(N, 128))     # lane-dense output tile
    tk = min(tk_max, _round_up(K, 128))
    Mp, Np, Kp = _round_up(M, tm), _round_up(N, tn), _round_up(K, tk)

    xp = x if (Mp == M and Kp == K) else jnp.pad(x, ((0, Mp - M), (0, Kp - K)))
    wp = w if (Kp == K and Np == N) else jnp.pad(w, ((0, Kp - K), (0, Np - N)))
    bp = (b if Np == N else jnp.pad(b, (0, Np - N))).reshape(1, Np)

    kernel = functools.partial(_matmul_bias_act_kernel, apply_relu=relu)
    out = pl.pallas_call(
        kernel,
        out_shape=jax.ShapeDtypeStruct((Mp, Np), x.dtype),
        grid_spec=pltpu.PrefetchScalarGridSpec(
            num_scalar_prefetch=0,
            grid=(Mp // tm, Np // tn, Kp // tk),
            in_specs=[
                pl.BlockSpec((tm, tk), lambda i, j, k: (i, k)),
                pl.BlockSpec((tk, tn), lambda i, j, k: (k, j)),
                pl.BlockSpec((1, tn), lambda i, j, k: (0, j)),
            ],
            out_specs=pl.BlockSpec((tm, tn), lambda i, j, k: (i, j)),
            scratch_shapes=[pltpu.VMEM((tm, tn), jnp.float32)],
        ),
        compiler_params=pltpu.CompilerParams(
            dimension_semantics=("parallel", "parallel", "arbitrary")),
    )(xp, wp, bp)
    return out[:M, :N]


# ----------------------------------------------------------------------------
# 2x2 max-pool (stride 2) — elementwise max-of-4 Pallas kernel
# ----------------------------------------------------------------------------
def _max4_kernel(a_ref, b_ref, c_ref, d_ref, o_ref):
    o_ref[...] = jnp.maximum(jnp.maximum(a_ref[...], b_ref[...]),
                             jnp.maximum(c_ref[...], d_ref[...]))


def maxpool2x2(x):
    """x: (N, H, W, C) NHWC -> (N, H//2, W//2, C)."""
    N, H, W, C = x.shape
    Ho, Wo = H // 2, W // 2
    a = x[:, 0::2, 0::2, :]
    b = x[:, 0::2, 1::2, :]
    c = x[:, 1::2, 0::2, :]
    d = x[:, 1::2, 1::2, :]
    blk = pl.BlockSpec((1, Ho, Wo, C), lambda n: (n, 0, 0, 0))
    return pl.pallas_call(
        _max4_kernel,
        out_shape=jax.ShapeDtypeStruct((N, Ho, Wo, C), x.dtype),
        grid_spec=pltpu.PrefetchScalarGridSpec(
            num_scalar_prefetch=0,
            grid=(N,),
            in_specs=[blk, blk, blk, blk],
            out_specs=pl.BlockSpec((1, Ho, Wo, C), lambda n: (n, 0, 0, 0)),
        ),
        compiler_params=pltpu.CompilerParams(dimension_semantics=("parallel",)),
    )(a, b, c, d)


# ----------------------------------------------------------------------------
# 3x3 conv (padding=1) + bias + ReLU, computed on the MXU via im2col + matmul
# ----------------------------------------------------------------------------
def conv3x3_relu(x, w_hwio, b):
    """x: (N, H, W, Cin); w_hwio: (3, 3, Cin, Cout); b: (Cout,)."""
    N, H, W, Cin = x.shape
    Cout = w_hwio.shape[-1]
    xp = jnp.pad(x, ((0, 0), (1, 1), (1, 1), (0, 0)))
    # TODO(synk): patch extraction (im2col) is done with XLA slicing in the
    # wrapper; a fully fused conv kernel would stream halo tiles into VMEM
    # with manual DMA instead of materializing the 9x-expanded patch tensor
    # (negligible at these mini-VGG sizes, and it fuses under jit).
    cols = jnp.stack(
        [xp[:, dy:dy + H, dx:dx + W, :] for dy in range(3) for dx in range(3)],
        axis=3)                                   # (N, H, W, 9, Cin)
    cols = cols.reshape(N * H * W, 9 * Cin)
    wmat = w_hwio.reshape(9 * Cin, Cout)          # (dy, dx, ci) row-major match
    y = fused_linear(cols, wmat, b, relu=True)
    return y.reshape(N, H, W, Cout)


# ----------------------------------------------------------------------------
# Mini-VGG "VGGBase": features -> flatten -> classifier[0:6]
# ----------------------------------------------------------------------------
CFG = [8, "M", 16, "M", 32, 32, "M"]   # scaled-down vgg11-style feature config
HIDDEN = 128                            # scaled-down stand-in for the 4096-dim FCs


def init_params(key, in_ch=3, cfg=CFG, spatial=16, hidden=HIDDEN):
    # TODO(synk): torchvision pretrained weights are not loadable here; weights
    # are deterministically random-initialized instead (same forward structure).
    params = {"convs": [], "linears": []}
    c, hw = in_ch, spatial
    for v in cfg:
        if v == "M":
            hw //= 2
            continue
        key, kw = jax.random.split(key)
        w = jax.random.normal(kw, (3, 3, c, v), jnp.float32) * (2.0 / (9 * c)) ** 0.5
        params["convs"].append((w, jnp.zeros((v,), jnp.float32)))
        c = v
    flat = c * hw * hw
    dims = [flat, hidden, hidden]
    for i in range(2):
        key, kw = jax.random.split(key)
        std = (2.0 / (dims[i] + dims[i + 1])) ** 0.5
        # Stored directly in matmul layout (in_features, out_features): no
        # per-call transpose / extra HBM copy.
        w = std * jax.random.normal(kw, (dims[i], dims[i + 1]), jnp.float32)
        params["linears"].append((w, jnp.zeros((dims[i + 1],), jnp.float32)))
    return params


def vgg_base_forward(x_nchw, params, cfg=CFG):
    n = x_nchw.shape[0]
    x = jnp.transpose(x_nchw, (0, 2, 3, 1))        # NCHW -> NHWC (channels on lanes)
    conv_i = 0
    for v in cfg:
        if v == "M":
            x = maxpool2x2(x)
        else:
            w, b = params["convs"][conv_i]
            x = conv3x3_relu(x, w, b)
            conv_i += 1
    # PyTorch's x.view(x.size(0), -1) flattens NCHW order:
    x = jnp.transpose(x, (0, 3, 1, 2)).reshape(n, -1)
    # classifier[0:6] = Linear, ReLU, Dropout, Linear, ReLU, Dropout
    # TODO(synk): Dropout is identity at inference; train-mode dropout masks are
    # not implemented.
    (w1, b1), (w2, b2) = params["linears"]
    x = fused_linear(x, w1, b1, relu=True)
    x = fused_linear(x, w2, b2, relu=True)
    return x


# ----------------------------------------------------------------------------
# Pure-JAX reference for the correctness check
# ----------------------------------------------------------------------------
def reference_forward(x_nchw, params, cfg=CFG):
    hi = jax.lax.Precision.HIGHEST
    n = x_nchw.shape[0]
    x = jnp.transpose(x_nchw, (0, 2, 3, 1))
    ci = 0
    for v in cfg:
        if v == "M":
            N, H, W, C = x.shape
            x = x.reshape(N, H // 2, 2, W // 2, 2, C).max(axis=(2, 4))
        else:
            w, b = params["convs"][ci]
            ci += 1
            x = jax.lax.conv_general_dilated(
                x, w, (1, 1), "SAME",
                dimension_numbers=("NHWC", "HWIO", "NHWC"), precision=hi)
            x = jnp.maximum(x + b, 0.0)
    x = jnp.transpose(x, (0, 3, 1, 2)).reshape(n, -1)
    (w1, b1), (w2, b2) = params["linears"]
    x = jnp.maximum(jnp.dot(x, w1, precision=hi) + b1, 0.0)
    x = jnp.maximum(jnp.dot(x, w2, precision=hi) + b2, 0.0)
    return x


if __name__ == "__main__":
    key = jax.random.PRNGKey(0)
    k_x, k_p = jax.random.split(key)

    batch, in_ch, spatial = 2, 3, 16
    x = jax.random.normal(k_x, (batch, in_ch, spatial, spatial), jnp.float32)
    params = init_params(k_p, in_ch=in_ch, spatial=spatial)

    forward = jax.jit(vgg_base_forward)            # single fused dispatch
    y = forward(x, params)
    jax.block_until_ready(y)

    y_ref = reference_forward(x, params)
    jax.block_until_ready(y_ref)
    assert y.shape == y_ref.shape == (batch, HIDDEN), (y.shape, y_ref.shape)
    max_err = float(jnp.max(jnp.abs(y - y_ref)))
    assert jnp.allclose(y, y_ref, atol=1e-2, rtol=1e-2), max_err

    print("KERNEL_OK")
</pallas_src>

<mosaic_0001>
module attributes {stable_mosaic.version = 11 : i64} {
  func.func @_matmul_bias_act_kernel(%arg0: i32, %arg1: i32, %arg2: i32, %arg3: memref<128x128xf32, #tpu.memory_space<vmem>>, %arg4: memref<128x128xf32, #tpu.memory_space<vmem>>, %arg5: memref<1x128xf32, #tpu.memory_space<vmem>>, %arg6: memref<128x128xf32, #tpu.memory_space<vmem>>, %arg7: memref<128x128xf32, #tpu.memory_space<vmem>>) attributes {dimension_semantics = [#tpu.dimension_semantics<parallel>, #tpu.dimension_semantics<parallel>, #tpu.dimension_semantics<arbitrary>], iteration_bounds = array<i64: 4, 1, 1>, scalar_prefetch = 0 : i64, scratch_operands = 1 : i64, tpu.core_type = #tpu.core_type<tc>, window_params = [{transform_indices = @transform_0, window_bounds = array<i64: 128, 128>}, {transform_indices = @transform_1, window_bounds = array<i64: 128, 128>}, {transform_indices = @transform_2, window_bounds = array<i64: 1, 128>}, {transform_indices = @transform_3, window_bounds = array<i64: 128, 128>}]} {
    %c0_i32 = arith.constant 0 : i32
    %0 = arith.cmpi eq, %arg2, %c0_i32 : i32
    %1 = arith.extui %0 : i1 to i32
    %c0_i32_0 = arith.constant 0 : i32
    %2 = arith.cmpi ne, %1, %c0_i32_0 : i32
    scf.if %2 {
      %cst_10 = arith.constant 0.000000e+00 : f32
      %12 = vector.broadcast %cst_10 : f32 to vector<128x128xf32>
      %c0_11 = arith.constant 0 : index
      %c0_12 = arith.constant 0 : index
      %13 = vector.load %arg7[%c0_11, %c0_12] : memref<128x128xf32, #tpu.memory_space<vmem>>, vector<128x128xf32>
      tpu.vector_store %arg7[%c0_11, %c0_12], %12 {strides = array<i32>} : memref<128x128xf32, #tpu.memory_space<vmem>>, vector<128x128xf32>,
    } else {
    }
    %c0 = arith.constant 0 : index
    %c0_1 = arith.constant 0 : index
    %3 = vector.load %arg7[%c0, %c0_1] : memref<128x128xf32, #tpu.memory_space<vmem>>, vector<128x128xf32>
    %c0_2 = arith.constant 0 : index
    %c0_3 = arith.constant 0 : index
    %4 = vector.load %arg3[%c0_2, %c0_3] : memref<128x128xf32, #tpu.memory_space<vmem>>, vector<128x128xf32>
    %c0_4 = arith.constant 0 : index
    %c0_5 = arith.constant 0 : index
    %5 = vector.load %arg4[%c0_4, %c0_5] : memref<128x128xf32, #tpu.memory_space<vmem>>, vector<128x128xf32>
    %cst = arith.constant dense<0.000000e+00> : vector<128x128xf32>
    %6 = tpu.matmul %4, %5, %cst {dimension_numbers = #tpu.dot_dimension_numbers<[1], [0], [0], [1], [0, 0, 1, 1], [], []>} : vector<128x128xf32>, vector<128x128xf32>, vector<128x128xf32> -> vector<128x128xf32>
    %7 = arith.addf %3, %6 : vector<128x128xf32>
    %c0_6 = arith.constant 0 : index
    %c0_7 = arith.constant 0 : index
    %8 = vector.load %arg7[%c0_6, %c0_7] : memref<128x128xf32, #tpu.memory_space<vmem>>, vector<128x128xf32>
    tpu.vector_store %arg7[%c0_6, %c0_7], %7 {strides = array<i32>} : memref<128x128xf32, #tpu.memory_space<vmem>>, vector<128x128xf32>,
    %c0_i32_8 = arith.constant 0 : i32
    %9 = arith.cmpi eq, %arg2, %c0_i32_8 : i32
    %10 = arith.extui %9 : i1 to i32
    %c0_i32_9 = arith.constant 0 : i32
    %11 = arith.cmpi ne, %10, %c0_i32_9 : i32
    scf.if %11 {
      %c0_10 = arith.constant 0 : index
      %c0_11 = arith.constant 0 : index
      %12 = vector.load %arg7[%c0_10, %c0_11] : memref<128x128xf32, #tpu.memory_space<vmem>>, vector<128x128xf32>
      %c0_12 = arith.constant 0 : index
      %c0_13 = arith.constant 0 : index
      %13 = vector.load %arg5[%c0_12, %c0_13] : memref<1x128xf32, #tpu.memory_space<vmem>>, vector<1x128xf32>
      %14 = vector.broadcast %13 : vector<1x128xf32> to vector<128x128xf32>
      %15 = arith.addf %12, %14 : vector<128x128xf32>
      %cst_14 = arith.constant 0.000000e+00 : f32
      %16 = vector.broadcast %cst_14 : f32 to vector<128x128xf32>
      %17 = arith.maximumf %15, %16 : vector<128x128xf32>
      %c0_15 = arith.constant 0 : index
      %c0_16 = arith.constant 0 : index
      %18 = vector.load %arg6[%c0_15, %c0_16] : memref<128x128xf32, #tpu.memory_space<vmem>>, vector<128x128xf32>
      tpu.vector_store %arg6[%c0_15, %c0_16], %17 {strides = array<i32>} : memref<128x128xf32, #tpu.memory_space<vmem>>, vector<128x128xf32>,
    } else {
    }
    return
  }
  func.func @transform_0(%arg0: i32, %arg1: i32, %arg2: i32) -> (i32, i32) {
    %c0_i32 = arith.constant 0 : i32
    return %arg0, %arg2 : i32, i32
  }
  func.func @transform_1(%arg0: i32, %arg1: i32, %arg2: i32) -> (i32, i32) {
    %c0_i32 = arith.constant 0 : i32
    return %arg2, %arg1 : i32, i32
  }
  func.func @transform_2(%arg0: i32, %arg1: i32, %arg2: i32) -> (i32, i32) {
    %c0_i32 = arith.constant 0 : i32
    %c0_i32_0 = arith.constant 0 : i32
    return %c0_i32, %arg1 : i32, i32
  }
  func.func @transform_3(%arg0: i32, %arg1: i32, %arg2: i32) -> (i32, i32) {
    %c0_i32 = arith.constant 0 : i32
    return %arg0, %arg1 : i32, i32
  }
}

module attributes {stable_mosaic.version = 11 : i64} {
  func.func @_max4_kernel(%arg0: i32, %arg1: memref<1x8x8x8xf32, #tpu.memory_space<vmem>>, %arg2: memref<1x8x8x8xf32, #tpu.memory_space<vmem>>, %arg3: memref<1x8x8x8xf32, #tpu.memory_space<vmem>>, %arg4: memref<1x8x8x8xf32, #tpu.memory_space<vmem>>, %arg5: memref<1x8x8x8xf32, #tpu.memory_space<vmem>>) attributes {dimension_semantics = [#tpu.dimension_semantics<parallel>], iteration_bounds = array<i64: 2>, scalar_prefetch = 0 : i64, scratch_operands = 0 : i64, tpu.core_type = #tpu.core_type<tc>, window_params = [{transform_indices = @transform_0, window_bounds = array<i64: 1, 8, 8, 8>}, {transform_indices = @transform_1, window_bounds = array<i64: 1, 8, 8, 8>}, {transform_indices = @transform_2, window_bounds = array<i64: 1, 8, 8, 8>}, {transform_indices = @transform_3, window_bounds = array<i64: 1, 8, 8, 8>}, {transform_indices = @transform_4, window_bounds = array<i64: 1, 8, 8, 8>}]} {
    %c0 = arith.constant 0 : index
    %c0_0 = arith.constant 0 : index
    %c0_1 = arith.constant 0 : index
    %c0_2 = arith.constant 0 : index
    %0 = vector.load %arg1[%c0, %c0_0, %c0_1, %c0_2] : memref<1x8x8x8xf32, #tpu.memory_space<vmem>>, vector<1x8x8x8xf32>
    %c0_3 = arith.constant 0 : index
    %c0_4 = arith.constant 0 : index
    %c0_5 = arith.constant 0 : index
    %c0_6 = arith.constant 0 : index
    %1 = vector.load %arg2[%c0_3, %c0_4, %c0_5, %c0_6] : memref<1x8x8x8xf32, #tpu.memory_space<vmem>>, vector<1x8x8x8xf32>
    %2 = arith.maximumf %0, %1 : vector<1x8x8x8xf32>
    %c0_7 = arith.constant 0 : index
    %c0_8 = arith.constant 0 : index
    %c0_9 = arith.constant 0 : index
    %c0_10 = arith.constant 0 : index
    %3 = vector.load %arg3[%c0_7, %c0_8, %c0_9, %c0_10] : memref<1x8x8x8xf32, #tpu.memory_space<vmem>>, vector<1x8x8x8xf32>
    %c0_11 = arith.constant 0 : index
    %c0_12 = arith.constant 0 : index
    %c0_13 = arith.constant 0 : index
    %c0_14 = arith.constant 0 : index
    %4 = vector.load %arg4[%c0_11, %c0_12, %c0_13, %c0_14] : memref<1x8x8x8xf32, #tpu.memory_space<vmem>>, vector<1x8x8x8xf32>
    %5 = arith.maximumf %3, %4 : vector<1x8x8x8xf32>
    %6 = arith.maximumf %2, %5 : vector<1x8x8x8xf32>
    %c0_15 = arith.constant 0 : index
    %c0_16 = arith.constant 0 : index
    %c0_17 = arith.constant 0 : index
    %c0_18 = arith.constant 0 : index
    %7 = vector.load %arg5[%c0_15, %c0_16, %c0_17, %c0_18] : memref<1x8x8x8xf32, #tpu.memory_space<vmem>>, vector<1x8x8x8xf32>
    tpu.vector_store %arg5[%c0_15, %c0_16, %c0_17, %c0_18], %6 {strides = array<i32>} : memref<1x8x8x8xf32, #tpu.memory_space<vmem>>, vector<1x8x8x8xf32>,
    return
  }
  func.func @transform_0(%arg0: i32) -> (i32, i32, i32, i32) {
    %c0_i32 = arith.constant 0 : i32
    %c0_i32_0 = arith.constant 0 : i32
    %c0_i32_1 = arith.constant 0 : i32
    %c0_i32_2 = arith.constant 0 : i32
    return %arg0, %c0_i32, %c0_i32_0, %c0_i32_1 : i32, i32, i32, i32
  }
  func.func @transform_1(%arg0: i32) -> (i32, i32, i32, i32) {
    %c0_i32 = arith.constant 0 : i32
    %c0_i32_0 = arith.constant 0 : i32
    %c0_i32_1 = arith.constant 0 : i32
    %c0_i32_2 = arith.constant 0 : i32
    return %arg0, %c0_i32, %c0_i32_0, %c0_i32_1 : i32, i32, i32, i32
  }
  func.func @transform_2(%arg0: i32) -> (i32, i32, i32, i32) {
    %c0_i32 = arith.constant 0 : i32
    %c0_i32_0 = arith.constant 0 : i32
    %c0_i32_1 = arith.constant 0 : i32
    %c0_i32_2 = arith.constant 0 : i32
    return %arg0, %c0_i32, %c0_i32_0, %c0_i32_1 : i32, i32, i32, i32
  }
  func.func @transform_3(%arg0: i32) -> (i32, i32, i32, i32) {
    %c0_i32 = arith.constant 0 : i32
    %c0_i32_0 = arith.constant 0 : i32
    %c0_i32_1 = arith.constant 0 : i32
    %c0_i32_2 = arith.constant 0 : i32
    return %arg0, %c0_i32, %c0_i32_0, %c0_i32_1 : i32, i32, i32, i32
  }
  func.func @transform_4(%arg0: i32) -> (i32, i32, i32, i32) {
    %c0_i32 = arith.constant 0 : i32
    %c0_i32_0 = arith.constant 0 : i32
    %c0_i32_1 = arith.constant 0 : i32
    %c0_i32_2 = arith.constant 0 : i32
    return %arg0, %c0_i32, %c0_i32_0, %c0_i32_1 : i32, i32, i32, i32
  }
}

module attributes {stable_mosaic.version = 11 : i64} {
  func.func @_matmul_bias_act_kernel(%arg0: i32, %arg1: i32, %arg2: i32, %arg3: memref<128x128xf32, #tpu.memory_space<vmem>>, %arg4: memref<128x128xf32, #tpu.memory_space<vmem>>, %arg5: memref<1x128xf32, #tpu.memory_space<vmem>>, %arg6: memref<128x128xf32, #tpu.memory_space<vmem>>, %arg7: memref<128x128xf32, #tpu.memory_space<vmem>>) attributes {dimension_semantics = [#tpu.dimension_semantics<parallel>, #tpu.dimension_semantics<parallel>, #tpu.dimension_semantics<arbitrary>], iteration_bounds = array<i64: 1, 1, 1>, scalar_prefetch = 0 : i64, scratch_operands = 1 : i64, tpu.core_type = #tpu.core_type<tc>, window_params = [{transform_indices = @transform_0, window_bounds = array<i64: 128, 128>}, {transform_indices = @transform_1, window_bounds = array<i64: 128, 128>}, {transform_indices = @transform_2, window_bounds = array<i64: 1, 128>}, {transform_indices = @transform_3, window_bounds = array<i64: 128, 128>}]} {
    %c0_i32 = arith.constant 0 : i32
    %0 = arith.cmpi eq, %arg2, %c0_i32 : i32
    %1 = arith.extui %0 : i1 to i32
    %c0_i32_0 = arith.constant 0 : i32
    %2 = arith.cmpi ne, %1, %c0_i32_0 : i32
    scf.if %2 {
      %cst_10 = arith.constant 0.000000e+00 : f32
      %12 = vector.broadcast %cst_10 : f32 to vector<128x128xf32>
      %c0_11 = arith.constant 0 : index
      %c0_12 = arith.constant 0 : index
      %13 = vector.load %arg7[%c0_11, %c0_12] : memref<128x128xf32, #tpu.memory_space<vmem>>, vector<128x128xf32>
      tpu.vector_store %arg7[%c0_11, %c0_12], %12 {strides = array<i32>} : memref<128x128xf32, #tpu.memory_space<vmem>>, vector<128x128xf32>,
    } else {
    }
    %c0 = arith.constant 0 : index
    %c0_1 = arith.constant 0 : index
    %3 = vector.load %arg7[%c0, %c0_1] : memref<128x128xf32, #tpu.memory_space<vmem>>, vector<128x128xf32>
    %c0_2 = arith.constant 0 : index
    %c0_3 = arith.constant 0 : index
    %4 = vector.load %arg3[%c0_2, %c0_3] : memref<128x128xf32, #tpu.memory_space<vmem>>, vector<128x128xf32>
    %c0_4 = arith.constant 0 : index
    %c0_5 = arith.constant 0 : index
    %5 = vector.load %arg4[%c0_4, %c0_5] : memref<128x128xf32, #tpu.memory_space<vmem>>, vector<128x128xf32>
    %cst = arith.constant dense<0.000000e+00> : vector<128x128xf32>
    %6 = tpu.matmul %4, %5, %cst {dimension_numbers = #tpu.dot_dimension_numbers<[1], [0], [0], [1], [0, 0, 1, 1], [], []>} : vector<128x128xf32>, vector<128x128xf32>, vector<128x128xf32> -> vector<128x128xf32>
    %7 = arith.addf %3, %6 : vector<128x128xf32>
    %c0_6 = arith.constant 0 : index
    %c0_7 = arith.constant 0 : index
    %8 = vector.load %arg7[%c0_6, %c0_7] : memref<128x128xf32, #tpu.memory_space<vmem>>, vector<128x128xf32>
    tpu.vector_store %arg7[%c0_6, %c0_7], %7 {strides = array<i32>} : memref<128x128xf32, #tpu.memory_space<vmem>>, vector<128x128xf32>,
    %c0_i32_8 = arith.constant 0 : i32
    %9 = arith.cmpi eq, %arg2, %c0_i32_8 : i32
    %10 = arith.extui %9 : i1 to i32
    %c0_i32_9 = arith.constant 0 : i32
    %11 = arith.cmpi ne, %10, %c0_i32_9 : i32
    scf.if %11 {
      %c0_10 = arith.constant 0 : index
      %c0_11 = arith.constant 0 : index
      %12 = vector.load %arg7[%c0_10, %c0_11] : memref<128x128xf32, #tpu.memory_space<vmem>>, vector<128x128xf32>
      %c0_12 = arith.constant 0 : index
      %c0_13 = arith.constant 0 : index
      %13 = vector.load %arg5[%c0_12, %c0_13] : memref<1x128xf32, #tpu.memory_space<vmem>>, vector<1x128xf32>
      %14 = vector.broadcast %13 : vector<1x128xf32> to vector<128x128xf32>
      %15 = arith.addf %12, %14 : vector<128x128xf32>
      %cst_14 = arith.constant 0.000000e+00 : f32
      %16 = vector.broadcast %cst_14 : f32 to vector<128x128xf32>
      %17 = arith.maximumf %15, %16 : vector<128x128xf32>
      %c0_15 = arith.constant 0 : index
      %c0_16 = arith.constant 0 : index
      %18 = vector.load %arg6[%c0_15, %c0_16] : memref<128x128xf32, #tpu.memory_space<vmem>>, vector<128x128xf32>
      tpu.vector_store %arg6[%c0_15, %c0_16], %17 {strides = array<i32>} : memref<128x128xf32, #tpu.memory_space<vmem>>, vector<128x128xf32>,
    } else {
    }
    return
  }
  func.func @transform_0(%arg0: i32, %arg1: i32, %arg2: i32) -> (i32, i32) {
    %c0_i32 = arith.constant 0 : i32
    return %arg0, %arg2 : i32, i32
  }
  func.func @transform_1(%arg0: i32, %arg1: i32, %arg2: i32) -> (i32, i32) {
    %c0_i32 = arith.constant 0 : i32
    return %arg2, %arg1 : i32, i32
  }
  func.func @transform_2(%arg0: i32, %arg1: i32, %arg2: i32) -> (i32, i32) {
    %c0_i32 = arith.constant 0 : i32
    %c0_i32_0 = arith.constant 0 : i32
    return %c0_i32, %arg1 : i32, i32
  }
  func.func @transform_3(%arg0: i32, %arg1: i32, %arg2: i32) -> (i32, i32) {
    %c0_i32 = arith.constant 0 : i32
    return %arg0, %arg1 : i32, i32
  }
}

module attributes {stable_mosaic.version = 11 : i64} {
  func.func @_max4_kernel(%arg0: i32, %arg1: memref<1x4x4x16xf32, #tpu.memory_space<vmem>>, %arg2: memref<1x4x4x16xf32, #tpu.memory_space<vmem>>, %arg3: memref<1x4x4x16xf32, #tpu.memory_space<vmem>>, %arg4: memref<1x4x4x16xf32, #tpu.memory_space<vmem>>, %arg5: memref<1x4x4x16xf32, #tpu.memory_space<vmem>>) attributes {dimension_semantics = [#tpu.dimension_semantics<parallel>], iteration_bounds = array<i64: 2>, scalar_prefetch = 0 : i64, scratch_operands = 0 : i64, tpu.core_type = #tpu.core_type<tc>, window_params = [{transform_indices = @transform_0, window_bounds = array<i64: 1, 4, 4, 16>}, {transform_indices = @transform_1, window_bounds = array<i64: 1, 4, 4, 16>}, {transform_indices = @transform_2, window_bounds = array<i64: 1, 4, 4, 16>}, {transform_indices = @transform_3, window_bounds = array<i64: 1, 4, 4, 16>}, {transform_indices = @transform_4, window_bounds = array<i64: 1, 4, 4, 16>}]} {
    %c0 = arith.constant 0 : index
    %c0_0 = arith.constant 0 : index
    %c0_1 = arith.constant 0 : index
    %c0_2 = arith.constant 0 : index
    %0 = vector.load %arg1[%c0, %c0_0, %c0_1, %c0_2] : memref<1x4x4x16xf32, #tpu.memory_space<vmem>>, vector<1x4x4x16xf32>
    %c0_3 = arith.constant 0 : index
    %c0_4 = arith.constant 0 : index
    %c0_5 = arith.constant 0 : index
    %c0_6 = arith.constant 0 : index
    %1 = vector.load %arg2[%c0_3, %c0_4, %c0_5, %c0_6] : memref<1x4x4x16xf32, #tpu.memory_space<vmem>>, vector<1x4x4x16xf32>
    %2 = arith.maximumf %0, %1 : vector<1x4x4x16xf32>
    %c0_7 = arith.constant 0 : index
    %c0_8 = arith.constant 0 : index
    %c0_9 = arith.constant 0 : index
    %c0_10 = arith.constant 0 : index
    %3 = vector.load %arg3[%c0_7, %c0_8, %c0_9, %c0_10] : memref<1x4x4x16xf32, #tpu.memory_space<vmem>>, vector<1x4x4x16xf32>
    %c0_11 = arith.constant 0 : index
    %c0_12 = arith.constant 0 : index
    %c0_13 = arith.constant 0 : index
    %c0_14 = arith.constant 0 : index
    %4 = vector.load %arg4[%c0_11, %c0_12, %c0_13, %c0_14] : memref<1x4x4x16xf32, #tpu.memory_space<vmem>>, vector<1x4x4x16xf32>
    %5 = arith.maximumf %3, %4 : vector<1x4x4x16xf32>
    %6 = arith.maximumf %2, %5 : vector<1x4x4x16xf32>
    %c0_15 = arith.constant 0 : index
    %c0_16 = arith.constant 0 : index
    %c0_17 = arith.constant 0 : index
    %c0_18 = arith.constant 0 : index
    %7 = vector.load %arg5[%c0_15, %c0_16, %c0_17, %c0_18] : memref<1x4x4x16xf32, #tpu.memory_space<vmem>>, vector<1x4x4x16xf32>
    tpu.vector_store %arg5[%c0_15, %c0_16, %c0_17, %c0_18], %6 {strides = array<i32>} : memref<1x4x4x16xf32, #tpu.memory_space<vmem>>, vector<1x4x4x16xf32>,
    return
  }
  func.func @transform_0(%arg0: i32) -> (i32, i32, i32, i32) {
    %c0_i32 = arith.constant 0 : i32
    %c0_i32_0 = arith.constant 0 : i32
    %c0_i32_1 = arith.constant 0 : i32
    %c0_i32_2 = arith.constant 0 : i32
    return %arg0, %c0_i32, %c0_i32_0, %c0_i32_1 : i32, i32, i32, i32
  }
  func.func @transform_1(%arg0: i32) -> (i32, i32, i32, i32) {
    %c0_i32 = arith.constant 0 : i32
    %c0_i32_0 = arith.constant 0 : i32
    %c0_i32_1 = arith.constant 0 : i32
    %c0_i32_2 = arith.constant 0 : i32
    return %arg0, %c0_i32, %c0_i32_0, %c0_i32_1 : i32, i32, i32, i32
  }
  func.func @transform_2(%arg0: i32) -> (i32, i32, i32, i32) {
    %c0_i32 = arith.constant 0 : i32
    %c0_i32_0 = arith.constant 0 : i32
    %c0_i32_1 = arith.constant 0 : i32
    %c0_i32_2 = arith.constant 0 : i32
    return %arg0, %c0_i32, %c0_i32_0, %c0_i32_1 : i32, i32, i32, i32
  }
  func.func @transform_3(%arg0: i32) -> (i32, i32, i32, i32) {
    %c0_i32 = arith.constant 0 : i32
    %c0_i32_0 = arith.constant 0 : i32
    %c0_i32_1 = arith.constant 0 : i32
    %c0_i32_2 = arith.constant 0 : i32
    return %arg0, %c0_i32, %c0_i32_0, %c0_i32_1 : i32, i32, i32, i32
  }
  func.func @transform_4(%arg0: i32) -> (i32, i32, i32, i32) {
    %c0_i32 = arith.constant 0 : i32
    %c0_i32_0 = arith.constant 0 : i32
    %c0_i32_1 = arith.constant 0 : i32
    %c0_i32_2 = arith.constant 0 : i32
    return %arg0, %c0_i32, %c0_i32_0, %c0_i32_1 : i32, i32, i32, i32
  }
}

module attributes {stable_mosaic.version = 11 : i64} {
  func.func @_matmul_bias_act_kernel(%arg0: i32, %arg1: i32, %arg2: i32, %arg3: memref<32x256xf32, #tpu.memory_space<vmem>>, %arg4: memref<256x128xf32, #tpu.memory_space<vmem>>, %arg5: memref<1x128xf32, #tpu.memory_space<vmem>>, %arg6: memref<32x128xf32, #tpu.memory_space<vmem>>, %arg7: memref<32x128xf32, #tpu.memory_space<vmem>>) attributes {dimension_semantics = [#tpu.dimension_semantics<parallel>, #tpu.dimension_semantics<parallel>, #tpu.dimension_semantics<arbitrary>], iteration_bounds = array<i64: 1, 1, 1>, scalar_prefetch = 0 : i64, scratch_operands = 1 : i64, tpu.core_type = #tpu.core_type<tc>, window_params = [{transform_indices = @transform_0, window_bounds = array<i64: 32, 256>}, {transform_indices = @transform_1, window_bounds = array<i64: 256, 128>}, {transform_indices = @transform_2, window_bounds = array<i64: 1, 128>}, {transform_indices = @transform_3, window_bounds = array<i64: 32, 128>}]} {
    %c0_i32 = arith.constant 0 : i32
    %0 = arith.cmpi eq, %arg2, %c0_i32 : i32
    %1 = arith.extui %0 : i1 to i32
    %c0_i32_0 = arith.constant 0 : i32
    %2 = arith.cmpi ne, %1, %c0_i32_0 : i32
    scf.if %2 {
      %cst_10 = arith.constant 0.000000e+00 : f32
      %12 = vector.broadcast %cst_10 : f32 to vector<32x128xf32>
      %c0_11 = arith.constant 0 : index
      %c0_12 = arith.constant 0 : index
      %13 = vector.load %arg7[%c0_11, %c0_12] : memref<32x128xf32, #tpu.memory_space<vmem>>, vector<32x128xf32>
      tpu.vector_store %arg7[%c0_11, %c0_12], %12 {strides = array<i32>} : memref<32x128xf32, #tpu.memory_space<vmem>>, vector<32x128xf32>,
    } else {
    }
    %c0 = arith.constant 0 : index
    %c0_1 = arith.constant 0 : index
    %3 = vector.load %arg7[%c0, %c0_1] : memref<32x128xf32, #tpu.memory_space<vmem>>, vector<32x128xf32>
    %c0_2 = arith.constant 0 : index
    %c0_3 = arith.constant 0 : index
    %4 = vector.load %arg3[%c0_2, %c0_3] : memref<32x256xf32, #tpu.memory_space<vmem>>, vector<32x256xf32>
    %c0_4 = arith.constant 0 : index
    %c0_5 = arith.constant 0 : index
    %5 = vector.load %arg4[%c0_4, %c0_5] : memref<256x128xf32, #tpu.memory_space<vmem>>, vector<256x128xf32>
    %cst = arith.constant dense<0.000000e+00> : vector<32x128xf32>
    %6 = tpu.matmul %4, %5, %cst {dimension_numbers = #tpu.dot_dimension_numbers<[1], [0], [0], [1], [0, 0, 1, 1], [], []>} : vector<32x256xf32>, vector<256x128xf32>, vector<32x128xf32> -> vector<32x128xf32>
    %7 = arith.addf %3, %6 : vector<32x128xf32>
    %c0_6 = arith.constant 0 : index
    %c0_7 = arith.constant 0 : index
    %8 = vector.load %arg7[%c0_6, %c0_7] : memref<32x128xf32, #tpu.memory_space<vmem>>, vector<32x128xf32>
    tpu.vector_store %arg7[%c0_6, %c0_7], %7 {strides = array<i32>} : memref<32x128xf32, #tpu.memory_space<vmem>>, vector<32x128xf32>,
    %c0_i32_8 = arith.constant 0 : i32
    %9 = arith.cmpi eq, %arg2, %c0_i32_8 : i32
    %10 = arith.extui %9 : i1 to i32
    %c0_i32_9 = arith.constant 0 : i32
    %11 = arith.cmpi ne, %10, %c0_i32_9 : i32
    scf.if %11 {
      %c0_10 = arith.constant 0 : index
      %c0_11 = arith.constant 0 : index
      %12 = vector.load %arg7[%c0_10, %c0_11] : memref<32x128xf32, #tpu.memory_space<vmem>>, vector<32x128xf32>
      %c0_12 = arith.constant 0 : index
      %c0_13 = arith.constant 0 : index
      %13 = vector.load %arg5[%c0_12, %c0_13] : memref<1x128xf32, #tpu.memory_space<vmem>>, vector<1x128xf32>
      %14 = vector.broadcast %13 : vector<1x128xf32> to vector<32x128xf32>
      %15 = arith.addf %12, %14 : vector<32x128xf32>
      %cst_14 = arith.constant 0.000000e+00 : f32
      %16 = vector.broadcast %cst_14 : f32 to vector<32x128xf32>
      %17 = arith.maximumf %15, %16 : vector<32x128xf32>
      %c0_15 = arith.constant 0 : index
      %c0_16 = arith.constant 0 : index
      %18 = vector.load %arg6[%c0_15, %c0_16] : memref<32x128xf32, #tpu.memory_space<vmem>>, vector<32x128xf32>
      tpu.vector_store %arg6[%c0_15, %c0_16], %17 {strides = array<i32>} : memref<32x128xf32, #tpu.memory_space<vmem>>, vector<32x128xf32>,
    } else {
    }
    return
  }
  func.func @transform_0(%arg0: i32, %arg1: i32, %arg2: i32) -> (i32, i32) {
    %c0_i32 = arith.constant 0 : i32
    return %arg0, %arg2 : i32, i32
  }
  func.func @transform_1(%arg0: i32, %arg1: i32, %arg2: i32) -> (i32, i32) {
    %c0_i32 = arith.constant 0 : i32
    return %arg2, %arg1 : i32, i32
  }
  func.func @transform_2(%arg0: i32, %arg1: i32, %arg2: i32) -> (i32, i32) {
    %c0_i32 = arith.constant 0 : i32
    %c0_i32_0 = arith.constant 0 : i32
    return %c0_i32, %arg1 : i32, i32
  }
  func.func @transform_3(%arg0: i32, %arg1: i32, %arg2: i32) -> (i32, i32) {
    %c0_i32 = arith.constant 0 : i32
    return %arg0, %arg1 : i32, i32
  }
}

module attributes {stable_mosaic.version = 11 : i64} {
  func.func @_max4_kernel(%arg0: i32, %arg1: memref<1x2x2x32xf32, #tpu.memory_space<vmem>>, %arg2: memref<1x2x2x32xf32, #tpu.memory_space<vmem>>, %arg3: memref<1x2x2x32xf32, #tpu.memory_space<vmem>>, %arg4: memref<1x2x2x32xf32, #tpu.memory_space<vmem>>, %arg5: memref<1x2x2x32xf32, #tpu.memory_space<vmem>>) attributes {dimension_semantics = [#tpu.dimension_semantics<parallel>], iteration_bounds = array<i64: 2>, scalar_prefetch = 0 : i64, scratch_operands = 0 : i64, tpu.core_type = #tpu.core_type<tc>, window_params = [{transform_indices = @transform_0, window_bounds = array<i64: 1, 2, 2, 32>}, {transform_indices = @transform_1, window_bounds = array<i64: 1, 2, 2, 32>}, {transform_indices = @transform_2, window_bounds = array<i64: 1, 2, 2, 32>}, {transform_indices = @transform_3, window_bounds = array<i64: 1, 2, 2, 32>}, {transform_indices = @transform_4, window_bounds = array<i64: 1, 2, 2, 32>}]} {
    %c0 = arith.constant 0 : index
    %c0_0 = arith.constant 0 : index
    %c0_1 = arith.constant 0 : index
    %c0_2 = arith.constant 0 : index
    %0 = vector.load %arg1[%c0, %c0_0, %c0_1, %c0_2] : memref<1x2x2x32xf32, #tpu.memory_space<vmem>>, vector<1x2x2x32xf32>
    %c0_3 = arith.constant 0 : index
    %c0_4 = arith.constant 0 : index
    %c0_5 = arith.constant 0 : index
    %c0_6 = arith.constant 0 : index
    %1 = vector.load %arg2[%c0_3, %c0_4, %c0_5, %c0_6] : memref<1x2x2x32xf32, #tpu.memory_space<vmem>>, vector<1x2x2x32xf32>
    %2 = arith.maximumf %0, %1 : vector<1x2x2x32xf32>
    %c0_7 = arith.constant 0 : index
    %c0_8 = arith.constant 0 : index
    %c0_9 = arith.constant 0 : index
    %c0_10 = arith.constant 0 : index
    %3 = vector.load %arg3[%c0_7, %c0_8, %c0_9, %c0_10] : memref<1x2x2x32xf32, #tpu.memory_space<vmem>>, vector<1x2x2x32xf32>
    %c0_11 = arith.constant 0 : index
    %c0_12 = arith.constant 0 : index
    %c0_13 = arith.constant 0 : index
    %c0_14 = arith.constant 0 : index
    %4 = vector.load %arg4[%c0_11, %c0_12, %c0_13, %c0_14] : memref<1x2x2x32xf32, #tpu.memory_space<vmem>>, vector<1x2x2x32xf32>
    %5 = arith.maximumf %3, %4 : vector<1x2x2x32xf32>
    %6 = arith.maximumf %2, %5 : vector<1x2x2x32xf32>
    %c0_15 = arith.constant 0 : index
    %c0_16 = arith.constant 0 : index
    %c0_17 = arith.constant 0 : index
    %c0_18 = arith.constant 0 : index
    %7 = vector.load %arg5[%c0_15, %c0_16, %c0_17, %c0_18] : memref<1x2x2x32xf32, #tpu.memory_space<vmem>>, vector<1x2x2x32xf32>
    tpu.vector_store %arg5[%c0_15, %c0_16, %c0_17, %c0_18], %6 {strides = array<i32>} : memref<1x2x2x32xf32, #tpu.memory_space<vmem>>, vector<1x2x2x32xf32>,
    return
  }
  func.func @transform_0(%arg0: i32) -> (i32, i32, i32, i32) {
    %c0_i32 = arith.constant 0 : i32
    %c0_i32_0 = arith.constant 0 : i32
    %c0_i32_1 = arith.constant 0 : i32
    %c0_i32_2 = arith.constant 0 : i32
    return %arg0, %c0_i32, %c0_i32_0, %c0_i32_1 : i32, i32, i32, i32
  }
  func.func @transform_1(%arg0: i32) -> (i32, i32, i32, i32) {
    %c0_i32 = arith.constant 0 : i32
    %c0_i32_0 = arith.constant 0 : i32
    %c0_i32_1 = arith.constant 0 : i32
    %c0_i32_2 = arith.constant 0 : i32
    return %arg0, %c0_i32, %c0_i32_0, %c0_i32_1 : i32, i32, i32, i32
  }
  func.func @transform_2(%arg0: i32) -> (i32, i32, i32, i32) {
    %c0_i32 = arith.constant 0 : i32
    %c0_i32_0 = arith.constant 0 : i32
    %c0_i32_1 = arith.constant 0 : i32
    %c0_i32_2 = arith.constant 0 : i32
    return %arg0, %c0_i32, %c0_i32_0, %c0_i32_1 : i32, i32, i32, i32
  }
  func.func @transform_3(%arg0: i32) -> (i32, i32, i32, i32) {
    %c0_i32 = arith.constant 0 : i32
    %c0_i32_0 = arith.constant 0 : i32
    %c0_i32_1 = arith.constant 0 : i32
    %c0_i32_2 = arith.constant 0 : i32
    return %arg0, %c0_i32, %c0_i32_0, %c0_i32_1 : i32, i32, i32, i32
  }
  func.func @transform_4(%arg0: i32) -> (i32, i32, i32, i32) {
    %c0_i32 = arith.constant 0 : i32
    %c0_i32_0 = arith.constant 0 : i32
    %c0_i32_1 = arith.constant 0 : i32
    %c0_i32_2 = arith.constant 0 : i32
    return %arg0, %c0_i32, %c0_i32_0, %c0_i32_1 : i32, i32, i32, i32
  }
}

module attributes {stable_mosaic.version = 11 : i64} {
  func.func @_matmul_bias_act_kernel(%arg0: i32, %arg1: i32, %arg2: i32, %arg3: memref<32x256xf32, #tpu.memory_space<vmem>>, %arg4: memref<256x128xf32, #tpu.memory_space<vmem>>, %arg5: memref<1x128xf32, #tpu.memory_space<vmem>>, %arg6: memref<32x128xf32, #tpu.memory_space<vmem>>, %arg7: memref<32x128xf32, #tpu.memory_space<vmem>>) attributes {dimension_semantics = [#tpu.dimension_semantics<parallel>, #tpu.dimension_semantics<parallel>, #tpu.dimension_semantics<arbitrary>], iteration_bounds = array<i64: 1, 1, 2>, scalar_prefetch = 0 : i64, scratch_operands = 1 : i64, tpu.core_type = #tpu.core_type<tc>, window_params = [{transform_indices = @transform_0, window_bounds = array<i64: 32, 256>}, {transform_indices = @transform_1, window_bounds = array<i64: 256, 128>}, {transform_indices = @transform_2, window_bounds = array<i64: 1, 128>}, {transform_indices = @transform_3, window_bounds = array<i64: 32, 128>}]} {
    %c0_i32 = arith.constant 0 : i32
    %0 = arith.cmpi eq, %arg2, %c0_i32 : i32
    %1 = arith.extui %0 : i1 to i32
    %c0_i32_0 = arith.constant 0 : i32
    %2 = arith.cmpi ne, %1, %c0_i32_0 : i32
    scf.if %2 {
      %cst_9 = arith.constant 0.000000e+00 : f32
      %12 = vector.broadcast %cst_9 : f32 to vector<32x128xf32>
      %c0_10 = arith.constant 0 : index
      %c0_11 = arith.constant 0 : index
      %13 = vector.load %arg7[%c0_10, %c0_11] : memref<32x128xf32, #tpu.memory_space<vmem>>, vector<32x128xf32>
      tpu.vector_store %arg7[%c0_10, %c0_11], %12 {strides = array<i32>} : memref<32x128xf32, #tpu.memory_space<vmem>>, vector<32x128xf32>,
    } else {
    }
    %c0 = arith.constant 0 : index
    %c0_1 = arith.constant 0 : index
    %3 = vector.load %arg7[%c0, %c0_1] : memref<32x128xf32, #tpu.memory_space<vmem>>, vector<32x128xf32>
    %c0_2 = arith.constant 0 : index
    %c0_3 = arith.constant 0 : index
    %4 = vector.load %arg3[%c0_2, %c0_3] : memref<32x256xf32, #tpu.memory_space<vmem>>, vector<32x256xf32>
    %c0_4 = arith.constant 0 : index
    %c0_5 = arith.constant 0 : index
    %5 = vector.load %arg4[%c0_4, %c0_5] : memref<256x128xf32, #tpu.memory_space<vmem>>, vector<256x128xf32>
    %cst = arith.constant dense<0.000000e+00> : vector<32x128xf32>
    %6 = tpu.matmul %4, %5, %cst {dimension_numbers = #tpu.dot_dimension_numbers<[1], [0], [0], [1], [0, 0, 1, 1], [], []>} : vector<32x256xf32>, vector<256x128xf32>, vector<32x128xf32> -> vector<32x128xf32>
    %7 = arith.addf %3, %6 : vector<32x128xf32>
    %c0_6 = arith.constant 0 : index
    %c0_7 = arith.constant 0 : index
    %8 = vector.load %arg7[%c0_6, %c0_7] : memref<32x128xf32, #tpu.memory_space<vmem>>, vector<32x128xf32>
    tpu.vector_store %arg7[%c0_6, %c0_7], %7 {strides = array<i32>} : memref<32x128xf32, #tpu.memory_space<vmem>>, vector<32x128xf32>,
    %c1_i32 = arith.constant 1 : i32
    %9 = arith.cmpi eq, %arg2, %c1_i32 : i32
    %10 = arith.extui %9 : i1 to i32
    %c0_i32_8 = arith.constant 0 : i32
    %11 = arith.cmpi ne, %10, %c0_i32_8 : i32
    scf.if %11 {
      %c0_9 = arith.constant 0 : index
      %c0_10 = arith.constant 0 : index
      %12 = vector.load %arg7[%c0_9, %c0_10] : memref<32x128xf32, #tpu.memory_space<vmem>>, vector<32x128xf32>
      %c0_11 = arith.constant 0 : index
      %c0_12 = arith.constant 0 : index
      %13 = vector.load %arg5[%c0_11, %c0_12] : memref<1x128xf32, #tpu.memory_space<vmem>>, vector<1x128xf32>
      %14 = vector.broadcast %13 : vector<1x128xf32> to vector<32x128xf32>
      %15 = arith.addf %12, %14 : vector<32x128xf32>
      %cst_13 = arith.constant 0.000000e+00 : f32
      %16 = vector.broadcast %cst_13 : f32 to vector<32x128xf32>
      %17 = arith.maximumf %15, %16 : vector<32x128xf32>
      %c0_14 = arith.constant 0 : index
      %c0_15 = arith.constant 0 : index
      %18 = vector.load %arg6[%c0_14, %c0_15] : memref<32x128xf32, #tpu.memory_space<vmem>>, vector<32x128xf32>
      tpu.vector_store %arg6[%c0_14, %c0_15], %17 {strides = array<i32>} : memref<32x128xf32, #tpu.memory_space<vmem>>, vector<32x128xf32>,
    } else {
    }
    return
  }
  func.func @transform_0(%arg0: i32, %arg1: i32, %arg2: i32) -> (i32, i32) {
    %c0_i32 = arith.constant 0 : i32
    return %arg0, %arg2 : i32, i32
  }
  func.func @transform_1(%arg0: i32, %arg1: i32, %arg2: i32) -> (i32, i32) {
    %c0_i32 = arith.constant 0 : i32
    return %arg2, %arg1 : i32, i32
  }
  func.func @transform_2(%arg0: i32, %arg1: i32, %arg2: i32) -> (i32, i32) {
    %c0_i32 = arith.constant 0 : i32
    %c0_i32_0 = arith.constant 0 : i32
    return %c0_i32, %arg1 : i32, i32
  }
  func.func @transform_3(%arg0: i32, %arg1: i32, %arg2: i32) -> (i32, i32) {
    %c0_i32 = arith.constant 0 : i32
    return %arg0, %arg1 : i32, i32
  }
}

module attributes {stable_mosaic.version = 11 : i64} {
  func.func @_matmul_bias_act_kernel(%arg0: i32, %arg1: i32, %arg2: i32, %arg3: memref<8x128xf32, #tpu.memory_space<vmem>>, %arg4: memref<128x128xf32, #tpu.memory_space<vmem>>, %arg5: memref<1x128xf32, #tpu.memory_space<vmem>>, %arg6: memref<8x128xf32, #tpu.memory_space<vmem>>, %arg7: memref<8x128xf32, #tpu.memory_space<vmem>>) attributes {dimension_semantics = [#tpu.dimension_semantics<parallel>, #tpu.dimension_semantics<parallel>, #tpu.dimension_semantics<arbitrary>], iteration_bounds = array<i64: 1, 1, 1>, scalar_prefetch = 0 : i64, scratch_operands = 1 : i64, tpu.core_type = #tpu.core_type<tc>, window_params = [{transform_indices = @transform_0, window_bounds = array<i64: 8, 128>}, {transform_indices = @transform_1, window_bounds = array<i64: 128, 128>}, {transform_indices = @transform_2, window_bounds = array<i64: 1, 128>}, {transform_indices = @transform_3, window_bounds = array<i64: 8, 128>}]} {
    %c0_i32 = arith.constant 0 : i32
    %0 = arith.cmpi eq, %arg2, %c0_i32 : i32
    %1 = arith.extui %0 : i1 to i32
    %c0_i32_0 = arith.constant 0 : i32
    %2 = arith.cmpi ne, %1, %c0_i32_0 : i32
    scf.if %2 {
      %cst_10 = arith.constant 0.000000e+00 : f32
      %12 = vector.broadcast %cst_10 : f32 to vector<8x128xf32>
      %c0_11 = arith.constant 0 : index
      %c0_12 = arith.constant 0 : index
      %13 = vector.load %arg7[%c0_11, %c0_12] : memref<8x128xf32, #tpu.memory_space<vmem>>, vector<8x128xf32>
      tpu.vector_store %arg7[%c0_11, %c0_12], %12 {strides = array<i32>} : memref<8x128xf32, #tpu.memory_space<vmem>>, vector<8x128xf32>,
    } else {
    }
    %c0 = arith.constant 0 : index
    %c0_1 = arith.constant 0 : index
    %3 = vector.load %arg7[%c0, %c0_1] : memref<8x128xf32, #tpu.memory_space<vmem>>, vector<8x128xf32>
    %c0_2 = arith.constant 0 : index
    %c0_3 = arith.constant 0 : index
    %4 = vector.load %arg3[%c0_2, %c0_3] : memref<8x128xf32, #tpu.memory_space<vmem>>, vector<8x128xf32>
    %c0_4 = arith.constant 0 : index
    %c0_5 = arith.constant 0 : index
    %5 = vector.load %arg4[%c0_4, %c0_5] : memref<128x128xf32, #tpu.memory_space<vmem>>, vector<128x128xf32>
    %cst = arith.constant dense<0.000000e+00> : vector<8x128xf32>
    %6 = tpu.matmul %4, %5, %cst {dimension_numbers = #tpu.dot_dimension_numbers<[1], [0], [0], [1], [0, 0, 1, 1], [], []>} : vector<8x128xf32>, vector<128x128xf32>, vector<8x128xf32> -> vector<8x128xf32>
    %7 = arith.addf %3, %6 : vector<8x128xf32>
    %c0_6 = arith.constant 0 : index
    %c0_7 = arith.constant 0 : index
    %8 = vector.load %arg7[%c0_6, %c0_7] : memref<8x128xf32, #tpu.memory_space<vmem>>, vector<8x128xf32>
    tpu.vector_store %arg7[%c0_6, %c0_7], %7 {strides = array<i32>} : memref<8x128xf32, #tpu.memory_space<vmem>>, vector<8x128xf32>,
    %c0_i32_8 = arith.constant 0 : i32
    %9 = arith.cmpi eq, %arg2, %c0_i32_8 : i32
    %10 = arith.extui %9 : i1 to i32
    %c0_i32_9 = arith.constant 0 : i32
    %11 = arith.cmpi ne, %10, %c0_i32_9 : i32
    scf.if %11 {
      %c0_10 = arith.constant 0 : index
      %c0_11 = arith.constant 0 : index
      %12 = vector.load %arg7[%c0_10, %c0_11] : memref<8x128xf32, #tpu.memory_space<vmem>>, vector<8x128xf32>
      %c0_12 = arith.constant 0 : index
      %c0_13 = arith.constant 0 : index
      %13 = vector.load %arg5[%c0_12, %c0_13] : memref<1x128xf32, #tpu.memory_space<vmem>>, vector<1x128xf32>
      %14 = vector.broadcast %13 : vector<1x128xf32> to vector<8x128xf32>
      %15 = arith.addf %12, %14 : vector<8x128xf32>
      %cst_14 = arith.constant 0.000000e+00 : f32
      %16 = vector.broadcast %cst_14 : f32 to vector<8x128xf32>
      %17 = arith.maximumf %15, %16 : vector<8x128xf32>
      %c0_15 = arith.constant 0 : index
      %c0_16 = arith.constant 0 : index
      %18 = vector.load %arg6[%c0_15, %c0_16] : memref<8x128xf32, #tpu.memory_space<vmem>>, vector<8x128xf32>
      tpu.vector_store %arg6[%c0_15, %c0_16], %17 {strides = array<i32>} : memref<8x128xf32, #tpu.memory_space<vmem>>, vector<8x128xf32>,
    } else {
    }
    return
  }
  func.func @transform_0(%arg0: i32, %arg1: i32, %arg2: i32) -> (i32, i32) {
    %c0_i32 = arith.constant 0 : i32
    return %arg0, %arg2 : i32, i32
  }
  func.func @transform_1(%arg0: i32, %arg1: i32, %arg2: i32) -> (i32, i32) {
    %c0_i32 = arith.constant 0 : i32
    return %arg2, %arg1 : i32, i32
  }
  func.func @transform_2(%arg0: i32, %arg1: i32, %arg2: i32) -> (i32, i32) {
    %c0_i32 = arith.constant 0 : i32
    %c0_i32_0 = arith.constant 0 : i32
    return %c0_i32, %arg1 : i32, i32
  }
  func.func @transform_3(%arg0: i32, %arg1: i32, %arg2: i32) -> (i32, i32) {
    %c0_i32 = arith.constant 0 : i32
    return %arg0, %arg1 : i32, i32
  }
}

</mosaic_0001>

<llo_original>
// kernel: vgg_base_forward.10
$region0: #{vgg_base_forward.10}
  #allocation0 [shape = 'u32[]', space=smem, size = 0x4, offset = 0x4, fixed_abs, tag = 'smem constant byte address 0x4 - core index']
  #allocation1 [shape = 'u32[144,128]{1,0:T(1,128)}', space=vmem, size = 0x12000, scoped, tag = 'internal scratch']
  %s0 = inlined_call_operand.vmem [shape: f32[2,8,8,8], index: 0, kind: input, shape index: {}]
  %s1 = inlined_call_operand.vmem [shape: f32[2,8,8,8], index: 1, kind: input, shape index: {}]
  %s2 = inlined_call_operand.vmem [shape: f32[2,8,8,8], index: 2, kind: input, shape index: {}]
  %s3 = inlined_call_operand.vmem [shape: f32[2,8,8,8], index: 3, kind: input, shape index: {}]
  %s4 = inlined_call_operand.vmem [shape: f32[2,8,8,8], index: 4, kind: output, shape index: {}]
  %s5 = sld [smem:[#allocation0]]
  $region49: #{vgg_base_forward.10} parent=0
    _
  %s7 = ssub.s32 1, %s5
  %s8 = scalar_select 0, %s7, %s5
  loop: start=0, step=1, limit=4
  $region2: #{vgg_base_forward.10} parent=0 // loop_pre_header
    _
  $region3: #{vgg_base_forward.10} parent=0 // loop_header
    %s10 = sphi 0, %s14
    %p11 = scmp.ge.s32.totalorder %s10, 4
    %s20 = sphi 0, %s22
    %s23 = sphi 0, %s20
    %s24 = sphi 0, %s23
    %s40 = sphi 0, %s24
    %s46 = sphi 0, %s48
    %s49 = sphi 0, %s46
    %s50 = sphi 0, %s49
    %s66 = sphi 0, %s50
    %s72 = sphi 0, %s74
    %s75 = sphi 0, %s72
    %s76 = sphi 0, %s75
    %s92 = sphi 0, %s76
    %s98 = sphi 0, %s100
    %s101 = sphi 0, %s98
    %s102 = sphi 0, %s101
    %s118 = sphi 0, %s102
    %s124 = sphi 0, %s126
    %s127 = sphi 0, %s124
    %s128 = sphi 0, %s127
    %s144 = sphi 0, %s128
  $region4: #{vgg_base_forward.10} parent=0 // loop_header_branch
    %13 = sbr.rel (%p11) target = $region8
  $region5: #{vgg_base_forward.10} parent=0 // loop_body
    %s15 = ssub.s32 %s10, 1
    %s16 = ssub.s32 %s10, 2
    %s17 = sadd.s32 %s10, 1
    %s18 = ssub.s32 %s10, %s17
    %p19 = scmp.eq.s32.totalorder %s18, 0
    %s21 = sadd.s32 %s20, 1
    %s22 = scalar_select %p19, %s20, %s21
    %p25 = pneg %p19
    %p26 = scmp.eq.s32.totalorder %s10, 1
    %p27 = por %p25, %p26
    %p28 = scmp.ne.s32.totalorder %s20, %s23
    %p29 = scmp.eq.s32.totalorder %s10, 0
    %p30 = por %p28, %p29
    %p31 = scmp.ne.s32.totalorder %s20, %s23
    %p32 = scmp.eq.s32.totalorder %s15, 1
    %p33 = por %p31, %p32
    %p34 = scmp.ne.s32.totalorder %s23, %s24
    %p35 = scmp.eq.s32.totalorder %s15, 0
    %p36 = por %p34, %p35
    %p37 = scmp.ne.s32.totalorder %s23, %s24
    %p38 = scmp.eq.s32.totalorder %s16, 1
    %p39 = por %p37, %p38
    %p41 = scmp.ne.s32.totalorder %s24, %s40
    %p42 = scmp.eq.s32.totalorder %s16, 0
    %p43 = por %p41, %p42
    %s44 = ssub.s32 %s10, %s17
    %p45 = scmp.eq.s32.totalorder %s44, 0
    %s47 = sadd.s32 %s46, 1
    %s48 = scalar_select %p45, %s46, %s47
    %p51 = pneg %p45
    %p52 = scmp.eq.s32.totalorder %s10, 1
    %p53 = por %p51, %p52
    %p54 = scmp.ne.s32.totalorder %s46, %s49
    %p55 = scmp.eq.s32.totalorder %s10, 0
    %p56 = por %p54, %p55
    %p57 = scmp.ne.s32.totalorder %s46, %s49
    %p58 = scmp.eq.s32.totalorder %s15, 1
    %p59 = por %p57, %p58
    %p60 = scmp.ne.s32.totalorder %s49, %s50
    %p61 = scmp.eq.s32.totalorder %s15, 0
    %p62 = por %p60, %p61
    %p63 = scmp.ne.s32.totalorder %s49, %s50
    %p64 = scmp.eq.s32.totalorder %s16, 1
    %p65 = por %p63, %p64
    %p67 = scmp.ne.s32.totalorder %s50, %s66
    %p68 = scmp.eq.s32.totalorder %s16, 0
    %p69 = por %p67, %p68
    %s70 = ssub.s32 %s10, %s17
    %p71 = scmp.eq.s32.totalorder %s70, 0
    %s73 = sadd.s32 %s72, 1
    %s74 = scalar_select %p71, %s72, %s73
    %p77 = pneg %p71
    %p78 = scmp.eq.s32.totalorder %s10, 1
    %p79 = por %p77, %p78
    %p80 = scmp.ne.s32.totalorder %s72, %s75
    %p81 = scmp.eq.s32.totalorder %s10, 0
    %p82 = por %p80, %p81
    %p83 = scmp.ne.s32.totalorder %s72, %s75
    %p84 = scmp.eq.s32.totalorder %s15, 1
    %p85 = por %p83, %p84
    %p86 = scmp.ne.s32.totalorder %s75, %s76
    %p87 = scmp.eq.s32.totalorder %s15, 0
    %p88 = por %p86, %p87
    %p89 = scmp.ne.s32.totalorder %s75, %s76
    %p90 = scmp.eq.s32.totalorder %s16, 1
    %p91 = por %p89, %p90
    %p93 = scmp.ne.s32.totalorder %s76, %s92
    %p94 = scmp.eq.s32.totalorder %s16, 0
    %p95 = por %p93, %p94
    %s96 = ssub.s32 %s10, %s17
    %p97 = scmp.eq.s32.totalorder %s96, 0
    %s99 = sadd.s32 %s98, 1
    %s100 = scalar_select %p97, %s98, %s99
    %p103 = pneg %p97
    %p104 = scmp.eq.s32.totalorder %s10, 1
    %p105 = por %p103, %p104
    %p106 = scmp.ne.s32.totalorder %s98, %s101
    %p107 = scmp.eq.s32.totalorder %s10, 0
    %p108 = por %p106, %p107
    %p109 = scmp.ne.s32.totalorder %s98, %s101
    %p110 = scmp.eq.s32.totalorder %s15, 1
    %p111 = por %p109, %p110
    %p112 = scmp.ne.s32.totalorder %s101, %s102
    %p113 = scmp.eq.s32.totalorder %s15, 0
    %p114 = por %p112, %p113
    %p115 = scmp.ne.s32.totalorder %s101, %s102
    %p116 = scmp.eq.s32.totalorder %s16, 1
    %p117 = por %p115, %p116
    %p119 = scmp.ne.s32.totalorder %s102, %s118
    %p120 = scmp.eq.s32.totalorder %s16, 0
    %p121 = por %p119, %p120
    %s122 = ssub.s32 %s10, %s17
    %p123 = scmp.eq.s32.totalorder %s122, 0
    %s125 = sadd.s32 %s124, 1
    %s126 = scalar_select %p123, %s124, %s125
    %p129 = pneg %p123
    %p130 = scmp.eq.s32.totalorder %s10, 1
    %p131 = por %p129, %p130
    %p132 = scmp.ne.s32.totalorder %s124, %s127
    %p133 = scmp.eq.s32.totalorder %s10, 0
    %p134 = por %p132, %p133
    %p135 = scmp.ne.s32.totalorder %s124, %s127
    %p136 = scmp.eq.s32.totalorder %s15, 1
    %p137 = por %p135, %p136
    %p138 = scmp.ne.s32.totalorder %s127, %s128
    %p139 = scmp.eq.s32.totalorder %s15, 0
    %p140 = por %p138, %p139
    %p141 = scmp.ne.s32.totalorder %s127, %s128
    %p142 = scmp.eq.s32.totalorder %s16, 1
    %p143 = por %p141, %p142
    %p145 = scmp.ne.s32.totalorder %s128, %s144
    %p146 = scmp.eq.s32.totalorder %s16, 0
    %p147 = por %p145, %p146
    %p148 = scmp.le.s32.totalorder 1, %s10
    %p149 = scmp.lt.s32.totalorder %s10, 3
    %p150 = pnand %p148, %p149
    %p151 = pneg %p150
    // Predicated region
    $region9: #{vgg_base_forward.10} parent=5 // pred_check
      _
    $region10: #{vgg_base_forward.10} parent=5 // pred_check_branch
      %153 = sbr.rel (%p150) target = $region12
    $region11: #{vgg_base_forward.10} parent=5 // pred_region
      %s154 = ssub.s32 %s10, 1
    $region12: #{vgg_base_forward.10} parent=5 // pred_fallthru
      _
    %p155 = scmp.lt.s32.totalorder %s10, 2
    // Predicated region
    $region13: #{vgg_base_forward.10} parent=5 // pred_check
      %p156 = pneg %p155
    $region14: #{vgg_base_forward.10} parent=5 // pred_check_branch
      %158 = sbr.rel (%p156) target = $region16
    $region15: #{vgg_base_forward.10} parent=5 // pred_region
      // Predicated region
      $region17: #{vgg_base_forward.10} parent=15 // pred_check
        %p159 = pneg %p30
      $region18: #{vgg_base_forward.10} parent=15 // pred_check_branch
        %161 = sbr.rel (%p159) target = $region20
      $region19: #{vgg_base_forward.10} parent=15 // pred_region
        %p162 = scmp.lt.s32.totalorder %s10, 1
        %s163 = scalar_select %p162, %s10, 1
        %s164 = smul.addr %s163, 8
        %s165 = smul.addr %s164, 8
        %s166 = scalar_lea.vmem %s0, %s165
      $region20: #{vgg_base_forward.10} parent=15 // pred_fallthru
        _
      // Predicated region
      $region21: #{vgg_base_forward.10} parent=15 // pred_check
        %p167 = pneg %p56
      $region22: #{vgg_base_forward.10} parent=15 // pred_check_branch
        %169 = sbr.rel (%p167) target = $region24
      $region23: #{vgg_base_forward.10} parent=15 // pred_region
        %p170 = scmp.lt.s32.totalorder %s10, 1
        %s171 = scalar_select %p170, %s10, 1
        %s172 = smul.addr %s171, 8
        %s173 = smul.addr %s172, 8
        %s174 = scalar_lea.vmem %s1, %s173
      $region24: #{vgg_base_forward.10} parent=15 // pred_fallthru
        _
      // Predicated region
      $region25: #{vgg_base_forward.10} parent=15 // pred_check
        %p175 = pneg %p82
      $region26: #{vgg_base_forward.10} parent=15 // pred_check_branch
        %177 = sbr.rel (%p175) target = $region28
      $region27: #{vgg_base_forward.10} parent=15 // pred_region
        %p178 = scmp.lt.s32.totalorder %s10, 1
        %s179 = scalar_select %p178, %s10, 1
        %s180 = smul.addr %s179, 8
        %s181 = smul.addr %s180, 8
        %s182 = scalar_lea.vmem %s2, %s181
      $region28: #{vgg_base_forward.10} parent=15 // pred_fallthru
        _
      // Predicated region
      $region29: #{vgg_base_forward.10} parent=15 // pred_check
        %p183 = pneg %p108
      $region30: #{vgg_base_forward.10} parent=15 // pred_check_branch
        %185 = sbr.rel (%p183) target = $region32
      $region31: #{vgg_base_forward.10} parent=15 // pred_region
        %p186 = scmp.lt.s32.totalorder %s10, 1
        %s187 = scalar_select %p186, %s10, 1
        %s188 = smul.addr %s187, 8
        %s189 = smul.addr %s188, 8
        %s190 = scalar_lea.vmem %s3, %s189
      $region32: #{vgg_base_forward.10} parent=15 // pred_fallthru
        _
    $region16: #{vgg_base_forward.10} parent=5 // pred_fallthru
      _
    %p191 = scmp.le.s32.totalorder 1, %s10
    %p192 = scmp.lt.s32.totalorder %s10, 3
    %p193 = pnand %p191, %p192
    %p194 = pneg %p193
    // Predicated region
    $region33: #{vgg_base_forward.10} parent=5 // pred_check
      _
    $region34: #{vgg_base_forward.10} parent=5 // pred_check_branch
      %196 = sbr.rel (%p193) target = $region36
    $region35: #{vgg_base_forward.10} parent=5 // pred_region
      %s197 = ssub.s32 %s10, 1
      %p198 = scmp.lt.s32.totalorder %s15, 1
      %s199 = scalar_select %p198, %s15, 1
      %s200 = smul.addr %s199, 8
      %s201 = smul.addr %s200, 8
      %s202 = scalar_lea.vmem %s0, %s201
      %p203 = pneg %p36
      %p204 = pneg %p33
      %p205 = scmp.lt.s32.totalorder %s15, 1
      %s206 = scalar_select %p205, %s15, 1
      %s207 = smul.addr %s206, 8
      %s208 = smul.addr %s207, 8
      %s209 = scalar_lea.vmem %s1, %s208
      %p210 = pneg %p62
      %p211 = pneg %p59
      %p212 = scmp.lt.s32.totalorder %s15, 1
      %s213 = scalar_select %p212, %s15, 1
      %s214 = smul.addr %s213, 8
      %s215 = smul.addr %s214, 8
      %s216 = scalar_lea.vmem %s2, %s215
      %p217 = pneg %p88
      %p218 = pneg %p85
      %p219 = scmp.lt.s32.totalorder %s15, 1
      %s220 = scalar_select %p219, %s15, 1
      %s221 = smul.addr %s220, 8
      %s222 = smul.addr %s221, 8
      %s223 = scalar_lea.vmem %s3, %s222
      %p224 = pneg %p114
      %p225 = pneg %p111
      %p226 = pneg %p140
      %p227 = pneg %p137
      %p228 = scmp.lt.s32.totalorder %s15, 1
      %s229 = scalar_select %p228, %s15, 1
      %s230 = smul.addr %s229, 8
      %s231 = smul.addr %s230, 8
      %s232 = scalar_lea.vmem %s4, %s231
      %p233 = scmp.lt.s32.totalorder %s15, 1
      %s234 = scalar_select %p233, %s15, 1
      %s235 = smul.addr %s234, 8
      %s236 = smul.addr %s235, 8
      %s237 = scalar_lea.vmem %s0, %s236
      %p238 = scmp.lt.s32.totalorder %s15, 1
      %s239 = scalar_select %p238, %s15, 1
      %s240 = smul.addr %s239, 8
      %s241 = smul.addr %s240, 8
      %s242 = scalar_lea.vmem %s1, %s241
      %p243 = scmp.lt.s32.totalorder %s15, 1
      %s244 = scalar_select %p243, %s15, 1
      %s245 = smul.addr %s244, 8
      %s246 = smul.addr %s245, 8
      %s247 = scalar_lea.vmem %s2, %s246
      %p248 = scmp.lt.s32.totalorder %s15, 1
      %s249 = scalar_select %p248, %s15, 1
      %s250 = smul.addr %s249, 8
      %s251 = smul.addr %s250, 8
      %s252 = scalar_lea.vmem %s3, %s251
      %p253 = scmp.lt.s32.totalorder %s15, 1
      %s254 = scalar_select %p253, %s15, 1
      %s255 = smul.addr %s254, 8
      %s256 = smul.addr %s255, 8
      %s257 = scalar_lea.vmem %s4, %s256
      %v258 = vld [vmem:[%s237] sm:$0xff]
      %v259 = vld [vmem:[%s237 + $0x8] sm:$0xff]
      %v260 = vld [vmem:[%s237 + $0x10] sm:$0xff]
      %v261 = vld [vmem:[%s237 + $0x18] sm:$0xff]
      %v262 = vld [vmem:[%s237 + $0x20] sm:$0xff]
      %v263 = vld [vmem:[%s237 + $0x28] sm:$0xff]
      %v264 = vld [vmem:[%s237 + $0x30] sm:$0xff]
      %v265 = vld [vmem:[%s237 + $0x38] sm:$0xff]
      %v266 = vld [vmem:[%s242] sm:$0xff]
      %v267 = vld [vmem:[%s242 + $0x8] sm:$0xff]
      %v268 = vld [vmem:[%s242 + $0x10] sm:$0xff]
      %v269 = vld [vmem:[%s242 + $0x18] sm:$0xff]
      %v270 = vld [vmem:[%s242 + $0x20] sm:$0xff]
      %v271 = vld [vmem:[%s242 + $0x28] sm:$0xff]
      %v272 = vld [vmem:[%s242 + $0x30] sm:$0xff]
      %v273 = vld [vmem:[%s242 + $0x38] sm:$0xff]
      %v274 = vmax.f32 %v258, %v266
      %v275 = vmax.f32 %v259, %v267
      %v276 = vmax.f32 %v260, %v268
      %v277 = vmax.f32 %v261, %v269
      %v278 = vmax.f32 %v262, %v270
      %v279 = vmax.f32 %v263, %v271
      %v280 = vmax.f32 %v264, %v272
      %v281 = vmax.f32 %v265, %v273
      %v282 = vld [vmem:[%s247] sm:$0xff]
      %v283 = vld [vmem:[%s247 + $0x8] sm:$0xff]
      %v284 = vld [vmem:[%s247 + $0x10] sm:$0xff]
      %v285 = vld [vmem:[%s247 + $0x18] sm:$0xff]
      %v286 = vld [vmem:[%s247 + $0x20] sm:$0xff]
      %v287 = vld [vmem:[%s247 + $0x28] sm:$0xff]
      %v288 = vld [vmem:[%s247 + $0x30] sm:$0xff]
      %v289 = vld [vmem:[%s247 + $0x38] sm:$0xff]
      %v290 = vld [vmem:[%s252] sm:$0xff]
      %v291 = vld [vmem:[%s252 + $0x8] sm:$0xff]
      %v292 = vld [vmem:[%s252 + $0x10] sm:$0xff]
      %v293 = vld [vmem:[%s252 + $0x18] sm:$0xff]
      %v294 = vld [vmem:[%s252 + $0x20] sm:$0xff]
      %v295 = vld [vmem:[%s252 + $0x28] sm:$0xff]
      %v296 = vld [vmem:[%s252 + $0x30] sm:$0xff]
      %v297 = vld [vmem:[%s252 + $0x38] sm:$0xff]
      %v298 = vmax.f32 %v282, %v290
      %v299 = vmax.f32 %v283, %v291
      %v300 = vmax.f32 %v284, %v292
      %v301 = vmax.f32 %v285, %v293
      %v302 = vmax.f32 %v286, %v294
      %v303 = vmax.f32 %v287, %v295
      %v304 = vmax.f32 %v288, %v296
      %v305 = vmax.f32 %v289, %v297
      %v306 = vmax.f32 %v274, %v298
      %v307 = vmax.f32 %v275, %v299
      %v308 = vmax.f32 %v276, %v300
      %v309 = vmax.f32 %v277, %v301
      %v310 = vmax.f32 %v278, %v302
      %v311 = vmax.f32 %v279, %v303
      %v312 = vmax.f32 %v280, %v304
      %v313 = vmax.f32 %v281, %v305
      %vm314 = vcmask 64512
      %315 = vst.msk [vmem:[%s257] sm:$0xff] %vm314, %v306
      %316 = vst.msk [vmem:[%s257 + $0x8] sm:$0xff] %vm314, %v307
      %317 = vst.msk [vmem:[%s257 + $0x10] sm:$0xff] %vm314, %v308
      %318 = vst.msk [vmem:[%s257 + $0x18] sm:$0xff] %vm314, %v309
      %319 = vst.msk [vmem:[%s257 + $0x20] sm:$0xff] %vm314, %v310
      %320 = vst.msk [vmem:[%s257 + $0x28] sm:$0xff] %vm314, %v311
      %321 = vst.msk [vmem:[%s257 + $0x30] sm:$0xff] %vm314, %v312
      %322 = vst.msk [vmem:[%s257 + $0x38] sm:$0xff] %vm314, %v313
      %p323 = scmp.lt.s32.totalorder %s15, 1
      %s324 = scalar_select %p323, %s15, 1
      %s325 = smul.addr %s324, 8
      %s326 = smul.addr %s325, 8
      %s327 = scalar_lea.vmem %s4, %s326
      // Predicated region
      $region37: #{vgg_base_forward.10} parent=35 // pred_check
        %p328 = pneg %p137
      $region38: #{vgg_base_forward.10} parent=35 // pred_check_branch
        %330 = sbr.rel (%p328) target = $region40
      $region39: #{vgg_base_forward.10} parent=35 // pred_region
        _
      $region40: #{vgg_base_forward.10} parent=35 // pred_fallthru
        _
    $region36: #{vgg_base_forward.10} parent=5 // pred_fallthru
      _
    %p331 = scmp.le.s32.totalorder 2, %s10
    // Predicated region
    $region41: #{vgg_base_forward.10} parent=5 // pred_check
      %p332 = pneg %p331
    $region42: #{vgg_base_forward.10} parent=5 // pred_check_branch
      %334 = sbr.rel (%p332) target = $region44
    $region43: #{vgg_base_forward.10} parent=5 // pred_region
      %s335 = ssub.s32 %s10, 2
      // Predicated region
      $region45: #{vgg_base_forward.10} parent=43 // pred_check
        %p336 = pneg %p143
      $region46: #{vgg_base_forward.10} parent=43 // pred_check_branch
        %338 = sbr.rel (%p336) target = $region48
      $region47: #{vgg_base_forward.10} parent=43 // pred_region
        %p339 = scmp.lt.s32.totalorder %s16, 1
        %s340 = scalar_select %p339, %s16, 1
        %s341 = smul.addr %s340, 8
        %s342 = smul.addr %s341, 8
        %s343 = scalar_lea.vmem %s4, %s342
      $region48: #{vgg_base_forward.10} parent=43 // pred_fallthru
        _
    $region44: #{vgg_base_forward.10} parent=5 // pred_fallthru
      _
  $region6: #{vgg_base_forward.10} parent=0 // loop_footer
    %s14 = sadd.s32 1, %s10
  $region7: #{vgg_base_forward.10} parent=0 // loop_footer_branch
    %9 = sbr.rel target = $region3
  $region8: #{vgg_base_forward.10} parent=0 // loop_exit
    _

// kernel: vgg_base_forward.9
$region0: #{vgg_base_forward.9}
  #allocation0 [shape = 'u32[]', space=smem, size = 0x4, offset = 0x4, fixed_abs, tag = 'smem constant byte address 0x4 - core index']
  #allocation1 [shape = 'u32[144,128]{1,0:T(1,128)}', space=vmem, size = 0x12000, scoped, tag = 'internal scratch']
  #allocation2 [shape = 'f32[128,128]{1,0:T(8,128)}', space=vmem, size = 0x10000, scoped, tag = 'scratch operand']
  %s0 = inlined_call_operand.vmem [shape: f32[512,128], index: 0, kind: input, shape index: {}]
  %s1 = inlined_call_operand.vmem [shape: f32[128,128], index: 1, kind: input, shape index: {}]
  %s2 = inlined_call_operand.vmem [shape: f32[1,128], index: 2, kind: input, shape index: {}]
  %s3 = inlined_call_operand.vmem [shape: f32[512,128], index: 3, kind: output, shape index: {}]
  %s4 = sld [smem:[#allocation0]]
  $region53: #{vgg_base_forward.9} parent=0
    _
  %s6 = ssub.s32 1, %s4
  %s7 = scalar_select 0, %s6, %s4
  loop: start=0, step=1, limit=6
  $region2: #{vgg_base_forward.9} parent=0 // loop_pre_header
    _
  $region3: #{vgg_base_forward.9} parent=0 // loop_header
    %s9 = sphi 0, %s13
    %p10 = scmp.ge.s32.totalorder %s9, 6
    %s16 = sphi 0, %s35
    %s17 = sphi 0, %s31
    %s18 = sphi 0, %s27
    %s19 = sphi 0, %s16
    %s20 = sphi 0, %s17
    %s21 = sphi 0, %s18
    %s22 = sphi 0, %s19
    %s23 = sphi 0, %s20
    %s24 = sphi 0, %s21
    %s40 = sphi 0, %s42
    %s43 = sphi 0, %s40
    %s44 = sphi 0, %s43
    %s60 = sphi 0, %s44
    %s68 = sphi 0, %s70
    %s71 = sphi 0, %s68
    %s72 = sphi 0, %s71
    %s88 = sphi 0, %s72
    %s94 = sphi 0, %s96
    %s97 = sphi 0, %s94
    %s98 = sphi 0, %s97
    %s114 = sphi 0, %s98
    %s122 = sphi 0, %s124
    %s125 = sphi 0, %s122
    %s126 = sphi 0, %s125
    %s142 = sphi 0, %s126
  $region4: #{vgg_base_forward.9} parent=0 // loop_header_branch
    %12 = sbr.rel (%p10) target = $region8
  $region5: #{vgg_base_forward.9} parent=0 // loop_body
    %s14 = ssub.s32 %s9, 1
    %s15 = ssub.s32 %s9, 2
    %s25 = sadd.s32 1, %s18
    %p26 = scmp.ge.s32.totalorder %s25, 1
    %s27 = scalar_select %p26, 0, %s25
    %s28 = sadd.s32 1, %s17
    %s29 = scalar_select %p26, %s28, %s17
    %p30 = scmp.ge.s32.totalorder %s29, 1
    %s31 = scalar_select %p30, 0, %s29
    %s32 = sadd.s32 1, %s16
    %s33 = scalar_select %p30, %s32, %s16
    %p34 = scmp.ge.s32.totalorder %s33, 4
    %s35 = scalar_select %p34, 0, %s33
    %s36 = ssub.s32 %s16, %s35
    %s37 = ssub.s32 %s18, %s27
    %s38 = sor.u32 %s36, %s37
    %p39 = scmp.eq.s32.totalorder %s38, 0
    %s41 = sadd.s32 %s40, 1
    %s42 = scalar_select %p39, %s40, %s41
    %p45 = pneg %p39
    %p46 = scmp.eq.s32.totalorder %s9, 3
    %p47 = por %p45, %p46
    %p48 = scmp.ne.s32.totalorder %s40, %s43
    %p49 = scmp.eq.s32.totalorder %s9, 0
    %p50 = por %p48, %p49
    %p51 = scmp.ne.s32.totalorder %s40, %s43
    %p52 = scmp.eq.s32.totalorder %s14, 3
    %p53 = por %p51, %p52
    %p54 = scmp.ne.s32.totalorder %s43, %s44
    %p55 = scmp.eq.s32.totalorder %s14, 0
    %p56 = por %p54, %p55
    %p57 = scmp.ne.s32.totalorder %s43, %s44
    %p58 = scmp.eq.s32.totalorder %s15, 3
    %p59 = por %p57, %p58
    %p61 = scmp.ne.s32.totalorder %s44, %s60
    %p62 = scmp.eq.s32.totalorder %s15, 0
    %p63 = por %p61, %p62
    %s64 = ssub.s32 %s18, %s27
    %s65 = ssub.s32 %s17, %s31
    %s66 = sor.u32 %s64, %s65
    %p67 = scmp.eq.s32.totalorder %s66, 0
    %s69 = sadd.s32 %s68, 1
    %s70 = scalar_select %p67, %s68, %s69
    %p73 = pneg %p67
    %p74 = scmp.eq.s32.totalorder %s9, 3
    %p75 = por %p73, %p74
    %p76 = scmp.ne.s32.totalorder %s68, %s71
    %p77 = scmp.eq.s32.totalorder %s9, 0
    %p78 = por %p76, %p77
    %p79 = scmp.ne.s32.totalorder %s68, %s71
    %p80 = scmp.eq.s32.totalorder %s14, 3
    %p81 = por %p79, %p80
    %p82 = scmp.ne.s32.totalorder %s71, %s72
    %p83 = scmp.eq.s32.totalorder %s14, 0
    %p84 = por %p82, %p83
    %p85 = scmp.ne.s32.totalorder %s71, %s72
    %p86 = scmp.eq.s32.totalorder %s15, 3
    %p87 = por %p85, %p86
    %p89 = scmp.ne.s32.totalorder %s72, %s88
    %p90 = scmp.eq.s32.totalorder %s15, 0
    %p91 = por %p89, %p90
    %s92 = ssub.s32 %s17, %s31
    %p93 = scmp.eq.s32.totalorder %s92, 0
    %s95 = sadd.s32 %s94, 1
    %s96 = scalar_select %p93, %s94, %s95
    %p99 = pneg %p93
    %p100 = scmp.eq.s32.totalorder %s9, 3
    %p101 = por %p99, %p100
    %p102 = scmp.ne.s32.totalorder %s94, %s97
    %p103 = scmp.eq.s32.totalorder %s9, 0
    %p104 = por %p102, %p103
    %p105 = scmp.ne.s32.totalorder %s94, %s97
    %p106 = scmp.eq.s32.totalorder %s14, 3
    %p107 = por %p105, %p106
    %p108 = scmp.ne.s32.totalorder %s97, %s98
    %p109 = scmp.eq.s32.totalorder %s14, 0
    %p110 = por %p108, %p109
    %p111 = scmp.ne.s32.totalorder %s97, %s98
    %p112 = scmp.eq.s32.totalorder %s15, 3
    %p113 = por %p111, %p112
    %p115 = scmp.ne.s32.totalorder %s98, %s114
    %p116 = scmp.eq.s32.totalorder %s15, 0
    %p117 = por %p115, %p116
    %s118 = ssub.s32 %s16, %s35
    %s119 = ssub.s32 %s17, %s31
    %s120 = sor.u32 %s118, %s119
    %p121 = scmp.eq.s32.totalorder %s120, 0
    %s123 = sadd.s32 %s122, 1
    %s124 = scalar_select %p121, %s122, %s123
    %p127 = pneg %p121
    %p128 = scmp.eq.s32.totalorder %s9, 3
    %p129 = por %p127, %p128
    %p130 = scmp.ne.s32.totalorder %s122, %s125
    %p131 = scmp.eq.s32.totalorder %s9, 0
    %p132 = por %p130, %p131
    %p133 = scmp.ne.s32.totalorder %s122, %s125
    %p134 = scmp.eq.s32.totalorder %s14, 3
    %p135 = por %p133, %p134
    %p136 = scmp.ne.s32.totalorder %s125, %s126
    %p137 = scmp.eq.s32.totalorder %s14, 0
    %p138 = por %p136, %p137
    %p139 = scmp.ne.s32.totalorder %s125, %s126
    %p140 = scmp.eq.s32.totalorder %s15, 3
    %p141 = por %p139, %p140
    %p143 = scmp.ne.s32.totalorder %s126, %s142
    %p144 = scmp.eq.s32.totalorder %s15, 0
    %p145 = por %p143, %p144
    %p146 = scmp.le.s32.totalorder 1, %s9
    %p147 = scmp.lt.s32.totalorder %s9, 5
    %p148 = pnand %p146, %p147
    %p149 = pneg %p148
    // Predicated region
    $region9: #{vgg_base_forward.9} parent=5 // pred_check
      _
    $region10: #{vgg_base_forward.9} parent=5 // pred_check_branch
      %151 = sbr.rel (%p148) target = $region12
    $region11: #{vgg_base_forward.9} parent=5 // pred_region
      %s152 = ssub.s32 %s9, 1
      // Predicated region
      $region13: #{vgg_base_forward.9} parent=11 // pred_check
        %p153 = pneg %p84
      $region14: #{vgg_base_forward.9} parent=11 // pred_check_branch
        %155 = sbr.rel (%p153) target = $region16
      $region15: #{vgg_base_forward.9} parent=11 // pred_region
        %s156 = smul.u32 16, %s21
        %p157 = scmp.lt.s32.totalorder %s156, 15
        %s158 = scalar_select %p157, %s156, 15
        %p159 = scmp.lt.s32.totalorder %s20, 0
        %s160 = scalar_select %p159, %s20, 0
        %s161 = sadd.s32 %s160, %s158
        %s162 = smul.addr %s161, 8
        %s163 = scalar_lea.vmem %s1, %s162
        %s164 = smul.u32 16, %s21
      $region16: #{vgg_base_forward.9} parent=11 // pred_fallthru
        _
      // Predicated region
      $region17: #{vgg_base_forward.9} parent=11 // pred_check
        %p165 = pneg %p110
      $region18: #{vgg_base_forward.9} parent=11 // pred_check_branch
        %167 = sbr.rel (%p165) target = $region20
      $region19: #{vgg_base_forward.9} parent=11 // pred_region
        %p168 = scmp.lt.s32.totalorder %s20, 0
        %s169 = scalar_select %p168, %s20, 0
        %s170 = scalar_lea.vmem %s2, %s169
      $region20: #{vgg_base_forward.9} parent=11 // pred_fallthru
        _
    $region12: #{vgg_base_forward.9} parent=5 // pred_fallthru
      _
    %p171 = scmp.lt.s32.totalorder %s9, 4
    // Predicated region
    $region21: #{vgg_base_forward.9} parent=5 // pred_check
      %p172 = pneg %p171
    $region22: #{vgg_base_forward.9} parent=5 // pred_check_branch
      %174 = sbr.rel (%p172) target = $region24
    $region23: #{vgg_base_forward.9} parent=5 // pred_region
      // Predicated region
      $region25: #{vgg_base_forward.9} parent=23 // pred_check
        %p175 = pneg %p50
      $region26: #{vgg_base_forward.9} parent=23 // pred_check_branch
        %177 = sbr.rel (%p175) target = $region28
      $region27: #{vgg_base_forward.9} parent=23 // pred_region
        %s178 = smul.u32 16, %s16
        %p179 = scmp.lt.s32.totalorder %s178, 63
        %s180 = scalar_select %p179, %s178, 63
        %p181 = scmp.lt.s32.totalorder %s18, 0
        %s182 = scalar_select %p181, %s18, 0
        %s183 = sadd.s32 %s182, %s180
        %s184 = smul.addr %s183, 8
        %s185 = scalar_lea.vmem %s0, %s184
        %s186 = smul.u32 16, %s16
      $region28: #{vgg_base_forward.9} parent=23 // pred_fallthru
        _
    $region24: #{vgg_base_forward.9} parent=5 // pred_fallthru
      _
    %p187 = scmp.le.s32.totalorder 1, %s9
    %p188 = scmp.lt.s32.totalorder %s9, 5
    %p189 = pnand %p187, %p188
    %p190 = pneg %p189
    // Predicated region
    $region29: #{vgg_base_forward.9} parent=5 // pred_check
      _
    $region30: #{vgg_base_forward.9} parent=5 // pred_check_branch
      %192 = sbr.rel (%p189) target = $region32
    $region31: #{vgg_base_forward.9} parent=5 // pred_region
      %s193 = ssub.s32 %s9, 1
      %s194 = smul.u32 16, %s19
      %p195 = scmp.lt.s32.totalorder %s194, 63
      %s196 = scalar_select %p195, %s194, 63
      %p197 = scmp.lt.s32.totalorder %s21, 0
      %s198 = scalar_select %p197, %s21, 0
      %s199 = sadd.s32 %s198, %s196
      %s200 = smul.addr %s199, 8
      %s201 = scalar_lea.vmem %s0, %s200
      %p202 = pneg %p56
      %p203 = pneg %p53
      %s204 = smul.u32 16, %s21
      %p205 = scmp.lt.s32.totalorder %s204, 15
      %s206 = scalar_select %p205, %s204, 15
      %p207 = scmp.lt.s32.totalorder %s20, 0
      %s208 = scalar_select %p207, %s20, 0
      %s209 = sadd.s32 %s208, %s206
      %s210 = smul.addr %s209, 8
      %s211 = scalar_lea.vmem %s1, %s210
      %p212 = pneg %p84
      %p213 = pneg %p81
      %p214 = scmp.lt.s32.totalorder %s20, 0
      %s215 = scalar_select %p214, %s20, 0
      %s216 = scalar_lea.vmem %s2, %s215
      %p217 = pneg %p110
      %p218 = pneg %p107
      %p219 = pneg %p138
      %p220 = pneg %p135
      %s221 = smul.u32 16, %s19
      %p222 = scmp.lt.s32.totalorder %s221, 63
      %s223 = scalar_select %p222, %s221, 63
      %p224 = scmp.lt.s32.totalorder %s20, 0
      %s225 = scalar_select %p224, %s20, 0
      %s226 = sadd.s32 %s225, %s223
      %s227 = smul.addr %s226, 8
      %s228 = scalar_lea.vmem %s3, %s227
      %s229 = smul.u32 16, %s19
      %p230 = scmp.lt.s32.totalorder %s229, 63
      %s231 = scalar_select %p230, %s229, 63
      %p232 = scmp.lt.s32.totalorder %s21, 0
      %s233 = scalar_select %p232, %s21, 0
      %s234 = sadd.s32 %s233, %s231
      %s235 = smul.addr %s234, 8
      %s236 = scalar_lea.vmem %s0, %s235
      %s237 = smul.u32 16, %s19
      %s238 = smul.u32 16, %s21
      %p239 = scmp.lt.s32.totalorder %s238, 15
      %s240 = scalar_select %p239, %s238, 15
      %p241 = scmp.lt.s32.totalorder %s20, 0
      %s242 = scalar_select %p241, %s20, 0
      %s243 = sadd.s32 %s242, %s240
      %s244 = smul.addr %s243, 8
      %s245 = scalar_lea.vmem %s1, %s244
      %s246 = smul.u32 16, %s21
      %p247 = scmp.lt.s32.totalorder %s20, 0
      %s248 = scalar_select %p247, %s20, 0
      %s249 = scalar_lea.vmem %s2, %s248
      %s250 = smul.u32 16, %s19
      %p251 = scmp.lt.s32.totalorder %s250, 63
      %s252 = scalar_select %p251, %s250, 63
      %p253 = scmp.lt.s32.totalorder %s20, 0
      %s254 = scalar_select %p253, %s20, 0
      %s255 = sadd.s32 %s254, %s252
      %s256 = smul.addr %s255, 8
      %s257 = scalar_lea.vmem %s3, %s256
      %s258 = smul.u32 16, %s19
      %p259 = scmp.eq.s32.totalorder %s21, 0
      // Predicated region
      $region33: #{vgg_base_forward.9} parent=31 // pred_check
        %p260 = pneg %p259
      $region34: #{vgg_base_forward.9} parent=31 // pred_check_branch
        %262 = sbr.rel (%p260) target = $region36
      $region35: #{vgg_base_forward.9} parent=31 // pred_region
        %263 = vst [vmem:[#allocation2] sm:$0xff] 0.0
        %264 = vst [vmem:[#allocation2 + $0x8] sm:$0xff] 0.0
        %265 = vst [vmem:[#allocation2 + $0x10] sm:$0xff] 0.0
        %266 = vst [vmem:[#allocation2 + $0x18] sm:$0xff] 0.0
        %267 = vst [vmem:[#allocation2 + $0x20] sm:$0xff] 0.0
        %268 = vst [vmem:[#allocation2 + $0x28] sm:$0xff] 0.0
        %269 = vst [vmem:[#allocation2 + $0x30] sm:$0xff] 0.0
        %270 = vst [vmem:[#allocation2 + $0x38] sm:$0xff] 0.0
        %271 = vst [vmem:[#allocation2 + $0x40] sm:$0xff] 0.0
        %272 = vst [vmem:[#allocation2 + $0x48] sm:$0xff] 0.0
        %273 = vst [vmem:[#allocation2 + $0x50] sm:$0xff] 0.0
        %274 = vst [vmem:[#allocation2 + $0x58] sm:$0xff] 0.0
        %275 = vst [vmem:[#allocation2 + $0x60] sm:$0xff] 0.0
        %276 = vst [vmem:[#allocation2 + $0x68] sm:$0xff] 0.0
        %277 = vst [vmem:[#allocation2 + $0x70] sm:$0xff] 0.0
        %278 = vst [vmem:[#allocation2 + $0x78] sm:$0xff] 0.0
      $region36: #{vgg_base_forward.9} parent=31 // pred_fallthru
        _
      %v279 = vld [vmem:[#allocation2] sm:$0xff]
      %v280 = vld [vmem:[#allocation2 + $0x8] sm:$0xff]
      %v281 = vld [vmem:[#allocation2 + $0x10] sm:$0xff]
      %v282 = vld [vmem:[#allocation2 + $0x18] sm:$0xff]
      %v283 = vld [vmem:[#allocation2 + $0x20] sm:$0xff]
      %v284 = vld [vmem:[#allocation2 + $0x28] sm:$0xff]
      %v285 = vld [vmem:[#allocation2 + $0x30] sm:$0xff]
      %v286 = vld [vmem:[#allocation2 + $0x38] sm:$0xff]
      %v287 = vld [vmem:[#allocation2 + $0x40] sm:$0xff]
      %v288 = vld [vmem:[#allocation2 + $0x48] sm:$0xff]
      %v289 = vld [vmem:[#allocation2 + $0x50] sm:$0xff]
      %v290 = vld [vmem:[#allocation2 + $0x58] sm:$0xff]
      %v291 = vld [vmem:[#allocation2 + $0x60] sm:$0xff]
      %v292 = vld [vmem:[#allocation2 + $0x68] sm:$0xff]
      %v293 = vld [vmem:[#allocation2 + $0x70] sm:$0xff]
      %v294 = vld [vmem:[#allocation2 + $0x78] sm:$0xff]
      %v295 = vld [vmem:[%s236] sm:$0xff]
      %v296 = vld [vmem:[%s236 + $0x8] sm:$0xff]
      %v297 = vld [vmem:[%s236 + $0x10] sm:$0xff]
      %v298 = vld [vmem:[%s236 + $0x18] sm:$0xff]
      %v299 = vld [vmem:[%s236 + $0x20] sm:$0xff]
      %v300 = vld [vmem:[%s236 + $0x28] sm:$0xff]
      %v301 = vld [vmem:[%s236 + $0x30] sm:$0xff]
      %v302 = vld [vmem:[%s236 + $0x38] sm:$0xff]
      %v303 = vld [vmem:[%s236 + $0x40] sm:$0xff]
      %v304 = vld [vmem:[%s236 + $0x48] sm:$0xff]
      %v305 = vld [vmem:[%s236 + $0x50] sm:$0xff]
      %v306 = vld [vmem:[%s236 + $0x58] sm:$0xff]
      %v307 = vld [vmem:[%s236 + $0x60] sm:$0xff]
      %v308 = vld [vmem:[%s236 + $0x68] sm:$0xff]
      %v309 = vld [vmem:[%s236 + $0x70] sm:$0xff]
      %v310 = vld [vmem:[%s236 + $0x78] sm:$0xff]
      %v311 = vld [vmem:[%s245] sm:$0xff]
      %v312 = vld [vmem:[%s245 + $0x8] sm:$0xff]
      %v313 = vld [vmem:[%s245 + $0x10] sm:$0xff]
      %v314 = vld [vmem:[%s245 + $0x18] sm:$0xff]
      %v315 = vld [vmem:[%s245 + $0x20] sm:$0xff]
      %v316 = vld [vmem:[%s245 + $0x28] sm:$0xff]
      %v317 = vld [vmem:[%s245 + $0x30] sm:$0xff]
      %v318 = vld [vmem:[%s245 + $0x38] sm:$0xff]
      %v319 = vld [vmem:[%s245 + $0x40] sm:$0xff]
      %v320 = vld [vmem:[%s245 + $0x48] sm:$0xff]
      %v321 = vld [vmem:[%s245 + $0x50] sm:$0xff]
      %v322 = vld [vmem:[%s245 + $0x58] sm:$0xff]
      %v323 = vld [vmem:[%s245 + $0x60] sm:$0xff]
      %v324 = vld [vmem:[%s245 + $0x68] sm:$0xff]
      %v325 = vld [vmem:[%s245 + $0x70] sm:$0xff]
      %v326 = vld [vmem:[%s245 + $0x78] sm:$0xff]
      %327 = vmatprep.subr.mxu0 0.0
      %328 = vmatpush1.msra.mxu0 %v326
      %329 = vmatprep.subr.mxu0 0.0
      %330 = vmatpush1.msra.mxu0 %v325
      %331 = vmatprep.subr.mxu0 0.0
      %332 = vmatpush1.msra.mxu0 %v324
      %333 = vmatprep.subr.mxu0 0.0
      %334 = vmatpush1.msra.mxu0 %v323
      %335 = vmatprep.subr.mxu0 0.0
      %336 = vmatpush1.msra.mxu0 %v322
      %337 = vmatprep.subr.mxu0 0.0
      %338 = vmatpush1.msra.mxu0 %v321
      %339 = vmatprep.subr.mxu0 0.0
      %340 = vmatpush1.msra.mxu0 %v320
      %341 = vmatprep.subr.mxu0 0.0
      %342 = vmatpush1.msra.mxu0 %v319
      %343 = vmatprep.subr.mxu0 0.0
      %344 = vmatpush1.msra.mxu0 %v318
      %345 = vmatprep.subr.mxu0 0.0
      %346 = vmatpush1.msra.mxu0 %v317
      %347 = vmatprep.subr.mxu0 0.0
      %348 = vmatpush1.msra.mxu0 %v316
      %349 = vmatprep.subr.mxu0 0.0
      %350 = vmatpush1.msra.mxu0 %v315
      %351 = vmatprep.subr.mxu0 0.0
      %352 = vmatpush1.msra.mxu0 %v314
      %353 = vmatprep.subr.mxu0 0.0
      %354 = vmatpush1.msra.mxu0 %v313
      %355 = vmatprep.subr.mxu0 0.0
      %356 = vmatpush1.msra.mxu0 %v312
      %357 = vmatprep.subr.mxu0 0.0
      %358 = vmatpush1.msra.mxu0 %v311
      %359 = vmatprep.subr.mxu0 0.0
      %360 = vmatpush2.msra.mxu0 0.0
      %361 = vmatprep.subr.mxu0 0.0
      %362 = vmatpush2.msra.mxu0 0.0
      %363 = vmatprep.subr.mxu0 0.0
      %364 = vmatpush2.msra.mxu0 0.0
      %365 = vmatprep.subr.mxu0 0.0
      %366 = vmatpush2.msra.mxu0 0.0
      %367 = vmatprep.subr.mxu0 0.0
      %368 = vmatpush2.msra.mxu0 0.0
      %369 = vmatprep.subr.mxu0 0.0
      %370 = vmatpush2.msra.mxu0 0.0
      %371 = vmatprep.subr.mxu0 0.0
      %372 = vmatpush2.msra.mxu0 0.0
      %373 = vmatprep.subr.mxu0 0.0
      %374 = vmatpush2.msra.mxu0 0.0
      %375 = vmatprep.subr.mxu0 0.0
      %376 = vmatpush2.msra.mxu0 0.0
      %377 = vmatprep.subr.mxu0 0.0
      %378 = vmatpush2.msra.mxu0 0.0
      %379 = vmatprep.subr.mxu0 0.0
      %380 = vmatpush2.msra.mxu0 0.0
      %381 = vmatprep.subr.mxu0 0.0
      %382 = vmatpush2.msra.mxu0 0.0
      %383 = vmatprep.subr.mxu0 0.0
      %384 = vmatpush2.msra.mxu0 0.0
      %385 = vmatprep.subr.mxu0 0.0
      %386 = vmatpush2.msra.mxu0 0.0
      %387 = vmatprep.subr.mxu0 0.0
      %388 = vmatpush2.msra.mxu0 0.0
      %389 = vmatprep.subr.mxu0 0.0
      %390 = vmatpush2.msra.mxu0 0.0
      %391 = vmatprep.mubr.f32.mxu0 0.0
      %392 = vmatmul.mubr.f32.gmra.mxu0 %v295
      %v393 = vpop.f32.mrf.mxu0
      %v394 = vadd.f32 0.0, %v393
      %v395 = vpop.f32.mrf.mxu0
      %396 = vmatprep.mubr.f32.mxu0 0.0
      %397 = vmatmul.mubr.f32.gmra.mxu0 %v296
      %v398 = vpop.f32.mrf.mxu0
      %v399 = vadd.f32 0.0, %v398
      %v400 = vpop.f32.mrf.mxu0
      %401 = vmatprep.mubr.f32.mxu0 0.0
      %402 = vmatmul.mubr.f32.gmra.mxu0 %v297
      %v403 = vpop.f32.mrf.mxu0
      %v404 = vadd.f32 0.0, %v403
      %v405 = vpop.f32.mrf.mxu0
      %406 = vmatprep.mubr.f32.mxu0 0.0
      %407 = vmatmul.mubr.f32.gmra.mxu0 %v298
      %v408 = vpop.f32.mrf.mxu0
      %v409 = vadd.f32 0.0, %v408
      %v410 = vpop.f32.mrf.mxu0
      %411 = vmatprep.mubr.f32.mxu0 0.0
      %412 = vmatmul.mubr.f32.gmra.mxu0 %v299
      %v413 = vpop.f32.mrf.mxu0
      %v414 = vadd.f32 0.0, %v413
      %v415 = vpop.f32.mrf.mxu0
      %416 = vmatprep.mubr.f32.mxu0 0.0
      %417 = vmatmul.mubr.f32.gmra.mxu0 %v300
      %v418 = vpop.f32.mrf.mxu0
      %v419 = vadd.f32 0.0, %v418
      %v420 = vpop.f32.mrf.mxu0
      %421 = vmatprep.mubr.f32.mxu0 0.0
      %422 = vmatmul.mubr.f32.gmra.mxu0 %v301
      %v423 = vpop.f32.mrf.mxu0
      %v424 = vadd.f32 0.0, %v423
      %v425 = vpop.f32.mrf.mxu0
      %426 = vmatprep.mubr.f32.mxu0 0.0
      %427 = vmatmul.mubr.f32.gmra.mxu0 %v302
      %v428 = vpop.f32.mrf.mxu0
      %v429 = vadd.f32 0.0, %v428
      %v430 = vpop.f32.mrf.mxu0
      %431 = vmatprep.mubr.f32.mxu0 0.0
      %432 = vmatmul.mubr.f32.gmra.mxu0 %v303
      %v433 = vpop.f32.mrf.mxu0
      %v434 = vadd.f32 0.0, %v433
      %v435 = vpop.f32.mrf.mxu0
      %436 = vmatprep.mubr.f32.mxu0 0.0
      %437 = vmatmul.mubr.f32.gmra.mxu0 %v304
      %v438 = vpop.f32.mrf.mxu0
      %v439 = vadd.f32 0.0, %v438
      %v440 = vpop.f32.mrf.mxu0
      %441 = vmatprep.mubr.f32.mxu0 0.0
      %442 = vmatmul.mubr.f32.gmra.mxu0 %v305
      %v443 = vpop.f32.mrf.mxu0
      %v444 = vadd.f32 0.0, %v443
      %v445 = vpop.f32.mrf.mxu0
      %446 = vmatprep.mubr.f32.mxu0 0.0
      %447 = vmatmul.mubr.f32.gmra.mxu0 %v306
      %v448 = vpop.f32.mrf.mxu0
      %v449 = vadd.f32 0.0, %v448
      %v450 = vpop.f32.mrf.mxu0
      %451 = vmatprep.mubr.f32.mxu0 0.0
      %452 = vmatmul.mubr.f32.gmra.mxu0 %v307
      %v453 = vpop.f32.mrf.mxu0
      %v454 = vadd.f32 0.0, %v453
      %v455 = vpop.f32.mrf.mxu0
      %456 = vmatprep.mubr.f32.mxu0 0.0
      %457 = vmatmul.mubr.f32.gmra.mxu0 %v308
      %v458 = vpop.f32.mrf.mxu0
      %v459 = vadd.f32 0.0, %v458
      %v460 = vpop.f32.mrf.mxu0
      %461 = vmatprep.mubr.f32.mxu0 0.0
      %462 = vmatmul.mubr.f32.gmra.mxu0 %v309
      %v463 = vpop.f32.mrf.mxu0
      %v464 = vadd.f32 0.0, %v463
      %v465 = vpop.f32.mrf.mxu0
      %466 = vmatprep.mubr.f32.mxu0 0.0
      %467 = vmatmul.mubr.f32.gmra.mxu0 %v310
      %v468 = vpop.f32.mrf.mxu0
      %v469 = vadd.f32 0.0, %v468
      %v470 = vpop.f32.mrf.mxu0
      %471 = vdwg.mxu0
      %v472 = vadd.f32 %v279, %v394
      %v473 = vadd.f32 %v280, %v399
      %v474 = vadd.f32 %v281, %v404
      %v475 = vadd.f32 %v282, %v409
      %v476 = vadd.f32 %v283, %v414
      %v477 = vadd.f32 %v284, %v419
      %v478 = vadd.f32 %v285, %v424
      %v479 = vadd.f32 %v286, %v429
      %v480 = vadd.f32 %v287, %v434
      %v481 = vadd.f32 %v288, %v439
      %v482 = vadd.f32 %v289, %v444
      %v483 = vadd.f32 %v290, %v449
      %v484 = vadd.f32 %v291, %v454
      %v485 = vadd.f32 %v292, %v459
      %v486 = vadd.f32 %v293, %v464
      %v487 = vadd.f32 %v294, %v469
      %488 = vst [vmem:[#allocation2] sm:$0xff] %v472
      %489 = vst [vmem:[#allocation2 + $0x8] sm:$0xff] %v473
      %490 = vst [vmem:[#allocation2 + $0x10] sm:$0xff] %v474
      %491 = vst [vmem:[#allocation2 + $0x18] sm:$0xff] %v475
      %492 = vst [vmem:[#allocation2 + $0x20] sm:$0xff] %v476
      %493 = vst [vmem:[#allocation2 + $0x28] sm:$0xff] %v477
      %494 = vst [vmem:[#allocation2 + $0x30] sm:$0xff] %v478
      %495 = vst [vmem:[#allocation2 + $0x38] sm:$0xff] %v479
      %496 = vst [vmem:[#allocation2 + $0x40] sm:$0xff] %v480
      %497 = vst [vmem:[#allocation2 + $0x48] sm:$0xff] %v481
      %498 = vst [vmem:[#allocation2 + $0x50] sm:$0xff] %v482
      %499 = vst [vmem:[#allocation2 + $0x58] sm:$0xff] %v483
      %500 = vst [vmem:[#allocation2 + $0x60] sm:$0xff] %v484
      %501 = vst [vmem:[#allocation2 + $0x68] sm:$0xff] %v485
      %502 = vst [vmem:[#allocation2 + $0x70] sm:$0xff] %v486
      %503 = vst [vmem:[#allocation2 + $0x78] sm:$0xff] %v487
      // Predicated region
      $region37: #{vgg_base_forward.9} parent=31 // pred_check
        %p504 = pneg %p259
      $region38: #{vgg_base_forward.9} parent=31 // pred_check_branch
        %506 = sbr.rel (%p504) target = $region40
      $region39: #{vgg_base_forward.9} parent=31 // pred_region
        %v507 = vld [vmem:[#allocation2] sm:$0xff]
        %v508 = vld [vmem:[#allocation2 + $0x8] sm:$0xff]
        %v509 = vld [vmem:[#allocation2 + $0x10] sm:$0xff]
        %v510 = vld [vmem:[#allocation2 + $0x18] sm:$0xff]
        %v511 = vld [vmem:[#allocation2 + $0x20] sm:$0xff]
        %v512 = vld [vmem:[#allocation2 + $0x28] sm:$0xff]
        %v513 = vld [vmem:[#allocation2 + $0x30] sm:$0xff]
        %v514 = vld [vmem:[#allocation2 + $0x38] sm:$0xff]
        %v515 = vld [vmem:[#allocation2 + $0x40] sm:$0xff]
        %v516 = vld [vmem:[#allocation2 + $0x48] sm:$0xff]
        %v517 = vld [vmem:[#allocation2 + $0x50] sm:$0xff]
        %v518 = vld [vmem:[#allocation2 + $0x58] sm:$0xff]
        %v519 = vld [vmem:[#allocation2 + $0x60] sm:$0xff]
        %v520 = vld [vmem:[#allocation2 + $0x68] sm:$0xff]
        %v521 = vld [vmem:[#allocation2 + $0x70] sm:$0xff]
        %v522 = vld [vmem:[#allocation2 + $0x78] sm:$0xff]
        %v523 = vld [vmem:[%s249] sm:$0x1]
        %v525 = vlaneseq
        %v526 = vshrl.u32 %v525, 7
        %v527 = vsub.s32 0, %v526
        %v528 = vrot.slane %v523, %v527
        %v530 = vadd.f32 %v507, %v528
        %v531 = vadd.f32 %v508, %v528
        %v532 = vadd.f32 %v509, %v528
        %v533 = vadd.f32 %v510, %v528
        %v534 = vadd.f32 %v511, %v528
        %v535 = vadd.f32 %v512, %v528
        %v536 = vadd.f32 %v513, %v528
        %v537 = vadd.f32 %v514, %v528
        %v538 = vadd.f32 %v515, %v528
        %v539 = vadd.f32 %v516, %v528
        %v540 = vadd.f32 %v517, %v528
        %v541 = vadd.f32 %v518, %v528
        %v542 = vadd.f32 %v519, %v528
        %v543 = vadd.f32 %v520, %v528
        %v544 = vadd.f32 %v521, %v528
        %v545 = vadd.f32 %v522, %v528
        %v546 = vmax.f32 %v530, 0.0
        %v547 = vmax.f32 %v531, 0.0
        %v548 = vmax.f32 %v532, 0.0
        %v549 = vmax.f32 %v533, 0.0
        %v550 = vmax.f32 %v534, 0.0
        %v551 = vmax.f32 %v535, 0.0
        %v552 = vmax.f32 %v536, 0.0
        %v553 = vmax.f32 %v537, 0.0
        %v554 = vmax.f32 %v538, 0.0
        %v555 = vmax.f32 %v539, 0.0
        %v556 = vmax.f32 %v540, 0.0
        %v557 = vmax.f32 %v541, 0.0
        %v558 = vmax.f32 %v542, 0.0
        %v559 = vmax.f32 %v543, 0.0
        %v560 = vmax.f32 %v544, 0.0
        %v561 = vmax.f32 %v545, 0.0
        %562 = vst [vmem:[%s257] sm:$0xff] %v546
        %563 = vst [vmem:[%s257 + $0x8] sm:$0xff] %v547
        %564 = vst [vmem:[%s257 + $0x10] sm:$0xff] %v548
        %565 = vst [vmem:[%s257 + $0x18] sm:$0xff] %v549
        %566 = vst [vmem:[%s257 + $0x20] sm:$0xff] %v550
        %567 = vst [vmem:[%s257 + $0x28] sm:$0xff] %v551
        %568 = vst [vmem:[%s257 + $0x30] sm:$0xff] %v552
        %569 = vst [vmem:[%s257 + $0x38] sm:$0xff] %v553
        %570 = vst [vmem:[%s257 + $0x40] sm:$0xff] %v554
        %571 = vst [vmem:[%s257 + $0x48] sm:$0xff] %v555
        %572 = vst [vmem:[%s257 + $0x50] sm:$0xff] %v556
        %573 = vst [vmem:[%s257 + $0x58] sm:$0xff] %v557
        %574 = vst [vmem:[%s257 + $0x60] sm:$0xff] %v558
        %575 = vst [vmem:[%s257 + $0x68] sm:$0xff] %v559
        %576 = vst [vmem:[%s257 + $0x70] sm:$0xff] %v560
        %577 = vst [vmem:[%s257 + $0x78] sm:$0xff] %v561
      $region40: #{vgg_base_forward.9} parent=31 // pred_fallthru
        _
      %s578 = smul.u32 16, %s19
      %p579 = scmp.lt.s32.totalorder %s578, 63
      %s580 = scalar_select %p579, %s578, 63
      %p581 = scmp.lt.s32.totalorder %s20, 0
      %s582 = scalar_select %p581, %s20, 0
      %s583 = sadd.s32 %s582, %s580
      %s584 = smul.addr %s583, 8
      %s585 = scalar_lea.vmem %s3, %s584
      // Predicated region
      $region41: #{vgg_base_forward.9} parent=31 // pred_check
        %p586 = pneg %p135
      $region42: #{vgg_base_forward.9} parent=31 // pred_check_branch
        %588 = sbr.rel (%p586) target = $region44
      $region43: #{vgg_base_forward.9} parent=31 // pred_region
        %s589 = smul.u32 16, %s19
      $region44: #{vgg_base_forward.9} parent=31 // pred_fallthru
        _
    $region32: #{vgg_base_forward.9} parent=5 // pred_fallthru
      _
    %p590 = scmp.le.s32.totalorder 2, %s9
    // Predicated region
    $region45: #{vgg_base_forward.9} parent=5 // pred_check
      %p591 = pneg %p590
    $region46: #{vgg_base_forward.9} parent=5 // pred_check_branch
      %593 = sbr.rel (%p591) target = $region48
    $region47: #{vgg_base_forward.9} parent=5 // pred_region
      %s594 = ssub.s32 %s9, 2
      // Predicated region
      $region49: #{vgg_base_forward.9} parent=47 // pred_check
        %p595 = pneg %p141
      $region50: #{vgg_base_forward.9} parent=47 // pred_check_branch
        %597 = sbr.rel (%p595) target = $region52
      $region51: #{vgg_base_forward.9} parent=47 // pred_region
        %s598 = smul.u32 16, %s22
        %p599 = scmp.lt.s32.totalorder %s598, 63
        %s600 = scalar_select %p599, %s598, 63
        %p601 = scmp.lt.s32.totalorder %s23, 0
        %s602 = scalar_select %p601, %s23, 0
        %s603 = sadd.s32 %s602, %s600
        %s604 = smul.addr %s603, 8
        %s605 = scalar_lea.vmem %s3, %s604
      $region52: #{vgg_base_forward.9} parent=47 // pred_fallthru
        _
    $region48: #{vgg_base_forward.9} parent=5 // pred_fallthru
      _
  $region6: #{vgg_base_forward.9} parent=0 // loop_footer
    %s13 = sadd.s32 1, %s9
  $region7: #{vgg_base_forward.9} parent=0 // loop_footer_branch
    %8 = sbr.rel target = $region3
  $region8: #{vgg_base_forward.9} parent=0 // loop_exit
    _

// kernel: vgg_base_forward.11
$region0: #{vgg_base_forward.11}
  #allocation0 [shape = 'u32[]', space=smem, size = 0x4, offset = 0x4, fixed_abs, tag = 'smem constant byte address 0x4 - core index']
  #allocation1 [shape = 'u32[144,128]{1,0:T(1,128)}', space=vmem, size = 0x12000, scoped, tag = 'internal scratch']
  #allocation2 [shape = 'f32[128,128]{1,0:T(8,128)}', space=vmem, size = 0x10000, scoped, tag = 'scratch operand']
  %s0 = inlined_call_operand.vmem [shape: f32[128,128], index: 0, kind: input, shape index: {}]
  %s1 = inlined_call_operand.vmem [shape: f32[128,128], index: 1, kind: input, shape index: {}]
  %s2 = inlined_call_operand.vmem [shape: f32[1,128], index: 2, kind: input, shape index: {}]
  %s3 = inlined_call_operand.vmem [shape: f32[128,128], index: 3, kind: output, shape index: {}]
  %s4 = sld [smem:[#allocation0]]
  $region30: #{vgg_base_forward.11} parent=0
    _
  %s6 = ssub.s32 1, %s4
  %s7 = scalar_select 0, %s6, %s4
  // Predicated region
  $region2: #{vgg_base_forward.11} parent=0 // pred_check
    _
  $region3: #{vgg_base_forward.11} parent=0 // pred_check_branch
    %9 = sbr.rel (0) target = $region5
  $region4: #{vgg_base_forward.11} parent=0 // pred_region
    _
  $region5: #{vgg_base_forward.11} parent=0 // pred_fallthru
    _
  // Predicated region
  $region6: #{vgg_base_forward.11} parent=0 // pred_check
    _
  $region7: #{vgg_base_forward.11} parent=0 // pred_check_branch
    %11 = sbr.rel (0) target = $region9
  $region8: #{vgg_base_forward.11} parent=0 // pred_region
    _
  $region9: #{vgg_base_forward.11} parent=0 // pred_fallthru
    _
  // Predicated region
  $region10: #{vgg_base_forward.11} parent=0 // pred_check
    _
  $region11: #{vgg_base_forward.11} parent=0 // pred_check_branch
    %13 = sbr.rel (0) target = $region13
  $region12: #{vgg_base_forward.11} parent=0 // pred_region
    _
  $region13: #{vgg_base_forward.11} parent=0 // pred_fallthru
    _
  %p14 = scmp.eq.s32.totalorder 0, 0
  // Predicated region
  $region14: #{vgg_base_forward.11} parent=0 // pred_check
    %p15 = pneg %p14
  $region15: #{vgg_base_forward.11} parent=0 // pred_check_branch
    %17 = sbr.rel (%p15) target = $region17
  $region16: #{vgg_base_forward.11} parent=0 // pred_region
    %18 = vst [vmem:[#allocation2] sm:$0xff] 0.0
    %19 = vst [vmem:[#allocation2 + $0x8] sm:$0xff] 0.0
    %20 = vst [vmem:[#allocation2 + $0x10] sm:$0xff] 0.0
    %21 = vst [vmem:[#allocation2 + $0x18] sm:$0xff] 0.0
    %22 = vst [vmem:[#allocation2 + $0x20] sm:$0xff] 0.0
    %23 = vst [vmem:[#allocation2 + $0x28] sm:$0xff] 0.0
    %24 = vst [vmem:[#allocation2 + $0x30] sm:$0xff] 0.0
    %25 = vst [vmem:[#allocation2 + $0x38] sm:$0xff] 0.0
    %26 = vst [vmem:[#allocation2 + $0x40] sm:$0xff] 0.0
    %27 = vst [vmem:[#allocation2 + $0x48] sm:$0xff] 0.0
    %28 = vst [vmem:[#allocation2 + $0x50] sm:$0xff] 0.0
    %29 = vst [vmem:[#allocation2 + $0x58] sm:$0xff] 0.0
    %30 = vst [vmem:[#allocation2 + $0x60] sm:$0xff] 0.0
    %31 = vst [vmem:[#allocation2 + $0x68] sm:$0xff] 0.0
    %32 = vst [vmem:[#allocation2 + $0x70] sm:$0xff] 0.0
    %33 = vst [vmem:[#allocation2 + $0x78] sm:$0xff] 0.0
  $region17: #{vgg_base_forward.11} parent=0 // pred_fallthru
    _
  %v34 = vld [vmem:[#allocation2] sm:$0xff]
  %v35 = vld [vmem:[#allocation2 + $0x8] sm:$0xff]
  %v36 = vld [vmem:[#allocation2 + $0x10] sm:$0xff]
  %v37 = vld [vmem:[#allocation2 + $0x18] sm:$0xff]
  %v38 = vld [vmem:[#allocation2 + $0x20] sm:$0xff]
  %v39 = vld [vmem:[#allocation2 + $0x28] sm:$0xff]
  %v40 = vld [vmem:[#allocation2 + $0x30] sm:$0xff]
  %v41 = vld [vmem:[#allocation2 + $0x38] sm:$0xff]
  %v42 = vld [vmem:[#allocation2 + $0x40] sm:$0xff]
  %v43 = vld [vmem:[#allocation2 + $0x48] sm:$0xff]
  %v44 = vld [vmem:[#allocation2 + $0x50] sm:$0xff]
  %v45 = vld [vmem:[#allocation2 + $0x58] sm:$0xff]
  %v46 = vld [vmem:[#allocation2 + $0x60] sm:$0xff]
  %v47 = vld [vmem:[#allocation2 + $0x68] sm:$0xff]
  %v48 = vld [vmem:[#allocation2 + $0x70] sm:$0xff]
  %v49 = vld [vmem:[#allocation2 + $0x78] sm:$0xff]
  %v50 = vld [vmem:[%s0] sm:$0xff]
  %v51 = vld [vmem:[%s0 + $0x8] sm:$0xff]
  %v52 = vld [vmem:[%s0 + $0x10] sm:$0xff]
  %v53 = vld [vmem:[%s0 + $0x18] sm:$0xff]
  %v54 = vld [vmem:[%s0 + $0x20] sm:$0xff]
  %v55 = vld [vmem:[%s0 + $0x28] sm:$0xff]
  %v56 = vld [vmem:[%s0 + $0x30] sm:$0xff]
  %v57 = vld [vmem:[%s0 + $0x38] sm:$0xff]
  %v58 = vld [vmem:[%s0 + $0x40] sm:$0xff]
  %v59 = vld [vmem:[%s0 + $0x48] sm:$0xff]
  %v60 = vld [vmem:[%s0 + $0x50] sm:$0xff]
  %v61 = vld [vmem:[%s0 + $0x58] sm:$0xff]
  %v62 = vld [vmem:[%s0 + $0x60] sm:$0xff]
  %v63 = vld [vmem:[%s0 + $0x68] sm:$0xff]
  %v64 = vld [vmem:[%s0 + $0x70] sm:$0xff]
  %v65 = vld [vmem:[%s0 + $0x78] sm:$0xff]
  %v66 = vld [vmem:[%s1] sm:$0xff]
  %v67 = vld [vmem:[%s1 + $0x8] sm:$0xff]
  %v68 = vld [vmem:[%s1 + $0x10] sm:$0xff]
  %v69 = vld [vmem:[%s1 + $0x18] sm:$0xff]
  %v70 = vld [vmem:[%s1 + $0x20] sm:$0xff]
  %v71 = vld [vmem:[%s1 + $0x28] sm:$0xff]
  %v72 = vld [vmem:[%s1 + $0x30] sm:$0xff]
  %v73 = vld [vmem:[%s1 + $0x38] sm:$0xff]
  %v74 = vld [vmem:[%s1 + $0x40] sm:$0xff]
  %v75 = vld [vmem:[%s1 + $0x48] sm:$0xff]
  %v76 = vld [vmem:[%s1 + $0x50] sm:$0xff]
  %v77 = vld [vmem:[%s1 + $0x58] sm:$0xff]
  %v78 = vld [vmem:[%s1 + $0x60] sm:$0xff]
  %v79 = vld [vmem:[%s1 + $0x68] sm:$0xff]
  %v80 = vld [vmem:[%s1 + $0x70] sm:$0xff]
  %v81 = vld [vmem:[%s1 + $0x78] sm:$0xff]
  %82 = vmatprep.subr.mxu0 0.0
  %83 = vmatpush1.msra.mxu0 %v81
  %84 = vmatprep.subr.mxu0 0.0
  %85 = vmatpush1.msra.mxu0 %v80
  %86 = vmatprep.subr.mxu0 0.0
  %87 = vmatpush1.msra.mxu0 %v79
  %88 = vmatprep.subr.mxu0 0.0
  %89 = vmatpush1.msra.mxu0 %v78
  %90 = vmatprep.subr.mxu0 0.0
  %91 = vmatpush1.msra.mxu0 %v77
  %92 = vmatprep.subr.mxu0 0.0
  %93 = vmatpush1.msra.mxu0 %v76
  %94 = vmatprep.subr.mxu0 0.0
  %95 = vmatpush1.msra.mxu0 %v75
  %96 = vmatprep.subr.mxu0 0.0
  %97 = vmatpush1.msra.mxu0 %v74
  %98 = vmatprep.subr.mxu0 0.0
  %99 = vmatpush1.msra.mxu0 %v73
  %100 = vmatprep.subr.mxu0 0.0
  %101 = vmatpush1.msra.mxu0 %v72
  %102 = vmatprep.subr.mxu0 0.0
  %103 = vmatpush1.msra.mxu0 %v71
  %104 = vmatprep.subr.mxu0 0.0
  %105 = vmatpush1.msra.mxu0 %v70
  %106 = vmatprep.subr.mxu0 0.0
  %107 = vmatpush1.msra.mxu0 %v69
  %108 = vmatprep.subr.mxu0 0.0
  %109 = vmatpush1.msra.mxu0 %v68
  %110 = vmatprep.subr.mxu0 0.0
  %111 = vmatpush1.msra.mxu0 %v67
  %112 = vmatprep.subr.mxu0 0.0
  %113 = vmatpush1.msra.mxu0 %v66
  %114 = vmatprep.subr.mxu0 0.0
  %115 = vmatpush2.msra.mxu0 0.0
  %116 = vmatprep.subr.mxu0 0.0
  %117 = vmatpush2.msra.mxu0 0.0
  %118 = vmatprep.subr.mxu0 0.0
  %119 = vmatpush2.msra.mxu0 0.0
  %120 = vmatprep.subr.mxu0 0.0
  %121 = vmatpush2.msra.mxu0 0.0
  %122 = vmatprep.subr.mxu0 0.0
  %123 = vmatpush2.msra.mxu0 0.0
  %124 = vmatprep.subr.mxu0 0.0
  %125 = vmatpush2.msra.mxu0 0.0
  %126 = vmatprep.subr.mxu0 0.0
  %127 = vmatpush2.msra.mxu0 0.0
  %128 = vmatprep.subr.mxu0 0.0
  %129 = vmatpush2.msra.mxu0 0.0
  %130 = vmatprep.subr.mxu0 0.0
  %131 = vmatpush2.msra.mxu0 0.0
  %132 = vmatprep.subr.mxu0 0.0
  %133 = vmatpush2.msra.mxu0 0.0
  %134 = vmatprep.subr.mxu0 0.0
  %135 = vmatpush2.msra.mxu0 0.0
  %136 = vmatprep.subr.mxu0 0.0
  %137 = vmatpush2.msra.mxu0 0.0
  %138 = vmatprep.subr.mxu0 0.0
  %139 = vmatpush2.msra.mxu0 0.0
  %140 = vmatprep.subr.mxu0 0.0
  %141 = vmatpush2.msra.mxu0 0.0
  %142 = vmatprep.subr.mxu0 0.0
  %143 = vmatpush2.msra.mxu0 0.0
  %144 = vmatprep.subr.mxu0 0.0
  %145 = vmatpush2.msra.mxu0 0.0
  %146 = vmatprep.mubr.f32.mxu0 0.0
  %147 = vmatmul.mubr.f32.gmra.mxu0 %v50
  %v148 = vpop.f32.mrf.mxu0
  %v149 = vadd.f32 0.0, %v148
  %v150 = vpop.f32.mrf.mxu0
  %151 = vmatprep.mubr.f32.mxu0 0.0
  %152 = vmatmul.mubr.f32.gmra.mxu0 %v51
  %v153 = vpop.f32.mrf.mxu0
  %v154 = vadd.f32 0.0, %v153
  %v155 = vpop.f32.mrf.mxu0
  %156 = vmatprep.mubr.f32.mxu0 0.0
  %157 = vmatmul.mubr.f32.gmra.mxu0 %v52
  %v158 = vpop.f32.mrf.mxu0
  %v159 = vadd.f32 0.0, %v158
  %v160 = vpop.f32.mrf.mxu0
  %161 = vmatprep.mubr.f32.mxu0 0.0
  %162 = vmatmul.mubr.f32.gmra.mxu0 %v53
  %v163 = vpop.f32.mrf.mxu0
  %v164 = vadd.f32 0.0, %v163
  %v165 = vpop.f32.mrf.mxu0
  %166 = vmatprep.mubr.f32.mxu0 0.0
  %167 = vmatmul.mubr.f32.gmra.mxu0 %v54
  %v168 = vpop.f32.mrf.mxu0
  %v169 = vadd.f32 0.0, %v168
  %v170 = vpop.f32.mrf.mxu0
  %171 = vmatprep.mubr.f32.mxu0 0.0
  %172 = vmatmul.mubr.f32.gmra.mxu0 %v55
  %v173 = vpop.f32.mrf.mxu0
  %v174 = vadd.f32 0.0, %v173
  %v175 = vpop.f32.mrf.mxu0
  %176 = vmatprep.mubr.f32.mxu0 0.0
  %177 = vmatmul.mubr.f32.gmra.mxu0 %v56
  %v178 = vpop.f32.mrf.mxu0
  %v179 = vadd.f32 0.0, %v178
  %v180 = vpop.f32.mrf.mxu0
  %181 = vmatprep.mubr.f32.mxu0 0.0
  %182 = vmatmul.mubr.f32.gmra.mxu0 %v57
  %v183 = vpop.f32.mrf.mxu0
  %v184 = vadd.f32 0.0, %v183
  %v185 = vpop.f32.mrf.mxu0
  %186 = vmatprep.mubr.f32.mxu0 0.0
  %187 = vmatmul.mubr.f32.gmra.mxu0 %v58
  %v188 = vpop.f32.mrf.mxu0
  %v189 = vadd.f32 0.0, %v188
  %v190 = vpop.f32.mrf.mxu0
  %191 = vmatprep.mubr.f32.mxu0 0.0
  %192 = vmatmul.mubr.f32.gmra.mxu0 %v59
  %v193 = vpop.f32.mrf.mxu0
  %v194 = vadd.f32 0.0, %v193
  %v195 = vpop.f32.mrf.mxu0
  %196 = vmatprep.mubr.f32.mxu0 0.0
  %197 = vmatmul.mubr.f32.gmra.mxu0 %v60
  %v198 = vpop.f32.mrf.mxu0
  %v199 = vadd.f32 0.0, %v198
  %v200 = vpop.f32.mrf.mxu0
  %201 = vmatprep.mubr.f32.mxu0 0.0
  %202 = vmatmul.mubr.f32.gmra.mxu0 %v61
  %v203 = vpop.f32.mrf.mxu0
  %v204 = vadd.f32 0.0, %v203
  %v205 = vpop.f32.mrf.mxu0
  %206 = vmatprep.mubr.f32.mxu0 0.0
  %207 = vmatmul.mubr.f32.gmra.mxu0 %v62
  %v208 = vpop.f32.mrf.mxu0
  %v209 = vadd.f32 0.0, %v208
  %v210 = vpop.f32.mrf.mxu0
  %211 = vmatprep.mubr.f32.mxu0 0.0
  %212 = vmatmul.mubr.f32.gmra.mxu0 %v63
  %v213 = vpop.f32.mrf.mxu0
  %v214 = vadd.f32 0.0, %v213
  %v215 = vpop.f32.mrf.mxu0
  %216 = vmatprep.mubr.f32.mxu0 0.0
  %217 = vmatmul.mubr.f32.gmra.mxu0 %v64
  %v218 = vpop.f32.mrf.mxu0
  %v219 = vadd.f32 0.0, %v218
  %v220 = vpop.f32.mrf.mxu0
  %221 = vmatprep.mubr.f32.mxu0 0.0
  %222 = vmatmul.mubr.f32.gmra.mxu0 %v65
  %v223 = vpop.f32.mrf.mxu0
  %v224 = vadd.f32 0.0, %v223
  %v225 = vpop.f32.mrf.mxu0
  %226 = vdwg.mxu0
  %v227 = vadd.f32 %v34, %v149
  %v228 = vadd.f32 %v35, %v154
  %v229 = vadd.f32 %v36, %v159
  %v230 = vadd.f32 %v37, %v164
  %v231 = vadd.f32 %v38, %v169
  %v232 = vadd.f32 %v39, %v174
  %v233 = vadd.f32 %v40, %v179
  %v234 = vadd.f32 %v41, %v184
  %v235 = vadd.f32 %v42, %v189
  %v236 = vadd.f32 %v43, %v194
  %v237 = vadd.f32 %v44, %v199
  %v238 = vadd.f32 %v45, %v204
  %v239 = vadd.f32 %v46, %v209
  %v240 = vadd.f32 %v47, %v214
  %v241 = vadd.f32 %v48, %v219
  %v242 = vadd.f32 %v49, %v224
  %243 = vst [vmem:[#allocation2] sm:$0xff] %v227
  %244 = vst [vmem:[#allocation2 + $0x8] sm:$0xff] %v228
  %245 = vst [vmem:[#allocation2 + $0x10] sm:$0xff] %v229
  %246 = vst [vmem:[#allocation2 + $0x18] sm:$0xff] %v230
  %247 = vst [vmem:[#allocation2 + $0x20] sm:$0xff] %v231
  %248 = vst [vmem:[#allocation2 + $0x28] sm:$0xff] %v232
  %249 = vst [vmem:[#allocation2 + $0x30] sm:$0xff] %v233
  %250 = vst [vmem:[#allocation2 + $0x38] sm:$0xff] %v234
  %251 = vst [vmem:[#allocation2 + $0x40] sm:$0xff] %v235
  %252 = vst [vmem:[#allocation2 + $0x48] sm:$0xff] %v236
  %253 = vst [vmem:[#allocation2 + $0x50] sm:$0xff] %v237
  %254 = vst [vmem:[#allocation2 + $0x58] sm:$0xff] %v238
  %255 = vst [vmem:[#allocation2 + $0x60] sm:$0xff] %v239
  %256 = vst [vmem:[#allocation2 + $0x68] sm:$0xff] %v240
  %257 = vst [vmem:[#allocation2 + $0x70] sm:$0xff] %v241
  %258 = vst [vmem:[#allocation2 + $0x78] sm:$0xff] %v242
  // Predicated region
  $region18: #{vgg_base_forward.11} parent=0 // pred_check
    %p259 = pneg %p14
  $region19: #{vgg_base_forward.11} parent=0 // pred_check_branch
    %261 = sbr.rel (%p259) target = $region21
  $region20: #{vgg_base_forward.11} parent=0 // pred_region
    %v262 = vld [vmem:[#allocation2] sm:$0xff]
    %v263 = vld [vmem:[#allocation2 + $0x8] sm:$0xff]
    %v264 = vld [vmem:[#allocation2 + $0x10] sm:$0xff]
    %v265 = vld [vmem:[#allocation2 + $0x18] sm:$0xff]
    %v266 = vld [vmem:[#allocation2 + $0x20] sm:$0xff]
    %v267 = vld [vmem:[#allocation2 + $0x28] sm:$0xff]
    %v268 = vld [vmem:[#allocation2 + $0x30] sm:$0xff]
    %v269 = vld [vmem:[#allocation2 + $0x38] sm:$0xff]
    %v270 = vld [vmem:[#allocation2 + $0x40] sm:$0xff]
    %v271 = vld [vmem:[#allocation2 + $0x48] sm:$0xff]
    %v272 = vld [vmem:[#allocation2 + $0x50] sm:$0xff]
    %v273 = vld [vmem:[#allocation2 + $0x58] sm:$0xff]
    %v274 = vld [vmem:[#allocation2 + $0x60] sm:$0xff]
    %v275 = vld [vmem:[#allocation2 + $0x68] sm:$0xff]
    %v276 = vld [vmem:[#allocation2 + $0x70] sm:$0xff]
    %v277 = vld [vmem:[#allocation2 + $0x78] sm:$0xff]
    %v278 = vld [vmem:[%s2] sm:$0x1]
    %v280 = vlaneseq
    %v281 = vshrl.u32 %v280, 7
    %v282 = vsub.s32 0, %v281
    %v283 = vrot.slane %v278, %v282
    %v285 = vadd.f32 %v262, %v283
    %v286 = vadd.f32 %v263, %v283
    %v287 = vadd.f32 %v264, %v283
    %v288 = vadd.f32 %v265, %v283
    %v289 = vadd.f32 %v266, %v283
    %v290 = vadd.f32 %v267, %v283
    %v291 = vadd.f32 %v268, %v283
    %v292 = vadd.f32 %v269, %v283
    %v293 = vadd.f32 %v270, %v283
    %v294 = vadd.f32 %v271, %v283
    %v295 = vadd.f32 %v272, %v283
    %v296 = vadd.f32 %v273, %v283
    %v297 = vadd.f32 %v274, %v283
    %v298 = vadd.f32 %v275, %v283
    %v299 = vadd.f32 %v276, %v283
    %v300 = vadd.f32 %v277, %v283
    %v301 = vmax.f32 %v285, 0.0
    %v302 = vmax.f32 %v286, 0.0
    %v303 = vmax.f32 %v287, 0.0
    %v304 = vmax.f32 %v288, 0.0
    %v305 = vmax.f32 %v289, 0.0
    %v306 = vmax.f32 %v290, 0.0
    %v307 = vmax.f32 %v291, 0.0
    %v308 = vmax.f32 %v292, 0.0
    %v309 = vmax.f32 %v293, 0.0
    %v310 = vmax.f32 %v294, 0.0
    %v311 = vmax.f32 %v295, 0.0
    %v312 = vmax.f32 %v296, 0.0
    %v313 = vmax.f32 %v297, 0.0
    %v314 = vmax.f32 %v298, 0.0
    %v315 = vmax.f32 %v299, 0.0
    %v316 = vmax.f32 %v300, 0.0
    %317 = vst [vmem:[%s3] sm:$0xff] %v301
    %318 = vst [vmem:[%s3 + $0x8] sm:$0xff] %v302
    %319 = vst [vmem:[%s3 + $0x10] sm:$0xff] %v303
    %320 = vst [vmem:[%s3 + $0x18] sm:$0xff] %v304
    %321 = vst [vmem:[%s3 + $0x20] sm:$0xff] %v305
    %322 = vst [vmem:[%s3 + $0x28] sm:$0xff] %v306
    %323 = vst [vmem:[%s3 + $0x30] sm:$0xff] %v307
    %324 = vst [vmem:[%s3 + $0x38] sm:$0xff] %v308
    %325 = vst [vmem:[%s3 + $0x40] sm:$0xff] %v309
    %326 = vst [vmem:[%s3 + $0x48] sm:$0xff] %v310
    %327 = vst [vmem:[%s3 + $0x50] sm:$0xff] %v311
    %328 = vst [vmem:[%s3 + $0x58] sm:$0xff] %v312
    %329 = vst [vmem:[%s3 + $0x60] sm:$0xff] %v313
    %330 = vst [vmem:[%s3 + $0x68] sm:$0xff] %v314
    %331 = vst [vmem:[%s3 + $0x70] sm:$0xff] %v315
    %332 = vst [vmem:[%s3 + $0x78] sm:$0xff] %v316
  $region21: #{vgg_base_forward.11} parent=0 // pred_fallthru
    _
  // Predicated region
  $region22: #{vgg_base_forward.11} parent=0 // pred_check
    _
  $region23: #{vgg_base_forward.11} parent=0 // pred_check_branch
    %334 = sbr.rel (0) target = $region25
  $region24: #{vgg_base_forward.11} parent=0 // pred_region
    _
  $region25: #{vgg_base_forward.11} parent=0 // pred_fallthru
    _
  // Predicated region
  $region26: #{vgg_base_forward.11} parent=0 // pred_check
    _
  $region27: #{vgg_base_forward.11} parent=0 // pred_check_branch
    %336 = sbr.rel (0) target = $region29
  $region28: #{vgg_base_forward.11} parent=0 // pred_region
    _
  $region29: #{vgg_base_forward.11} parent=0 // pred_fallthru
    _

// kernel: vgg_base_forward.12
$region0: #{vgg_base_forward.12}
  #allocation0 [shape = 'u32[]', space=smem, size = 0x4, offset = 0x4, fixed_abs, tag = 'smem constant byte address 0x4 - core index']
  #allocation1 [shape = 'u32[144,128]{1,0:T(1,128)}', space=vmem, size = 0x12000, scoped, tag = 'internal scratch']
  %s0 = inlined_call_operand.vmem [shape: f32[2,4,4,16], index: 0, kind: input, shape index: {}]
  %s1 = inlined_call_operand.vmem [shape: f32[2,4,4,16], index: 1, kind: input, shape index: {}]
  %s2 = inlined_call_operand.vmem [shape: f32[2,4,4,16], index: 2, kind: input, shape index: {}]
  %s3 = inlined_call_operand.vmem [shape: f32[2,4,4,16], index: 3, kind: input, shape index: {}]
  %s4 = inlined_call_operand.vmem [shape: f32[2,4,4,16], index: 4, kind: output, shape index: {}]
  %s5 = sld [smem:[#allocation0]]
  $region49: #{vgg_base_forward.12} parent=0
    _
  %s7 = ssub.s32 1, %s5
  %s8 = scalar_select 0, %s7, %s5
  loop: start=0, step=1, limit=4
  $region2: #{vgg_base_forward.12} parent=0 // loop_pre_header
    _
  $region3: #{vgg_base_forward.12} parent=0 // loop_header
    %s10 = sphi 0, %s14
    %p11 = scmp.ge.s32.totalorder %s10, 4
    %s20 = sphi 0, %s22
    %s23 = sphi 0, %s20
    %s24 = sphi 0, %s23
    %s40 = sphi 0, %s24
    %s46 = sphi 0, %s48
    %s49 = sphi 0, %s46
    %s50 = sphi 0, %s49
    %s66 = sphi 0, %s50
    %s72 = sphi 0, %s74
    %s75 = sphi 0, %s72
    %s76 = sphi 0, %s75
    %s92 = sphi 0, %s76
    %s98 = sphi 0, %s100
    %s101 = sphi 0, %s98
    %s102 = sphi 0, %s101
    %s118 = sphi 0, %s102
    %s124 = sphi 0, %s126
    %s127 = sphi 0, %s124
    %s128 = sphi 0, %s127
    %s144 = sphi 0, %s128
  $region4: #{vgg_base_forward.12} parent=0 // loop_header_branch
    %13 = sbr.rel (%p11) target = $region8
  $region5: #{vgg_base_forward.12} parent=0 // loop_body
    %s15 = ssub.s32 %s10, 1
    %s16 = ssub.s32 %s10, 2
    %s17 = sadd.s32 %s10, 1
    %s18 = ssub.s32 %s10, %s17
    %p19 = scmp.eq.s32.totalorder %s18, 0
    %s21 = sadd.s32 %s20, 1
    %s22 = scalar_select %p19, %s20, %s21
    %p25 = pneg %p19
    %p26 = scmp.eq.s32.totalorder %s10, 1
    %p27 = por %p25, %p26
    %p28 = scmp.ne.s32.totalorder %s20, %s23
    %p29 = scmp.eq.s32.totalorder %s10, 0
    %p30 = por %p28, %p29
    %p31 = scmp.ne.s32.totalorder %s20, %s23
    %p32 = scmp.eq.s32.totalorder %s15, 1
    %p33 = por %p31, %p32
    %p34 = scmp.ne.s32.totalorder %s23, %s24
    %p35 = scmp.eq.s32.totalorder %s15, 0
    %p36 = por %p34, %p35
    %p37 = scmp.ne.s32.totalorder %s23, %s24
    %p38 = scmp.eq.s32.totalorder %s16, 1
    %p39 = por %p37, %p38
    %p41 = scmp.ne.s32.totalorder %s24, %s40
    %p42 = scmp.eq.s32.totalorder %s16, 0
    %p43 = por %p41, %p42
    %s44 = ssub.s32 %s10, %s17
    %p45 = scmp.eq.s32.totalorder %s44, 0
    %s47 = sadd.s32 %s46, 1
    %s48 = scalar_select %p45, %s46, %s47
    %p51 = pneg %p45
    %p52 = scmp.eq.s32.totalorder %s10, 1
    %p53 = por %p51, %p52
    %p54 = scmp.ne.s32.totalorder %s46, %s49
    %p55 = scmp.eq.s32.totalorder %s10, 0
    %p56 = por %p54, %p55
    %p57 = scmp.ne.s32.totalorder %s46, %s49
    %p58 = scmp.eq.s32.totalorder %s15, 1
    %p59 = por %p57, %p58
    %p60 = scmp.ne.s32.totalorder %s49, %s50
    %p61 = scmp.eq.s32.totalorder %s15, 0
    %p62 = por %p60, %p61
    %p63 = scmp.ne.s32.totalorder %s49, %s50
    %p64 = scmp.eq.s32.totalorder %s16, 1
    %p65 = por %p63, %p64
    %p67 = scmp.ne.s32.totalorder %s50, %s66
    %p68 = scmp.eq.s32.totalorder %s16, 0
    %p69 = por %p67, %p68
    %s70 = ssub.s32 %s10, %s17
    %p71 = scmp.eq.s32.totalorder %s70, 0
    %s73 = sadd.s32 %s72, 1
    %s74 = scalar_select %p71, %s72, %s73
    %p77 = pneg %p71
    %p78 = scmp.eq.s32.totalorder %s10, 1
    %p79 = por %p77, %p78
    %p80 = scmp.ne.s32.totalorder %s72, %s75
    %p81 = scmp.eq.s32.totalorder %s10, 0
    %p82 = por %p80, %p81
    %p83 = scmp.ne.s32.totalorder %s72, %s75
    %p84 = scmp.eq.s32.totalorder %s15, 1
    %p85 = por %p83, %p84
    %p86 = scmp.ne.s32.totalorder %s75, %s76
    %p87 = scmp.eq.s32.totalorder %s15, 0
    %p88 = por %p86, %p87
    %p89 = scmp.ne.s32.totalorder %s75, %s76
    %p90 = scmp.eq.s32.totalorder %s16, 1
    %p91 = por %p89, %p90
    %p93 = scmp.ne.s32.totalorder %s76, %s92
    %p94 = scmp.eq.s32.totalorder %s16, 0
    %p95 = por %p93, %p94
    %s96 = ssub.s32 %s10, %s17
    %p97 = scmp.eq.s32.totalorder %s96, 0
    %s99 = sadd.s32 %s98, 1
    %s100 = scalar_select %p97, %s98, %s99
    %p103 = pneg %p97
    %p104 = scmp.eq.s32.totalorder %s10, 1
    %p105 = por %p103, %p104
    %p106 = scmp.ne.s32.totalorder %s98, %s101
    %p107 = scmp.eq.s32.totalorder %s10, 0
    %p108 = por %p106, %p107
    %p109 = scmp.ne.s32.totalorder %s98, %s101
    %p110 = scmp.eq.s32.totalorder %s15, 1
    %p111 = por %p109, %p110
    %p112 = scmp.ne.s32.totalorder %s101, %s102
    %p113 = scmp.eq.s32.totalorder %s15, 0
    %p114 = por %p112, %p113
    %p115 = scmp.ne.s32.totalorder %s101, %s102
    %p116 = scmp.eq.s32.totalorder %s16, 1
    %p117 = por %p115, %p116
    %p119 = scmp.ne.s32.totalorder %s102, %s118
    %p120 = scmp.eq.s32.totalorder %s16, 0
    %p121 = por %p119, %p120
    %s122 = ssub.s32 %s10, %s17
    %p123 = scmp.eq.s32.totalorder %s122, 0
    %s125 = sadd.s32 %s124, 1
    %s126 = scalar_select %p123, %s124, %s125
    %p129 = pneg %p123
    %p130 = scmp.eq.s32.totalorder %s10, 1
    %p131 = por %p129, %p130
    %p132 = scmp.ne.s32.totalorder %s124, %s127
    %p133 = scmp.eq.s32.totalorder %s10, 0
    %p134 = por %p132, %p133
    %p135 = scmp.ne.s32.totalorder %s124, %s127
    %p136 = scmp.eq.s32.totalorder %s15, 1
    %p137 = por %p135, %p136
    %p138 = scmp.ne.s32.totalorder %s127, %s128
    %p139 = scmp.eq.s32.totalorder %s15, 0
    %p140 = por %p138, %p139
    %p141 = scmp.ne.s32.totalorder %s127, %s128
    %p142 = scmp.eq.s32.totalorder %s16, 1
    %p143 = por %p141, %p142
    %p145 = scmp.ne.s32.totalorder %s128, %s144
    %p146 = scmp.eq.s32.totalorder %s16, 0
    %p147 = por %p145, %p146
    %p148 = scmp.le.s32.totalorder 1, %s10
    %p149 = scmp.lt.s32.totalorder %s10, 3
    %p150 = pnand %p148, %p149
    %p151 = pneg %p150
    // Predicated region
    $region9: #{vgg_base_forward.12} parent=5 // pred_check
      _
    $region10: #{vgg_base_forward.12} parent=5 // pred_check_branch
      %153 = sbr.rel (%p150) target = $region12
    $region11: #{vgg_base_forward.12} parent=5 // pred_region
      %s154 = ssub.s32 %s10, 1
    $region12: #{vgg_base_forward.12} parent=5 // pred_fallthru
      _
    %p155 = scmp.lt.s32.totalorder %s10, 2
    // Predicated region
    $region13: #{vgg_base_forward.12} parent=5 // pred_check
      %p156 = pneg %p155
    $region14: #{vgg_base_forward.12} parent=5 // pred_check_branch
      %158 = sbr.rel (%p156) target = $region16
    $region15: #{vgg_base_forward.12} parent=5 // pred_region
      // Predicated region
      $region17: #{vgg_base_forward.12} parent=15 // pred_check
        %p159 = pneg %p30
      $region18: #{vgg_base_forward.12} parent=15 // pred_check_branch
        %161 = sbr.rel (%p159) target = $region20
      $region19: #{vgg_base_forward.12} parent=15 // pred_region
        %p162 = scmp.lt.s32.totalorder %s10, 1
        %s163 = scalar_select %p162, %s10, 1
        %s164 = smul.addr %s163, 4
        %s165 = smul.addr %s164, 4
        %s166 = scalar_lea.vmem %s0, %s165
      $region20: #{vgg_base_forward.12} parent=15 // pred_fallthru
        _
      // Predicated region
      $region21: #{vgg_base_forward.12} parent=15 // pred_check
        %p167 = pneg %p56
      $region22: #{vgg_base_forward.12} parent=15 // pred_check_branch
        %169 = sbr.rel (%p167) target = $region24
      $region23: #{vgg_base_forward.12} parent=15 // pred_region
        %p170 = scmp.lt.s32.totalorder %s10, 1
        %s171 = scalar_select %p170, %s10, 1
        %s172 = smul.addr %s171, 4
        %s173 = smul.addr %s172, 4
        %s174 = scalar_lea.vmem %s1, %s173
      $region24: #{vgg_base_forward.12} parent=15 // pred_fallthru
        _
      // Predicated region
      $region25: #{vgg_base_forward.12} parent=15 // pred_check
        %p175 = pneg %p82
      $region26: #{vgg_base_forward.12} parent=15 // pred_check_branch
        %177 = sbr.rel (%p175) target = $region28
      $region27: #{vgg_base_forward.12} parent=15 // pred_region
        %p178 = scmp.lt.s32.totalorder %s10, 1
        %s179 = scalar_select %p178, %s10, 1
        %s180 = smul.addr %s179, 4
        %s181 = smul.addr %s180, 4
        %s182 = scalar_lea.vmem %s2, %s181
      $region28: #{vgg_base_forward.12} parent=15 // pred_fallthru
        _
      // Predicated region
      $region29: #{vgg_base_forward.12} parent=15 // pred_check
        %p183 = pneg %p108
      $region30: #{vgg_base_forward.12} parent=15 // pred_check_branch
        %185 = sbr.rel (%p183) target = $region32
      $region31: #{vgg_base_forward.12} parent=15 // pred_region
        %p186 = scmp.lt.s32.totalorder %s10, 1
        %s187 = scalar_select %p186, %s10, 1
        %s188 = smul.addr %s187, 4
        %s189 = smul.addr %s188, 4
        %s190 = scalar_lea.vmem %s3, %s189
      $region32: #{vgg_base_forward.12} parent=15 // pred_fallthru
        _
    $region16: #{vgg_base_forward.12} parent=5 // pred_fallthru
      _
    %p191 = scmp.le.s32.totalorder 1, %s10
    %p192 = scmp.lt.s32.totalorder %s10, 3
    %p193 = pnand %p191, %p192
    %p194 = pneg %p193
    // Predicated region
    $region33: #{vgg_base_forward.12} parent=5 // pred_check
      _
    $region34: #{vgg_base_forward.12} parent=5 // pred_check_branch
      %196 = sbr.rel (%p193) target = $region36
    $region35: #{vgg_base_forward.12} parent=5 // pred_region
      %s197 = ssub.s32 %s10, 1
      %p198 = scmp.lt.s32.totalorder %s15, 1
      %s199 = scalar_select %p198, %s15, 1
      %s200 = smul.addr %s199, 4
      %s201 = smul.addr %s200, 4
      %s202 = scalar_lea.vmem %s0, %s201
      %p203 = pneg %p36
      %p204 = pneg %p33
      %p205 = scmp.lt.s32.totalorder %s15, 1
      %s206 = scalar_select %p205, %s15, 1
      %s207 = smul.addr %s206, 4
      %s208 = smul.addr %s207, 4
      %s209 = scalar_lea.vmem %s1, %s208
      %p210 = pneg %p62
      %p211 = pneg %p59
      %p212 = scmp.lt.s32.totalorder %s15, 1
      %s213 = scalar_select %p212, %s15, 1
      %s214 = smul.addr %s213, 4
      %s215 = smul.addr %s214, 4
      %s216 = scalar_lea.vmem %s2, %s215
      %p217 = pneg %p88
      %p218 = pneg %p85
      %p219 = scmp.lt.s32.totalorder %s15, 1
      %s220 = scalar_select %p219, %s15, 1
      %s221 = smul.addr %s220, 4
      %s222 = smul.addr %s221, 4
      %s223 = scalar_lea.vmem %s3, %s222
      %p224 = pneg %p114
      %p225 = pneg %p111
      %p226 = pneg %p140
      %p227 = pneg %p137
      %p228 = scmp.lt.s32.totalorder %s15, 1
      %s229 = scalar_select %p228, %s15, 1
      %s230 = smul.addr %s229, 4
      %s231 = smul.addr %s230, 4
      %s232 = scalar_lea.vmem %s4, %s231
      %p233 = scmp.lt.s32.totalorder %s15, 1
      %s234 = scalar_select %p233, %s15, 1
      %s235 = smul.addr %s234, 4
      %s236 = smul.addr %s235, 4
      %s237 = scalar_lea.vmem %s0, %s236
      %p238 = scmp.lt.s32.totalorder %s15, 1
      %s239 = scalar_select %p238, %s15, 1
      %s240 = smul.addr %s239, 4
      %s241 = smul.addr %s240, 4
      %s242 = scalar_lea.vmem %s1, %s241
      %p243 = scmp.lt.s32.totalorder %s15, 1
      %s244 = scalar_select %p243, %s15, 1
      %s245 = smul.addr %s244, 4
      %s246 = smul.addr %s245, 4
      %s247 = scalar_lea.vmem %s2, %s246
      %p248 = scmp.lt.s32.totalorder %s15, 1
      %s249 = scalar_select %p248, %s15, 1
      %s250 = smul.addr %s249, 4
      %s251 = smul.addr %s250, 4
      %s252 = scalar_lea.vmem %s3, %s251
      %p253 = scmp.lt.s32.totalorder %s15, 1
      %s254 = scalar_select %p253, %s15, 1
      %s255 = smul.addr %s254, 4
      %s256 = smul.addr %s255, 4
      %s257 = scalar_lea.vmem %s4, %s256
      %v258 = vld [vmem:[%s237] sm:$0xf]
      %v259 = vld [vmem:[%s237 + $0x4] sm:$0xf]
      %v260 = vld [vmem:[%s237 + $0x8] sm:$0xf]
      %v261 = vld [vmem:[%s237 + $0xc] sm:$0xf]
      %v262 = vld [vmem:[%s242] sm:$0xf]
      %v263 = vld [vmem:[%s242 + $0x4] sm:$0xf]
      %v264 = vld [vmem:[%s242 + $0x8] sm:$0xf]
      %v265 = vld [vmem:[%s242 + $0xc] sm:$0xf]
      %v266 = vmax.f32 %v258, %v262
      %v267 = vmax.f32 %v259, %v263
      %v268 = vmax.f32 %v260, %v264
      %v269 = vmax.f32 %v261, %v265
      %v270 = vld [vmem:[%s247] sm:$0xf]
      %v271 = vld [vmem:[%s247 + $0x4] sm:$0xf]
      %v272 = vld [vmem:[%s247 + $0x8] sm:$0xf]
      %v273 = vld [vmem:[%s247 + $0xc] sm:$0xf]
      %v274 = vld [vmem:[%s252] sm:$0xf]
      %v275 = vld [vmem:[%s252 + $0x4] sm:$0xf]
      %v276 = vld [vmem:[%s252 + $0x8] sm:$0xf]
      %v277 = vld [vmem:[%s252 + $0xc] sm:$0xf]
      %v278 = vmax.f32 %v270, %v274
      %v279 = vmax.f32 %v271, %v275
      %v280 = vmax.f32 %v272, %v276
      %v281 = vmax.f32 %v273, %v277
      %v282 = vmax.f32 %v266, %v278
      %v283 = vmax.f32 %v267, %v279
      %v284 = vmax.f32 %v268, %v280
      %v285 = vmax.f32 %v269, %v281
      %vm286 = vcmask 125952
      %287 = vst.msk [vmem:[%s257] sm:$0xf] %vm286, %v282
      %288 = vst.msk [vmem:[%s257 + $0x4] sm:$0xf] %vm286, %v283
      %289 = vst.msk [vmem:[%s257 + $0x8] sm:$0xf] %vm286, %v284
      %290 = vst.msk [vmem:[%s257 + $0xc] sm:$0xf] %vm286, %v285
      %p291 = scmp.lt.s32.totalorder %s15, 1
      %s292 = scalar_select %p291, %s15, 1
      %s293 = smul.addr %s292, 4
      %s294 = smul.addr %s293, 4
      %s295 = scalar_lea.vmem %s4, %s294
      // Predicated region
      $region37: #{vgg_base_forward.12} parent=35 // pred_check
        %p296 = pneg %p137
      $region38: #{vgg_base_forward.12} parent=35 // pred_check_branch
        %298 = sbr.rel (%p296) target = $region40
      $region39: #{vgg_base_forward.12} parent=35 // pred_region
        _
      $region40: #{vgg_base_forward.12} parent=35 // pred_fallthru
        _
    $region36: #{vgg_base_forward.12} parent=5 // pred_fallthru
      _
    %p299 = scmp.le.s32.totalorder 2, %s10
    // Predicated region
    $region41: #{vgg_base_forward.12} parent=5 // pred_check
      %p300 = pneg %p299
    $region42: #{vgg_base_forward.12} parent=5 // pred_check_branch
      %302 = sbr.rel (%p300) target = $region44
    $region43: #{vgg_base_forward.12} parent=5 // pred_region
      %s303 = ssub.s32 %s10, 2
      // Predicated region
      $region45: #{vgg_base_forward.12} parent=43 // pred_check
        %p304 = pneg %p143
      $region46: #{vgg_base_forward.12} parent=43 // pred_check_branch
        %306 = sbr.rel (%p304) target = $region48
      $region47: #{vgg_base_forward.12} parent=43 // pred_region
        %p307 = scmp.lt.s32.totalorder %s16, 1
        %s308 = scalar_select %p307, %s16, 1
        %s309 = smul.addr %s308, 4
        %s310 = smul.addr %s309, 4
        %s311 = scalar_lea.vmem %s4, %s310
      $region48: #{vgg_base_forward.12} parent=43 // pred_fallthru
        _
    $region44: #{vgg_base_forward.12} parent=5 // pred_fallthru
      _
  $region6: #{vgg_base_forward.12} parent=0 // loop_footer
    %s14 = sadd.s32 1, %s10
  $region7: #{vgg_base_forward.12} parent=0 // loop_footer_branch
    %9 = sbr.rel target = $region3
  $region8: #{vgg_base_forward.12} parent=0 // loop_exit
    _

// kernel: vgg_base_forward.13
$region0: #{vgg_base_forward.13}
  #allocation0 [shape = 'u32[]', space=smem, size = 0x4, offset = 0x4, fixed_abs, tag = 'smem constant byte address 0x4 - core index']
  #allocation1 [shape = 'u32[144,128]{1,0:T(1,128)}', space=vmem, size = 0x12000, scoped, tag = 'internal scratch']
  #allocation2 [shape = 'f32[32,128]{1,0:T(8,128)}', space=vmem, size = 0x4000, scoped, tag = 'scratch operand']
  %s0 = inlined_call_operand.vmem [shape: f32[32,256], index: 0, kind: input, shape index: {}]
  %s1 = inlined_call_operand.vmem [shape: f32[256,128], index: 1, kind: input, shape index: {}]
  %s2 = inlined_call_operand.vmem [shape: f32[1,128], index: 2, kind: input, shape index: {}]
  %s3 = inlined_call_operand.vmem [shape: f32[32,128], index: 3, kind: output, shape index: {}]
  %s4 = sld [smem:[#allocation0]]
  $region30: #{vgg_base_forward.13} parent=0
    _
  %s6 = ssub.s32 1, %s4
  %s7 = scalar_select 0, %s6, %s4
  // Predicated region
  $region2: #{vgg_base_forward.13} parent=0 // pred_check
    _
  $region3: #{vgg_base_forward.13} parent=0 // pred_check_branch
    %9 = sbr.rel (0) target = $region5
  $region4: #{vgg_base_forward.13} parent=0 // pred_region
    _
  $region5: #{vgg_base_forward.13} parent=0 // pred_fallthru
    _
  // Predicated region
  $region6: #{vgg_base_forward.13} parent=0 // pred_check
    _
  $region7: #{vgg_base_forward.13} parent=0 // pred_check_branch
    %11 = sbr.rel (0) target = $region9
  $region8: #{vgg_base_forward.13} parent=0 // pred_region
    _
  $region9: #{vgg_base_forward.13} parent=0 // pred_fallthru
    _
  // Predicated region
  $region10: #{vgg_base_forward.13} parent=0 // pred_check
    _
  $region11: #{vgg_base_forward.13} parent=0 // pred_check_branch
    %13 = sbr.rel (0) target = $region13
  $region12: #{vgg_base_forward.13} parent=0 // pred_region
    _
  $region13: #{vgg_base_forward.13} parent=0 // pred_fallthru
    _
  %p14 = scmp.eq.s32.totalorder 0, 0
  // Predicated region
  $region14: #{vgg_base_forward.13} parent=0 // pred_check
    %p15 = pneg %p14
  $region15: #{vgg_base_forward.13} parent=0 // pred_check_branch
    %17 = sbr.rel (%p15) target = $region17
  $region16: #{vgg_base_forward.13} parent=0 // pred_region
    %18 = vst [vmem:[#allocation2] sm:$0xff] 0.0
    %19 = vst [vmem:[#allocation2 + $0x8] sm:$0xff] 0.0
    %20 = vst [vmem:[#allocation2 + $0x10] sm:$0xff] 0.0
    %21 = vst [vmem:[#allocation2 + $0x18] sm:$0xff] 0.0
  $region17: #{vgg_base_forward.13} parent=0 // pred_fallthru
    _
  %v22 = vld [vmem:[#allocation2] sm:$0xff]
  %v23 = vld [vmem:[#allocation2 + $0x8] sm:$0xff]
  %v24 = vld [vmem:[#allocation2 + $0x10] sm:$0xff]
  %v25 = vld [vmem:[#allocation2 + $0x18] sm:$0xff]
  %v26 = vld [vmem:[%s0] sm:$0xff]
  %v27 = vld [vmem:[%s0 + $0x8] sm:$0xff]
  %v28 = vld [vmem:[%s0 + $0x10] sm:$0xff]
  %v29 = vld [vmem:[%s0 + $0x18] sm:$0xff]
  %v30 = vld [vmem:[%s0 + $0x20] sm:$0xff]
  %v31 = vld [vmem:[%s0 + $0x28] sm:$0xff]
  %v32 = vld [vmem:[%s0 + $0x30] sm:$0xff]
  %v33 = vld [vmem:[%s0 + $0x38] sm:$0xff]
  %v34 = vld [vmem:[%s1] sm:$0xff]
  %v35 = vld [vmem:[%s1 + $0x8] sm:$0xff]
  %v36 = vld [vmem:[%s1 + $0x10] sm:$0xff]
  %v37 = vld [vmem:[%s1 + $0x18] sm:$0xff]
  %v38 = vld [vmem:[%s1 + $0x20] sm:$0xff]
  %v39 = vld [vmem:[%s1 + $0x28] sm:$0xff]
  %v40 = vld [vmem:[%s1 + $0x30] sm:$0xff]
  %v41 = vld [vmem:[%s1 + $0x38] sm:$0xff]
  %v42 = vld [vmem:[%s1 + $0x40] sm:$0xff]
  %v43 = vld [vmem:[%s1 + $0x48] sm:$0xff]
  %v44 = vld [vmem:[%s1 + $0x50] sm:$0xff]
  %v45 = vld [vmem:[%s1 + $0x58] sm:$0xff]
  %v46 = vld [vmem:[%s1 + $0x60] sm:$0xff]
  %v47 = vld [vmem:[%s1 + $0x68] sm:$0xff]
  %v48 = vld [vmem:[%s1 + $0x70] sm:$0xff]
  %v49 = vld [vmem:[%s1 + $0x78] sm:$0xff]
  %v50 = vld [vmem:[%s1 + $0x80] sm:$0xff]
  %v51 = vld [vmem:[%s1 + $0x88] sm:$0xff]
  %v52 = vld [vmem:[%s1 + $0x90] sm:$0xff]
  %v53 = vld [vmem:[%s1 + $0x98] sm:$0xff]
  %v54 = vld [vmem:[%s1 + $0xa0] sm:$0xff]
  %v55 = vld [vmem:[%s1 + $0xa8] sm:$0xff]
  %v56 = vld [vmem:[%s1 + $0xb0] sm:$0xff]
  %v57 = vld [vmem:[%s1 + $0xb8] sm:$0xff]
  %v58 = vld [vmem:[%s1 + $0xc0] sm:$0xff]
  %v59 = vld [vmem:[%s1 + $0xc8] sm:$0xff]
  %v60 = vld [vmem:[%s1 + $0xd0] sm:$0xff]
  %v61 = vld [vmem:[%s1 + $0xd8] sm:$0xff]
  %v62 = vld [vmem:[%s1 + $0xe0] sm:$0xff]
  %v63 = vld [vmem:[%s1 + $0xe8] sm:$0xff]
  %v64 = vld [vmem:[%s1 + $0xf0] sm:$0xff]
  %v65 = vld [vmem:[%s1 + $0xf8] sm:$0xff]
  %66 = vmatprep.subr.mxu0 0.0
  %67 = vmatpush1.msra.mxu0 %v49
  %68 = vmatprep.subr.mxu0 0.0
  %69 = vmatpush1.msra.mxu0 %v48
  %70 = vmatprep.subr.mxu0 0.0
  %71 = vmatpush1.msra.mxu0 %v47
  %72 = vmatprep.subr.mxu0 0.0
  %73 = vmatpush1.msra.mxu0 %v46
  %74 = vmatprep.subr.mxu0 0.0
  %75 = vmatpush1.msra.mxu0 %v45
  %76 = vmatprep.subr.mxu0 0.0
  %77 = vmatpush1.msra.mxu0 %v44
  %78 = vmatprep.subr.mxu0 0.0
  %79 = vmatpush1.msra.mxu0 %v43
  %80 = vmatprep.subr.mxu0 0.0
  %81 = vmatpush1.msra.mxu0 %v42
  %82 = vmatprep.subr.mxu0 0.0
  %83 = vmatpush1.msra.mxu0 %v41
  %84 = vmatprep.subr.mxu0 0.0
  %85 = vmatpush1.msra.mxu0 %v40
  %86 = vmatprep.subr.mxu0 0.0
  %87 = vmatpush1.msra.mxu0 %v39
  %88 = vmatprep.subr.mxu0 0.0
  %89 = vmatpush1.msra.mxu0 %v38
  %90 = vmatprep.subr.mxu0 0.0
  %91 = vmatpush1.msra.mxu0 %v37
  %92 = vmatprep.subr.mxu0 0.0
  %93 = vmatpush1.msra.mxu0 %v36
  %94 = vmatprep.subr.mxu0 0.0
  %95 = vmatpush1.msra.mxu0 %v35
  %96 = vmatprep.subr.mxu0 0.0
  %97 = vmatpush1.msra.mxu0 %v34
  %98 = vmatprep.subr.mxu0 0.0
  %99 = vmatpush2.msra.mxu0 %v65
  %100 = vmatprep.subr.mxu0 0.0
  %101 = vmatpush2.msra.mxu0 %v64
  %102 = vmatprep.subr.mxu0 0.0
  %103 = vmatpush2.msra.mxu0 %v63
  %104 = vmatprep.subr.mxu0 0.0
  %105 = vmatpush2.msra.mxu0 %v62
  %106 = vmatprep.subr.mxu0 0.0
  %107 = vmatpush2.msra.mxu0 %v61
  %108 = vmatprep.subr.mxu0 0.0
  %109 = vmatpush2.msra.mxu0 %v60
  %110 = vmatprep.subr.mxu0 0.0
  %111 = vmatpush2.msra.mxu0 %v59
  %112 = vmatprep.subr.mxu0 0.0
  %113 = vmatpush2.msra.mxu0 %v58
  %114 = vmatprep.subr.mxu0 0.0
  %115 = vmatpush2.msra.mxu0 %v57
  %116 = vmatprep.subr.mxu0 0.0
  %117 = vmatpush2.msra.mxu0 %v56
  %118 = vmatprep.subr.mxu0 0.0
  %119 = vmatpush2.msra.mxu0 %v55
  %120 = vmatprep.subr.mxu0 0.0
  %121 = vmatpush2.msra.mxu0 %v54
  %122 = vmatprep.subr.mxu0 0.0
  %123 = vmatpush2.msra.mxu0 %v53
  %124 = vmatprep.subr.mxu0 0.0
  %125 = vmatpush2.msra.mxu0 %v52
  %126 = vmatprep.subr.mxu0 0.0
  %127 = vmatpush2.msra.mxu0 %v51
  %128 = vmatprep.subr.mxu0 0.0
  %129 = vmatpush2.msra.mxu0 %v50
  %130 = vmatprep.mubr.f32.mxu0 %v27
  %131 = vmatmul.mubr.f32.gmra.mxu0 %v26
  %v132 = vpop.f32.mrf.mxu0
  %v133 = vadd.f32 0.0, %v132
  %v134 = vpop.f32.mrf.mxu0
  %135 = vmatprep.mubr.f32.mxu0 %v29
  %136 = vmatmul.mubr.f32.gmra.mxu0 %v28
  %v137 = vpop.f32.mrf.mxu0
  %v138 = vadd.f32 0.0, %v137
  %v139 = vpop.f32.mrf.mxu0
  %140 = vmatprep.mubr.f32.mxu0 %v31
  %141 = vmatmul.mubr.f32.gmra.mxu0 %v30
  %v142 = vpop.f32.mrf.mxu0
  %v143 = vadd.f32 0.0, %v142
  %v144 = vpop.f32.mrf.mxu0
  %145 = vmatprep.mubr.f32.mxu0 %v33
  %146 = vmatmul.mubr.f32.gmra.mxu0 %v32
  %v147 = vpop.f32.mrf.mxu0
  %v148 = vadd.f32 0.0, %v147
  %v149 = vpop.f32.mrf.mxu0
  %150 = vdwg.mxu0
  %v151 = vadd.f32 %v22, %v133
  %v152 = vadd.f32 %v23, %v138
  %v153 = vadd.f32 %v24, %v143
  %v154 = vadd.f32 %v25, %v148
  %155 = vst [vmem:[#allocation2] sm:$0xff] %v151
  %156 = vst [vmem:[#allocation2 + $0x8] sm:$0xff] %v152
  %157 = vst [vmem:[#allocation2 + $0x10] sm:$0xff] %v153
  %158 = vst [vmem:[#allocation2 + $0x18] sm:$0xff] %v154
  // Predicated region
  $region18: #{vgg_base_forward.13} parent=0 // pred_check
    %p159 = pneg %p14
  $region19: #{vgg_base_forward.13} parent=0 // pred_check_branch
    %161 = sbr.rel (%p159) target = $region21
  $region20: #{vgg_base_forward.13} parent=0 // pred_region
    %v162 = vld [vmem:[#allocation2] sm:$0xff]
    %v163 = vld [vmem:[#allocation2 + $0x8] sm:$0xff]
    %v164 = vld [vmem:[#allocation2 + $0x10] sm:$0xff]
    %v165 = vld [vmem:[#allocation2 + $0x18] sm:$0xff]
    %v166 = vld [vmem:[%s2] sm:$0x1]
    %v168 = vlaneseq
    %v169 = vshrl.u32 %v168, 7
    %v170 = vsub.s32 0, %v169
    %v171 = vrot.slane %v166, %v170
    %v173 = vadd.f32 %v162, %v171
    %v174 = vadd.f32 %v163, %v171
    %v175 = vadd.f32 %v164, %v171
    %v176 = vadd.f32 %v165, %v171
    %v177 = vmax.f32 %v173, 0.0
    %v178 = vmax.f32 %v174, 0.0
    %v179 = vmax.f32 %v175, 0.0
    %v180 = vmax.f32 %v176, 0.0
    %181 = vst [vmem:[%s3] sm:$0xff] %v177
    %182 = vst [vmem:[%s3 + $0x8] sm:$0xff] %v178
    %183 = vst [vmem:[%s3 + $0x10] sm:$0xff] %v179
    %184 = vst [vmem:[%s3 + $0x18] sm:$0xff] %v180
  $region21: #{vgg_base_forward.13} parent=0 // pred_fallthru
    _
  // Predicated region
  $region22: #{vgg_base_forward.13} parent=0 // pred_check
    _
  $region23: #{vgg_base_forward.13} parent=0 // pred_check_branch
    %186 = sbr.rel (0) target = $region25
  $region24: #{vgg_base_forward.13} parent=0 // pred_region
    _
  $region25: #{vgg_base_forward.13} parent=0 // pred_fallthru
    _
  // Predicated region
  $region26: #{vgg_base_forward.13} parent=0 // pred_check
    _
  $region27: #{vgg_base_forward.13} parent=0 // pred_check_branch
    %188 = sbr.rel (0) target = $region29
  $region28: #{vgg_base_forward.13} parent=0 // pred_region
    _
  $region29: #{vgg_base_forward.13} parent=0 // pred_fallthru
    _

// kernel: vgg_base_forward.15
$region0: #{vgg_base_forward.15}
  #allocation0 [shape = 'u32[]', space=smem, size = 0x4, offset = 0x4, fixed_abs, tag = 'smem constant byte address 0x4 - core index']
  #allocation1 [shape = 'u32[144,128]{1,0:T(1,128)}', space=vmem, size = 0x12000, scoped, tag = 'internal scratch']
  %s0 = inlined_call_operand.vmem [shape: f32[2,2,2,32], index: 0, kind: input, shape index: {}]
  %s1 = inlined_call_operand.vmem [shape: f32[2,2,2,32], index: 1, kind: input, shape index: {}]
  %s2 = inlined_call_operand.vmem [shape: f32[2,2,2,32], index: 2, kind: input, shape index: {}]
  %s3 = inlined_call_operand.vmem [shape: f32[2,2,2,32], index: 3, kind: input, shape index: {}]
  %s4 = inlined_call_operand.vmem [shape: f32[2,2,2,32], index: 4, kind: output, shape index: {}]
  %s5 = sld [smem:[#allocation0]]
  $region49: #{vgg_base_forward.15} parent=0
    _
  %s7 = ssub.s32 1, %s5
  %s8 = scalar_select 0, %s7, %s5
  loop: start=0, step=1, limit=4
  $region2: #{vgg_base_forward.15} parent=0 // loop_pre_header
    _
  $region3: #{vgg_base_forward.15} parent=0 // loop_header
    %s10 = sphi 0, %s14
    %p11 = scmp.ge.s32.totalorder %s10, 4
    %s20 = sphi 0, %s22
    %s23 = sphi 0, %s20
    %s24 = sphi 0, %s23
    %s40 = sphi 0, %s24
    %s46 = sphi 0, %s48
    %s49 = sphi 0, %s46
    %s50 = sphi 0, %s49
    %s66 = sphi 0, %s50
    %s72 = sphi 0, %s74
    %s75 = sphi 0, %s72
    %s76 = sphi 0, %s75
    %s92 = sphi 0, %s76
    %s98 = sphi 0, %s100
    %s101 = sphi 0, %s98
    %s102 = sphi 0, %s101
    %s118 = sphi 0, %s102
    %s124 = sphi 0, %s126
    %s127 = sphi 0, %s124
    %s128 = sphi 0, %s127
    %s144 = sphi 0, %s128
  $region4: #{vgg_base_forward.15} parent=0 // loop_header_branch
    %13 = sbr.rel (%p11) target = $region8
  $region5: #{vgg_base_forward.15} parent=0 // loop_body
    %s15 = ssub.s32 %s10, 1
    %s16 = ssub.s32 %s10, 2
    %s17 = sadd.s32 %s10, 1
    %s18 = ssub.s32 %s10, %s17
    %p19 = scmp.eq.s32.totalorder %s18, 0
    %s21 = sadd.s32 %s20, 1
    %s22 = scalar_select %p19, %s20, %s21
    %p25 = pneg %p19
    %p26 = scmp.eq.s32.totalorder %s10, 1
    %p27 = por %p25, %p26
    %p28 = scmp.ne.s32.totalorder %s20, %s23
    %p29 = scmp.eq.s32.totalorder %s10, 0
    %p30 = por %p28, %p29
    %p31 = scmp.ne.s32.totalorder %s20, %s23
    %p32 = scmp.eq.s32.totalorder %s15, 1
    %p33 = por %p31, %p32
    %p34 = scmp.ne.s32.totalorder %s23, %s24
    %p35 = scmp.eq.s32.totalorder %s15, 0
    %p36 = por %p34, %p35
    %p37 = scmp.ne.s32.totalorder %s23, %s24
    %p38 = scmp.eq.s32.totalorder %s16, 1
    %p39 = por %p37, %p38
    %p41 = scmp.ne.s32.totalorder %s24, %s40
    %p42 = scmp.eq.s32.totalorder %s16, 0
    %p43 = por %p41, %p42
    %s44 = ssub.s32 %s10, %s17
    %p45 = scmp.eq.s32.totalorder %s44, 0
    %s47 = sadd.s32 %s46, 1
    %s48 = scalar_select %p45, %s46, %s47
    %p51 = pneg %p45
    %p52 = scmp.eq.s32.totalorder %s10, 1
    %p53 = por %p51, %p52
    %p54 = scmp.ne.s32.totalorder %s46, %s49
    %p55 = scmp.eq.s32.totalorder %s10, 0
    %p56 = por %p54, %p55
    %p57 = scmp.ne.s32.totalorder %s46, %s49
    %p58 = scmp.eq.s32.totalorder %s15, 1
    %p59 = por %p57, %p58
    %p60 = scmp.ne.s32.totalorder %s49, %s50
    %p61 = scmp.eq.s32.totalorder %s15, 0
    %p62 = por %p60, %p61
    %p63 = scmp.ne.s32.totalorder %s49, %s50
    %p64 = scmp.eq.s32.totalorder %s16, 1
    %p65 = por %p63, %p64
    %p67 = scmp.ne.s32.totalorder %s50, %s66
    %p68 = scmp.eq.s32.totalorder %s16, 0
    %p69 = por %p67, %p68
    %s70 = ssub.s32 %s10, %s17
    %p71 = scmp.eq.s32.totalorder %s70, 0
    %s73 = sadd.s32 %s72, 1
    %s74 = scalar_select %p71, %s72, %s73
    %p77 = pneg %p71
    %p78 = scmp.eq.s32.totalorder %s10, 1
    %p79 = por %p77, %p78
    %p80 = scmp.ne.s32.totalorder %s72, %s75
    %p81 = scmp.eq.s32.totalorder %s10, 0
    %p82 = por %p80, %p81
    %p83 = scmp.ne.s32.totalorder %s72, %s75
    %p84 = scmp.eq.s32.totalorder %s15, 1
    %p85 = por %p83, %p84
    %p86 = scmp.ne.s32.totalorder %s75, %s76
    %p87 = scmp.eq.s32.totalorder %s15, 0
    %p88 = por %p86, %p87
    %p89 = scmp.ne.s32.totalorder %s75, %s76
    %p90 = scmp.eq.s32.totalorder %s16, 1
    %p91 = por %p89, %p90
    %p93 = scmp.ne.s32.totalorder %s76, %s92
    %p94 = scmp.eq.s32.totalorder %s16, 0
    %p95 = por %p93, %p94
    %s96 = ssub.s32 %s10, %s17
    %p97 = scmp.eq.s32.totalorder %s96, 0
    %s99 = sadd.s32 %s98, 1
    %s100 = scalar_select %p97, %s98, %s99
    %p103 = pneg %p97
    %p104 = scmp.eq.s32.totalorder %s10, 1
    %p105 = por %p103, %p104
    %p106 = scmp.ne.s32.totalorder %s98, %s101
    %p107 = scmp.eq.s32.totalorder %s10, 0
    %p108 = por %p106, %p107
    %p109 = scmp.ne.s32.totalorder %s98, %s101
    %p110 = scmp.eq.s32.totalorder %s15, 1
    %p111 = por %p109, %p110
    %p112 = scmp.ne.s32.totalorder %s101, %s102
    %p113 = scmp.eq.s32.totalorder %s15, 0
    %p114 = por %p112, %p113
    %p115 = scmp.ne.s32.totalorder %s101, %s102
    %p116 = scmp.eq.s32.totalorder %s16, 1
    %p117 = por %p115, %p116
    %p119 = scmp.ne.s32.totalorder %s102, %s118
    %p120 = scmp.eq.s32.totalorder %s16, 0
    %p121 = por %p119, %p120
    %s122 = ssub.s32 %s10, %s17
    %p123 = scmp.eq.s32.totalorder %s122, 0
    %s125 = sadd.s32 %s124, 1
    %s126 = scalar_select %p123, %s124, %s125
    %p129 = pneg %p123
    %p130 = scmp.eq.s32.totalorder %s10, 1
    %p131 = por %p129, %p130
    %p132 = scmp.ne.s32.totalorder %s124, %s127
    %p133 = scmp.eq.s32.totalorder %s10, 0
    %p134 = por %p132, %p133
    %p135 = scmp.ne.s32.totalorder %s124, %s127
    %p136 = scmp.eq.s32.totalorder %s15, 1
    %p137 = por %p135, %p136
    %p138 = scmp.ne.s32.totalorder %s127, %s128
    %p139 = scmp.eq.s32.totalorder %s15, 0
    %p140 = por %p138, %p139
    %p141 = scmp.ne.s32.totalorder %s127, %s128
    %p142 = scmp.eq.s32.totalorder %s16, 1
    %p143 = por %p141, %p142
    %p145 = scmp.ne.s32.totalorder %s128, %s144
    %p146 = scmp.eq.s32.totalorder %s16, 0
    %p147 = por %p145, %p146
    %p148 = scmp.le.s32.totalorder 1, %s10
    %p149 = scmp.lt.s32.totalorder %s10, 3
    %p150 = pnand %p148, %p149
    %p151 = pneg %p150
    // Predicated region
    $region9: #{vgg_base_forward.15} parent=5 // pred_check
      _
    $region10: #{vgg_base_forward.15} parent=5 // pred_check_branch
      %153 = sbr.rel (%p150) target = $region12
    $region11: #{vgg_base_forward.15} parent=5 // pred_region
      %s154 = ssub.s32 %s10, 1
    $region12: #{vgg_base_forward.15} parent=5 // pred_fallthru
      _
    %p155 = scmp.lt.s32.totalorder %s10, 2
    // Predicated region
    $region13: #{vgg_base_forward.15} parent=5 // pred_check
      %p156 = pneg %p155
    $region14: #{vgg_base_forward.15} parent=5 // pred_check_branch
      %158 = sbr.rel (%p156) target = $region16
    $region15: #{vgg_base_forward.15} parent=5 // pred_region
      // Predicated region
      $region17: #{vgg_base_forward.15} parent=15 // pred_check
        %p159 = pneg %p30
      $region18: #{vgg_base_forward.15} parent=15 // pred_check_branch
        %161 = sbr.rel (%p159) target = $region20
      $region19: #{vgg_base_forward.15} parent=15 // pred_region
        %p162 = scmp.lt.s32.totalorder %s10, 1
        %s163 = scalar_select %p162, %s10, 1
        %s164 = smul.addr %s163, 2
        %s165 = smul.addr %s164, 2
        %s166 = scalar_lea.vmem %s0, %s165
      $region20: #{vgg_base_forward.15} parent=15 // pred_fallthru
        _
      // Predicated region
      $region21: #{vgg_base_forward.15} parent=15 // pred_check
        %p167 = pneg %p56
      $region22: #{vgg_base_forward.15} parent=15 // pred_check_branch
        %169 = sbr.rel (%p167) target = $region24
      $region23: #{vgg_base_forward.15} parent=15 // pred_region
        %p170 = scmp.lt.s32.totalorder %s10, 1
        %s171 = scalar_select %p170, %s10, 1
        %s172 = smul.addr %s171, 2
        %s173 = smul.addr %s172, 2
        %s174 = scalar_lea.vmem %s1, %s173
      $region24: #{vgg_base_forward.15} parent=15 // pred_fallthru
        _
      // Predicated region
      $region25: #{vgg_base_forward.15} parent=15 // pred_check
        %p175 = pneg %p82
      $region26: #{vgg_base_forward.15} parent=15 // pred_check_branch
        %177 = sbr.rel (%p175) target = $region28
      $region27: #{vgg_base_forward.15} parent=15 // pred_region
        %p178 = scmp.lt.s32.totalorder %s10, 1
        %s179 = scalar_select %p178, %s10, 1
        %s180 = smul.addr %s179, 2
        %s181 = smul.addr %s180, 2
        %s182 = scalar_lea.vmem %s2, %s181
      $region28: #{vgg_base_forward.15} parent=15 // pred_fallthru
        _
      // Predicated region
      $region29: #{vgg_base_forward.15} parent=15 // pred_check
        %p183 = pneg %p108
      $region30: #{vgg_base_forward.15} parent=15 // pred_check_branch
        %185 = sbr.rel (%p183) target = $region32
      $region31: #{vgg_base_forward.15} parent=15 // pred_region
        %p186 = scmp.lt.s32.totalorder %s10, 1
        %s187 = scalar_select %p186, %s10, 1
        %s188 = smul.addr %s187, 2
        %s189 = smul.addr %s188, 2
        %s190 = scalar_lea.vmem %s3, %s189
      $region32: #{vgg_base_forward.15} parent=15 // pred_fallthru
        _
    $region16: #{vgg_base_forward.15} parent=5 // pred_fallthru
      _
    %p191 = scmp.le.s32.totalorder 1, %s10
    %p192 = scmp.lt.s32.totalorder %s10, 3
    %p193 = pnand %p191, %p192
    %p194 = pneg %p193
    // Predicated region
    $region33: #{vgg_base_forward.15} parent=5 // pred_check
      _
    $region34: #{vgg_base_forward.15} parent=5 // pred_check_branch
      %196 = sbr.rel (%p193) target = $region36
    $region35: #{vgg_base_forward.15} parent=5 // pred_region
      %s197 = ssub.s32 %s10, 1
      %p198 = scmp.lt.s32.totalorder %s15, 1
      %s199 = scalar_select %p198, %s15, 1
      %s200 = smul.addr %s199, 2
      %s201 = smul.addr %s200, 2
      %s202 = scalar_lea.vmem %s0, %s201
      %p203 = pneg %p36
      %p204 = pneg %p33
      %p205 = scmp.lt.s32.totalorder %s15, 1
      %s206 = scalar_select %p205, %s15, 1
      %s207 = smul.addr %s206, 2
      %s208 = smul.addr %s207, 2
      %s209 = scalar_lea.vmem %s1, %s208
      %p210 = pneg %p62
      %p211 = pneg %p59
      %p212 = scmp.lt.s32.totalorder %s15, 1
      %s213 = scalar_select %p212, %s15, 1
      %s214 = smul.addr %s213, 2
      %s215 = smul.addr %s214, 2
      %s216 = scalar_lea.vmem %s2, %s215
      %p217 = pneg %p88
      %p218 = pneg %p85
      %p219 = scmp.lt.s32.totalorder %s15, 1
      %s220 = scalar_select %p219, %s15, 1
      %s221 = smul.addr %s220, 2
      %s222 = smul.addr %s221, 2
      %s223 = scalar_lea.vmem %s3, %s222
      %p224 = pneg %p114
      %p225 = pneg %p111
      %p226 = pneg %p140
      %p227 = pneg %p137
      %p228 = scmp.lt.s32.totalorder %s15, 1
      %s229 = scalar_select %p228, %s15, 1
      %s230 = smul.addr %s229, 2
      %s231 = smul.addr %s230, 2
      %s232 = scalar_lea.vmem %s4, %s231
      %p233 = scmp.lt.s32.totalorder %s15, 1
      %s234 = scalar_select %p233, %s15, 1
      %s235 = smul.addr %s234, 2
      %s236 = smul.addr %s235, 2
      %s237 = scalar_lea.vmem %s0, %s236
      %p238 = scmp.lt.s32.totalorder %s15, 1
      %s239 = scalar_select %p238, %s15, 1
      %s240 = smul.addr %s239, 2
      %s241 = smul.addr %s240, 2
      %s242 = scalar_lea.vmem %s1, %s241
      %p243 = scmp.lt.s32.totalorder %s15, 1
      %s244 = scalar_select %p243, %s15, 1
      %s245 = smul.addr %s244, 2
      %s246 = smul.addr %s245, 2
      %s247 = scalar_lea.vmem %s2, %s246
      %p248 = scmp.lt.s32.totalorder %s15, 1
      %s249 = scalar_select %p248, %s15, 1
      %s250 = smul.addr %s249, 2
      %s251 = smul.addr %s250, 2
      %s252 = scalar_lea.vmem %s3, %s251
      %p253 = scmp.lt.s32.totalorder %s15, 1
      %s254 = scalar_select %p253, %s15, 1
      %s255 = smul.addr %s254, 2
      %s256 = smul.addr %s255, 2
      %s257 = scalar_lea.vmem %s4, %s256
      %v258 = vld [vmem:[%s237] sm:$0x3]
      %v259 = vld [vmem:[%s237 + $0x2] sm:$0x3]
      %v260 = vld [vmem:[%s242] sm:$0x3]
      %v261 = vld [vmem:[%s242 + $0x2] sm:$0x3]
      %v262 = vmax.f32 %v258, %v260
      %v263 = vmax.f32 %v259, %v261
      %v264 = vld [vmem:[%s247] sm:$0x3]
      %v265 = vld [vmem:[%s247 + $0x2] sm:$0x3]
      %v266 = vld [vmem:[%s252] sm:$0x3]
      %v267 = vld [vmem:[%s252 + $0x2] sm:$0x3]
      %v268 = vmax.f32 %v264, %v266
      %v269 = vmax.f32 %v265, %v267
      %v270 = vmax.f32 %v262, %v268
      %v271 = vmax.f32 %v263, %v269
      %vm272 = vcmask 254976
      %273 = vst.msk [vmem:[%s257] sm:$0x3] %vm272, %v270
      %274 = vst.msk [vmem:[%s257 + $0x2] sm:$0x3] %vm272, %v271
      %p275 = scmp.lt.s32.totalorder %s15, 1
      %s276 = scalar_select %p275, %s15, 1
      %s277 = smul.addr %s276, 2
      %s278 = smul.addr %s277, 2
      %s279 = scalar_lea.vmem %s4, %s278
      // Predicated region
      $region37: #{vgg_base_forward.15} parent=35 // pred_check
        %p280 = pneg %p137
      $region38: #{vgg_base_forward.15} parent=35 // pred_check_branch
        %282 = sbr.rel (%p280) target = $region40
      $region39: #{vgg_base_forward.15} parent=35 // pred_region
        _
      $region40: #{vgg_base_forward.15} parent=35 // pred_fallthru
        _
    $region36: #{vgg_base_forward.15} parent=5 // pred_fallthru
      _
    %p283 = scmp.le.s32.totalorder 2, %s10
    // Predicated region
    $region41: #{vgg_base_forward.15} parent=5 // pred_check
      %p284 = pneg %p283
    $region42: #{vgg_base_forward.15} parent=5 // pred_check_branch
      %286 = sbr.rel (%p284) target = $region44
    $region43: #{vgg_base_forward.15} parent=5 // pred_region
      %s287 = ssub.s32 %s10, 2
      // Predicated region
      $region45: #{vgg_base_forward.15} parent=43 // pred_check
        %p288 = pneg %p143
      $region46: #{vgg_base_forward.15} parent=43 // pred_check_branch
        %290 = sbr.rel (%p288) target = $region48
      $region47: #{vgg_base_forward.15} parent=43 // pred_region
        %p291 = scmp.lt.s32.totalorder %s16, 1
        %s292 = scalar_select %p291, %s16, 1
        %s293 = smul.addr %s292, 2
        %s294 = smul.addr %s293, 2
        %s295 = scalar_lea.vmem %s4, %s294
      $region48: #{vgg_base_forward.15} parent=43 // pred_fallthru
        _
    $region44: #{vgg_base_forward.15} parent=5 // pred_fallthru
      _
  $region6: #{vgg_base_forward.15} parent=0 // loop_footer
    %s14 = sadd.s32 1, %s10
  $region7: #{vgg_base_forward.15} parent=0 // loop_footer_branch
    %9 = sbr.rel target = $region3
  $region8: #{vgg_base_forward.15} parent=0 // loop_exit
    _

// kernel: vgg_base_forward.14
$region0: #{vgg_base_forward.14}
  #allocation0 [shape = 'u32[]', space=smem, size = 0x4, offset = 0x4, fixed_abs, tag = 'smem constant byte address 0x4 - core index']
  #allocation1 [shape = 'u32[144,128]{1,0:T(1,128)}', space=vmem, size = 0x12000, scoped, tag = 'internal scratch']
  #allocation2 [shape = 'f32[32,128]{1,0:T(8,128)}', space=vmem, size = 0x4000, scoped, tag = 'scratch operand']
  %s0 = inlined_call_operand.vmem [shape: f32[32,512], index: 0, kind: input, shape index: {}]
  %s1 = inlined_call_operand.vmem [shape: f32[512,128], index: 1, kind: input, shape index: {}]
  %s2 = inlined_call_operand.vmem [shape: f32[1,128], index: 2, kind: input, shape index: {}]
  %s3 = inlined_call_operand.vmem [shape: f32[32,128], index: 3, kind: output, shape index: {}]
  %s4 = sld [smem:[#allocation0]]
  $region76: #{vgg_base_forward.14} parent=0
    _
  %s6 = ssub.s32 1, %s4
  %s7 = scalar_select 0, %s6, %s4
  $region1: #{vgg_base_forward.14} parent=0
    #allocation3 [shape = 'u8[65536]{0}', space=vmem, size = 0x10000, scoped, tag = 'input window, operand 0']
    loop: start=0, step=1, limit=4
    $region2: #{vgg_base_forward.14} parent=1 // loop_pre_header
      _
    $region3: #{vgg_base_forward.14} parent=1 // loop_header
      %s9 = sphi 0, %s13
      %p10 = scmp.ge.s32.totalorder %s9, 4
      %s16 = sphi 0, %s35
      %s17 = sphi 0, %s31
      %s18 = sphi 0, %s27
      %s19 = sphi 0, %s16
      %s20 = sphi 0, %s17
      %s21 = sphi 0, %s18
      %s22 = sphi 0, %s19
      %s23 = sphi 0, %s20
      %s24 = sphi 0, %s21
      %s40 = sphi 0, %s42
      %s43 = sphi 0, %s40
      %s44 = sphi 0, %s43
      %s60 = sphi 0, %s44
      %s68 = sphi 0, %s70
      %s71 = sphi 0, %s68
      %s72 = sphi 0, %s71
      %s88 = sphi 0, %s72
      %s94 = sphi 0, %s96
      %s97 = sphi 0, %s94
      %s98 = sphi 0, %s97
      %s114 = sphi 0, %s98
      %s122 = sphi 0, %s124
      %s125 = sphi 0, %s122
      %s126 = sphi 0, %s125
      %s142 = sphi 0, %s126
    $region4: #{vgg_base_forward.14} parent=1 // loop_header_branch
      %12 = sbr.rel (%p10) target = $region8
    $region5: #{vgg_base_forward.14} parent=1 // loop_body
      %s14 = ssub.s32 %s9, 1
      %s15 = ssub.s32 %s9, 2
      %s25 = sadd.s32 1, %s18
      %p26 = scmp.ge.s32.totalorder %s25, 2
      %s27 = scalar_select %p26, 0, %s25
      %s28 = sadd.s32 1, %s17
      %s29 = scalar_select %p26, %s28, %s17
      %p30 = scmp.ge.s32.totalorder %s29, 1
      %s31 = scalar_select %p30, 0, %s29
      %s32 = sadd.s32 1, %s16
      %s33 = scalar_select %p30, %s32, %s16
      %p34 = scmp.ge.s32.totalorder %s33, 1
      %s35 = scalar_select %p34, 0, %s33
      %s36 = ssub.s32 %s16, %s35
      %s37 = ssub.s32 %s18, %s27
      %s38 = sor.u32 %s36, %s37
      %p39 = scmp.eq.s32.totalorder %s38, 0
      %s41 = sadd.s32 %s40, 1
      %s42 = scalar_select %p39, %s40, %s41
      %p45 = pneg %p39
      %p46 = scmp.eq.s32.totalorder %s9, 1
      %p47 = por %p45, %p46
      %p48 = scmp.ne.s32.totalorder %s40, %s43
      %p49 = scmp.eq.s32.totalorder %s9, 0
      %p50 = por %p48, %p49
      %p51 = scmp.ne.s32.totalorder %s40, %s43
      %p52 = scmp.eq.s32.totalorder %s14, 1
      %p53 = por %p51, %p52
      %p54 = scmp.ne.s32.totalorder %s43, %s44
      %p55 = scmp.eq.s32.totalorder %s14, 0
      %p56 = por %p54, %p55
      %p57 = scmp.ne.s32.totalorder %s43, %s44
      %p58 = scmp.eq.s32.totalorder %s15, 1
      %p59 = por %p57, %p58
      %p61 = scmp.ne.s32.totalorder %s44, %s60
      %p62 = scmp.eq.s32.totalorder %s15, 0
      %p63 = por %p61, %p62
      %s64 = ssub.s32 %s18, %s27
      %s65 = ssub.s32 %s17, %s31
      %s66 = sor.u32 %s64, %s65
      %p67 = scmp.eq.s32.totalorder %s66, 0
      %s69 = sadd.s32 %s68, 1
      %s70 = scalar_select %p67, %s68, %s69
      %p73 = pneg %p67
      %p74 = scmp.eq.s32.totalorder %s9, 1
      %p75 = por %p73, %p74
      %p76 = scmp.ne.s32.totalorder %s68, %s71
      %p77 = scmp.eq.s32.totalorder %s9, 0
      %p78 = por %p76, %p77
      %p79 = scmp.ne.s32.totalorder %s68, %s71
      %p80 = scmp.eq.s32.totalorder %s14, 1
      %p81 = por %p79, %p80
      %p82 = scmp.ne.s32.totalorder %s71, %s72
      %p83 = scmp.eq.s32.totalorder %s14, 0
      %p84 = por %p82, %p83
      %p85 = scmp.ne.s32.totalorder %s71, %s72
      %p86 = scmp.eq.s32.totalorder %s15, 1
      %p87 = por %p85, %p86
      %p89 = scmp.ne.s32.totalorder %s72, %s88
      %p90 = scmp.eq.s32.totalorder %s15, 0
      %p91 = por %p89, %p90
      %s92 = ssub.s32 %s17, %s31
      %p93 = scmp.eq.s32.totalorder %s92, 0
      %s95 = sadd.s32 %s94, 1
      %s96 = scalar_select %p93, %s94, %s95
      %p99 = pneg %p93
      %p100 = scmp.eq.s32.totalorder %s9, 1
      %p101 = por %p99, %p100
      %p102 = scmp.ne.s32.totalorder %s94, %s97
      %p103 = scmp.eq.s32.totalorder %s9, 0
      %p104 = por %p102, %p103
      %p105 = scmp.ne.s32.totalorder %s94, %s97
      %p106 = scmp.eq.s32.totalorder %s14, 1
      %p107 = por %p105, %p106
      %p108 = scmp.ne.s32.totalorder %s97, %s98
      %p109 = scmp.eq.s32.totalorder %s14, 0
      %p110 = por %p108, %p109
      %p111 = scmp.ne.s32.totalorder %s97, %s98
      %p112 = scmp.eq.s32.totalorder %s15, 1
      %p113 = por %p111, %p112
      %p115 = scmp.ne.s32.totalorder %s98, %s114
      %p116 = scmp.eq.s32.totalorder %s15, 0
      %p117 = por %p115, %p116
      %s118 = ssub.s32 %s16, %s35
      %s119 = ssub.s32 %s17, %s31
      %s120 = sor.u32 %s118, %s119
      %p121 = scmp.eq.s32.totalorder %s120, 0
      %s123 = sadd.s32 %s122, 1
      %s124 = scalar_select %p121, %s122, %s123
      %p127 = pneg %p121
      %p128 = scmp.eq.s32.totalorder %s9, 1
      %p129 = por %p127, %p128
      %p130 = scmp.ne.s32.totalorder %s122, %s125
      %p131 = scmp.eq.s32.totalorder %s9, 0
      %p132 = por %p130, %p131
      %p133 = scmp.ne.s32.totalorder %s122, %s125
      %p134 = scmp.eq.s32.totalorder %s14, 1
      %p135 = por %p133, %p134
      %p136 = scmp.ne.s32.totalorder %s125, %s126
      %p137 = scmp.eq.s32.totalorder %s14, 0
      %p138 = por %p136, %p137
      %p139 = scmp.ne.s32.totalorder %s125, %s126
      %p140 = scmp.eq.s32.totalorder %s15, 1
      %p141 = por %p139, %p140
      %p143 = scmp.ne.s32.totalorder %s126, %s142
      %p144 = scmp.eq.s32.totalorder %s15, 0
      %p145 = por %p143, %p144
      %p146 = scmp.le.s32.totalorder 1, %s9
      %p147 = scmp.lt.s32.totalorder %s9, 3
      %p148 = pnand %p146, %p147
      %p149 = pneg %p148
      // Predicated region
      $region9: #{vgg_base_forward.14} parent=5 // pred_check
        _
      $region10: #{vgg_base_forward.14} parent=5 // pred_check_branch
        %151 = sbr.rel (%p148) target = $region12
      $region11: #{vgg_base_forward.14} parent=5 // pred_region
        %s152 = ssub.s32 %s9, 1
        // Predicated region
        $region13: #{vgg_base_forward.14} parent=11 // pred_check
          %p153 = pneg %p110
        $region14: #{vgg_base_forward.14} parent=11 // pred_check_branch
          %155 = sbr.rel (%p153) target = $region16
        $region15: #{vgg_base_forward.14} parent=11 // pred_region
          %p156 = scmp.lt.s32.totalorder %s20, 0
          %s157 = scalar_select %p156, %s20, 0
          %s158 = scalar_lea.vmem %s2, %s157
        $region16: #{vgg_base_forward.14} parent=11 // pred_fallthru
          _
      $region12: #{vgg_base_forward.14} parent=5 // pred_fallthru
        _
      %p159 = scmp.lt.s32.totalorder %s9, 2
      // Predicated region
      $region17: #{vgg_base_forward.14} parent=5 // pred_check
        %p160 = pneg %p159
      $region18: #{vgg_base_forward.14} parent=5 // pred_check_branch
        %162 = sbr.rel (%p160) target = $region20
      $region19: #{vgg_base_forward.14} parent=5 // pred_region
        // Predicated region
        $region21: #{vgg_base_forward.14} parent=19 // pred_check
          %p163 = pneg %p50
        $region22: #{vgg_base_forward.14} parent=19 // pred_check_branch
          %165 = sbr.rel (%p163) target = $region24
        $region23: #{vgg_base_forward.14} parent=19 // pred_region
          %s166 = sand.u32 %s40, 1
          %s167 = sand.u32 %s40, 1
          %s168 = smul.addr %s167, 64
          %s169 = scalar_lea.vmem [#allocation3], %s168
          %s170 = smul.u32 4, %s16
          %s171 = smul.u32 2, %s18
          %s172 = smul.addr %s170, 4
          %s173 = sadd.s32 %s171, %s172
          %s174 = smul.addr %s173, 8
          %s175 = scalar_lea.vmem %s0, %s174
          // Predicated region
          $region25: #{vgg_base_forward.14} parent=23 // pred_check
            _
          $region26: #{vgg_base_forward.14} parent=23 // pred_check_branch
            %177 = sbr.rel (0) target = $region28
          $region27: #{vgg_base_forward.14} parent=23 // pred_region
            // Predicated region
            $region29: #{vgg_base_forward.14} parent=27 // pred_check
              _
            $region30: #{vgg_base_forward.14} parent=27 // pred_check_branch
              %179 = sbr.rel (0) target = $region32
            $region31: #{vgg_base_forward.14} parent=27 // pred_region
              loop: start=0, step=1, limit=1
              $region33: #{vgg_base_forward.14} parent=31 // loop_pre_header
                _
              $region34: #{vgg_base_forward.14} parent=31 // loop_header
                %s181 = sphi 0, %s185
                %p182 = scmp.ge.s32.totalorder %s181, 1
                %s186 = sphi %s175, %s175
                %s187 = sphi %s169, %s169
              $region35: #{vgg_base_forward.14} parent=31 // loop_header_branch
                %184 = sbr.rel (%p182) target = $region39
              $region36: #{vgg_base_forward.14} parent=31 // loop_body
                %v188 = vld [vmem:[%s186] sm:$0xff]
                %189 = vst [vmem:[%s187] sm:$0xff] %v188
                %v190 = vld [vmem:[%s186 + $0x8] sm:$0xff]
                %191 = vst [vmem:[%s187 + $0x8] sm:$0xff] %v190
                %v192 = vld [vmem:[%s186 + $0x20] sm:$0xff]
                %193 = vst [vmem:[%s187 + $0x10] sm:$0xff] %v192
                %v194 = vld [vmem:[%s186 + $0x28] sm:$0xff]
                %195 = vst [vmem:[%s187 + $0x18] sm:$0xff] %v194
                %v196 = vld [vmem:[%s186 + $0x40] sm:$0xff]
                %197 = vst [vmem:[%s187 + $0x20] sm:$0xff] %v196
                %v198 = vld [vmem:[%s186 + $0x48] sm:$0xff]
                %199 = vst [vmem:[%s187 + $0x28] sm:$0xff] %v198
                %v200 = vld [vmem:[%s186 + $0x60] sm:$0xff]
                %201 = vst [vmem:[%s187 + $0x30] sm:$0xff] %v200
                %v202 = vld [vmem:[%s186 + $0x68] sm:$0xff]
                %203 = vst [vmem:[%s187 + $0x38] sm:$0xff] %v202
              $region37: #{vgg_base_forward.14} parent=31 // loop_footer
                %s185 = sadd.s32 1, %s181
              $region38: #{vgg_base_forward.14} parent=31 // loop_footer_branch
                %180 = sbr.rel target = $region34
              $region39: #{vgg_base_forward.14} parent=31 // loop_exit
                _
            $region32: #{vgg_base_forward.14} parent=27 // pred_fallthru
              _
            // Predicated region
            $region40: #{vgg_base_forward.14} parent=27 // pred_check
              _
            $region41: #{vgg_base_forward.14} parent=27 // pred_check_branch
              %205 = sbr.rel target = $region43
            $region42: #{vgg_base_forward.14} parent=27 // pred_region
              _
            $region43: #{vgg_base_forward.14} parent=27 // pred_fallthru
              _
          $region28: #{vgg_base_forward.14} parent=23 // pred_fallthru
            _
          %206 = vnop
        $region24: #{vgg_base_forward.14} parent=19 // pred_fallthru
          _
        // Predicated region
        $region44: #{vgg_base_forward.14} parent=19 // pred_check
          %p207 = pneg %p78
        $region45: #{vgg_base_forward.14} parent=19 // pred_check_branch
          %209 = sbr.rel (%p207) target = $region47
        $region46: #{vgg_base_forward.14} parent=19 // pred_region
          %s210 = smul.u32 32, %s18
          %p211 = scmp.lt.s32.totalorder %s210, 63
          %s212 = scalar_select %p211, %s210, 63
          %p213 = scmp.lt.s32.totalorder %s17, 0
          %s214 = scalar_select %p213, %s17, 0
          %s215 = sadd.s32 %s214, %s212
          %s216 = smul.addr %s215, 8
          %s217 = scalar_lea.vmem %s1, %s216
          %s218 = smul.u32 32, %s18
        $region47: #{vgg_base_forward.14} parent=19 // pred_fallthru
          _
      $region20: #{vgg_base_forward.14} parent=5 // pred_fallthru
        _
      %p219 = scmp.le.s32.totalorder 1, %s9
      %p220 = scmp.lt.s32.totalorder %s9, 3
      %p221 = pnand %p219, %p220
      %p222 = pneg %p221
      // Predicated region
      $region48: #{vgg_base_forward.14} parent=5 // pred_check
        _
      $region49: #{vgg_base_forward.14} parent=5 // pred_check_branch
        %224 = sbr.rel (%p221) target = $region51
      $region50: #{vgg_base_forward.14} parent=5 // pred_region
        %s225 = ssub.s32 %s9, 1
        %s226 = sand.u32 %s43, 1
        %s227 = sand.u32 %s43, 1
        %s228 = smul.addr %s227, 64
        %s229 = scalar_lea.vmem [#allocation3], %s228
        // Predicated region
        $region52: #{vgg_base_forward.14} parent=50 // pred_check
          %p230 = pneg %p56
        $region53: #{vgg_base_forward.14} parent=50 // pred_check_branch
          %232 = sbr.rel (%p230) target = $region55
        $region54: #{vgg_base_forward.14} parent=50 // pred_region
          _
        $region55: #{vgg_base_forward.14} parent=50 // pred_fallthru
          _
        %s233 = sand.u32 %s43, 1
        %s234 = sand.u32 %s43, 1
        %s235 = smul.addr %s234, 64
        %s236 = scalar_lea.vmem [#allocation3], %s235
        %p237 = pneg %p56
        %p238 = pneg %p53
        %s239 = smul.u32 32, %s21
        %p240 = scmp.lt.s32.totalorder %s239, 63
        %s241 = scalar_select %p240, %s239, 63
        %p242 = scmp.lt.s32.totalorder %s20, 0
        %s243 = scalar_select %p242, %s20, 0
        %s244 = sadd.s32 %s243, %s241
        %s245 = smul.addr %s244, 8
        %s246 = scalar_lea.vmem %s1, %s245
        %p247 = pneg %p84
        %p248 = pneg %p81
        %p249 = scmp.lt.s32.totalorder %s20, 0
        %s250 = scalar_select %p249, %s20, 0
        %s251 = scalar_lea.vmem %s2, %s250
        %p252 = pneg %p110
        %p253 = pneg %p107
        %p254 = pneg %p138
        %p255 = pneg %p135
        %s256 = smul.u32 4, %s19
        %p257 = scmp.lt.s32.totalorder %s256, 3
        %s258 = scalar_select %p257, %s256, 3
        %p259 = scmp.lt.s32.totalorder %s20, 0
        %s260 = scalar_select %p259, %s20, 0
        %s261 = sadd.s32 %s260, %s258
        %s262 = smul.addr %s261, 8
        %s263 = scalar_lea.vmem %s3, %s262
        %s264 = smul.u32 4, %s19
        %s265 = smul.u32 2, %s21
        %s266 = smul.u32 32, %s21
        %p267 = scmp.lt.s32.totalorder %s266, 63
        %s268 = scalar_select %p267, %s266, 63
        %p269 = scmp.lt.s32.totalorder %s20, 0
        %s270 = scalar_select %p269, %s20, 0
        %s271 = sadd.s32 %s270, %s268
        %s272 = smul.addr %s271, 8
        %s273 = scalar_lea.vmem %s1, %s272
        %s274 = smul.u32 32, %s21
        %p275 = scmp.lt.s32.totalorder %s20, 0
        %s276 = scalar_select %p275, %s20, 0
        %s277 = scalar_lea.vmem %s2, %s276
        %s278 = smul.u32 4, %s19
        %p279 = scmp.lt.s32.totalorder %s278, 3
        %s280 = scalar_select %p279, %s278, 3
        %p281 = scmp.lt.s32.totalorder %s20, 0
        %s282 = scalar_select %p281, %s20, 0
        %s283 = sadd.s32 %s282, %s280
        %s284 = smul.addr %s283, 8
        %s285 = scalar_lea.vmem %s3, %s284
        %s286 = smul.u32 4, %s19
        %p287 = scmp.eq.s32.totalorder %s21, 0
        // Predicated region
        $region56: #{vgg_base_forward.14} parent=50 // pred_check
          %p288 = pneg %p287
        $region57: #{vgg_base_forward.14} parent=50 // pred_check_branch
          %290 = sbr.rel (%p288) target = $region59
        $region58: #{vgg_base_forward.14} parent=50 // pred_region
          %291 = vst [vmem:[#allocation2] sm:$0xff] 0.0
          %292 = vst [vmem:[#allocation2 + $0x8] sm:$0xff] 0.0
          %293 = vst [vmem:[#allocation2 + $0x10] sm:$0xff] 0.0
          %294 = vst [vmem:[#allocation2 + $0x18] sm:$0xff] 0.0
        $region59: #{vgg_base_forward.14} parent=50 // pred_fallthru
          _
        %v295 = vld [vmem:[#allocation2] sm:$0xff]
        %v296 = vld [vmem:[#allocation2 + $0x8] sm:$0xff]
        %v297 = vld [vmem:[#allocation2 + $0x10] sm:$0xff]
        %v298 = vld [vmem:[#allocation2 + $0x18] sm:$0xff]
        %v299 = vld [vmem:[%s229] sm:$0xff]
        %v300 = vld [vmem:[%s229 + $0x8] sm:$0xff]
        %v301 = vld [vmem:[%s229 + $0x10] sm:$0xff]
        %v302 = vld [vmem:[%s229 + $0x18] sm:$0xff]
        %v303 = vld [vmem:[%s229 + $0x20] sm:$0xff]
        %v304 = vld [vmem:[%s229 + $0x28] sm:$0xff]
        %v305 = vld [vmem:[%s229 + $0x30] sm:$0xff]
        %v306 = vld [vmem:[%s229 + $0x38] sm:$0xff]
        %v307 = vld [vmem:[%s273] sm:$0xff]
        %v308 = vld [vmem:[%s273 + $0x8] sm:$0xff]
        %v309 = vld [vmem:[%s273 + $0x10] sm:$0xff]
        %v310 = vld [vmem:[%s273 + $0x18] sm:$0xff]
        %v311 = vld [vmem:[%s273 + $0x20] sm:$0xff]
        %v312 = vld [vmem:[%s273 + $0x28] sm:$0xff]
        %v313 = vld [vmem:[%s273 + $0x30] sm:$0xff]
        %v314 = vld [vmem:[%s273 + $0x38] sm:$0xff]
        %v315 = vld [vmem:[%s273 + $0x40] sm:$0xff]
        %v316 = vld [vmem:[%s273 + $0x48] sm:$0xff]
        %v317 = vld [vmem:[%s273 + $0x50] sm:$0xff]
        %v318 = vld [vmem:[%s273 + $0x58] sm:$0xff]
        %v319 = vld [vmem:[%s273 + $0x60] sm:$0xff]
        %v320 = vld [vmem:[%s273 + $0x68] sm:$0xff]
        %v321 = vld [vmem:[%s273 + $0x70] sm:$0xff]
        %v322 = vld [vmem:[%s273 + $0x78] sm:$0xff]
        %v323 = vld [vmem:[%s273 + $0x80] sm:$0xff]
        %v324 = vld [vmem:[%s273 + $0x88] sm:$0xff]
        %v325 = vld [vmem:[%s273 + $0x90] sm:$0xff]
        %v326 = vld [vmem:[%s273 + $0x98] sm:$0xff]
        %v327 = vld [vmem:[%s273 + $0xa0] sm:$0xff]
        %v328 = vld [vmem:[%s273 + $0xa8] sm:$0xff]
        %v329 = vld [vmem:[%s273 + $0xb0] sm:$0xff]
        %v330 = vld [vmem:[%s273 + $0xb8] sm:$0xff]
        %v331 = vld [vmem:[%s273 + $0xc0] sm:$0xff]
        %v332 = vld [vmem:[%s273 + $0xc8] sm:$0xff]
        %v333 = vld [vmem:[%s273 + $0xd0] sm:$0xff]
        %v334 = vld [vmem:[%s273 + $0xd8] sm:$0xff]
        %v335 = vld [vmem:[%s273 + $0xe0] sm:$0xff]
        %v336 = vld [vmem:[%s273 + $0xe8] sm:$0xff]
        %v337 = vld [vmem:[%s273 + $0xf0] sm:$0xff]
        %v338 = vld [vmem:[%s273 + $0xf8] sm:$0xff]
        %339 = vmatprep.subr.mxu0 0.0
        %340 = vmatpush1.msra.mxu0 %v322
        %341 = vmatprep.subr.mxu0 0.0
        %342 = vmatpush1.msra.mxu0 %v321
        %343 = vmatprep.subr.mxu0 0.0
        %344 = vmatpush1.msra.mxu0 %v320
        %345 = vmatprep.subr.mxu0 0.0
        %346 = vmatpush1.msra.mxu0 %v319
        %347 = vmatprep.subr.mxu0 0.0
        %348 = vmatpush1.msra.mxu0 %v318
        %349 = vmatprep.subr.mxu0 0.0
        %350 = vmatpush1.msra.mxu0 %v317
        %351 = vmatprep.subr.mxu0 0.0
        %352 = vmatpush1.msra.mxu0 %v316
        %353 = vmatprep.subr.mxu0 0.0
        %354 = vmatpush1.msra.mxu0 %v315
        %355 = vmatprep.subr.mxu0 0.0
        %356 = vmatpush1.msra.mxu0 %v314
        %357 = vmatprep.subr.mxu0 0.0
        %358 = vmatpush1.msra.mxu0 %v313
        %359 = vmatprep.subr.mxu0 0.0
        %360 = vmatpush1.msra.mxu0 %v312
        %361 = vmatprep.subr.mxu0 0.0
        %362 = vmatpush1.msra.mxu0 %v311
        %363 = vmatprep.subr.mxu0 0.0
        %364 = vmatpush1.msra.mxu0 %v310
        %365 = vmatprep.subr.mxu0 0.0
        %366 = vmatpush1.msra.mxu0 %v309
        %367 = vmatprep.subr.mxu0 0.0
        %368 = vmatpush1.msra.mxu0 %v308
        %369 = vmatprep.subr.mxu0 0.0
        %370 = vmatpush1.msra.mxu0 %v307
        %371 = vmatprep.subr.mxu0 0.0
        %372 = vmatpush2.msra.mxu0 %v338
        %373 = vmatprep.subr.mxu0 0.0
        %374 = vmatpush2.msra.mxu0 %v337
        %375 = vmatprep.subr.mxu0 0.0
        %376 = vmatpush2.msra.mxu0 %v336
        %377 = vmatprep.subr.mxu0 0.0
        %378 = vmatpush2.msra.mxu0 %v335
        %379 = vmatprep.subr.mxu0 0.0
        %380 = vmatpush2.msra.mxu0 %v334
        %381 = vmatprep.subr.mxu0 0.0
        %382 = vmatpush2.msra.mxu0 %v333
        %383 = vmatprep.subr.mxu0 0.0
        %384 = vmatpush2.msra.mxu0 %v332
        %385 = vmatprep.subr.mxu0 0.0
        %386 = vmatpush2.msra.mxu0 %v331
        %387 = vmatprep.subr.mxu0 0.0
        %388 = vmatpush2.msra.mxu0 %v330
        %389 = vmatprep.subr.mxu0 0.0
        %390 = vmatpush2.msra.mxu0 %v329
        %391 = vmatprep.subr.mxu0 0.0
        %392 = vmatpush2.msra.mxu0 %v328
        %393 = vmatprep.subr.mxu0 0.0
        %394 = vmatpush2.msra.mxu0 %v327
        %395 = vmatprep.subr.mxu0 0.0
        %396 = vmatpush2.msra.mxu0 %v326
        %397 = vmatprep.subr.mxu0 0.0
        %398 = vmatpush2.msra.mxu0 %v325
        %399 = vmatprep.subr.mxu0 0.0
        %400 = vmatpush2.msra.mxu0 %v324
        %401 = vmatprep.subr.mxu0 0.0
        %402 = vmatpush2.msra.mxu0 %v323
        %403 = vmatprep.mubr.f32.mxu0 %v300
        %404 = vmatmul.mubr.f32.gmra.mxu0 %v299
        %v405 = vpop.f32.mrf.mxu0
        %v406 = vadd.f32 0.0, %v405
        %v407 = vpop.f32.mrf.mxu0
        %408 = vmatprep.mubr.f32.mxu0 %v302
        %409 = vmatmul.mubr.f32.gmra.mxu0 %v301
        %v410 = vpop.f32.mrf.mxu0
        %v411 = vadd.f32 0.0, %v410
        %v412 = vpop.f32.mrf.mxu0
        %413 = vmatprep.mubr.f32.mxu0 %v304
        %414 = vmatmul.mubr.f32.gmra.mxu0 %v303
        %v415 = vpop.f32.mrf.mxu0
        %v416 = vadd.f32 0.0, %v415
        %v417 = vpop.f32.mrf.mxu0
        %418 = vmatprep.mubr.f32.mxu0 %v306
        %419 = vmatmul.mubr.f32.gmra.mxu0 %v305
        %v420 = vpop.f32.mrf.mxu0
        %v421 = vadd.f32 0.0, %v420
        %v422 = vpop.f32.mrf.mxu0
        %423 = vdwg.mxu0
        %v424 = vadd.f32 %v295, %v406
        %v425 = vadd.f32 %v296, %v411
        %v426 = vadd.f32 %v297, %v416
        %v427 = vadd.f32 %v298, %v421
        %428 = vst [vmem:[#allocation2] sm:$0xff] %v424
        %429 = vst [vmem:[#allocation2 + $0x8] sm:$0xff] %v425
        %430 = vst [vmem:[#allocation2 + $0x10] sm:$0xff] %v426
        %431 = vst [vmem:[#allocation2 + $0x18] sm:$0xff] %v427
        %p432 = scmp.eq.s32.totalorder %s21, 1
        // Predicated region
        $region60: #{vgg_base_forward.14} parent=50 // pred_check
          %p433 = pneg %p432
        $region61: #{vgg_base_forward.14} parent=50 // pred_check_branch
          %435 = sbr.rel (%p433) target = $region63
        $region62: #{vgg_base_forward.14} parent=50 // pred_region
          %v436 = vld [vmem:[#allocation2] sm:$0xff]
          %v437 = vld [vmem:[#allocation2 + $0x8] sm:$0xff]
          %v438 = vld [vmem:[#allocation2 + $0x10] sm:$0xff]
          %v439 = vld [vmem:[#allocation2 + $0x18] sm:$0xff]
          %v440 = vld [vmem:[%s277] sm:$0x1]
          %v442 = vlaneseq
          %v443 = vshrl.u32 %v442, 7
          %v444 = vsub.s32 0, %v443
          %v445 = vrot.slane %v440, %v444
          %v447 = vadd.f32 %v436, %v445
          %v448 = vadd.f32 %v437, %v445
          %v449 = vadd.f32 %v438, %v445
          %v450 = vadd.f32 %v439, %v445
          %v451 = vmax.f32 %v447, 0.0
          %v452 = vmax.f32 %v448, 0.0
          %v453 = vmax.f32 %v449, 0.0
          %v454 = vmax.f32 %v450, 0.0
          %455 = vst [vmem:[%s285] sm:$0xff] %v451
          %456 = vst [vmem:[%s285 + $0x8] sm:$0xff] %v452
          %457 = vst [vmem:[%s285 + $0x10] sm:$0xff] %v453
          %458 = vst [vmem:[%s285 + $0x18] sm:$0xff] %v454
        $region63: #{vgg_base_forward.14} parent=50 // pred_fallthru
          _
        %s459 = smul.u32 4, %s19
        %p460 = scmp.lt.s32.totalorder %s459, 3
        %s461 = scalar_select %p460, %s459, 3
        %p462 = scmp.lt.s32.totalorder %s20, 0
        %s463 = scalar_select %p462, %s20, 0
        %s464 = sadd.s32 %s463, %s461
        %s465 = smul.addr %s464, 8
        %s466 = scalar_lea.vmem %s3, %s465
        // Predicated region
        $region64: #{vgg_base_forward.14} parent=50 // pred_check
          %p467 = pneg %p135
        $region65: #{vgg_base_forward.14} parent=50 // pred_check_branch
          %469 = sbr.rel (%p467) target = $region67
        $region66: #{vgg_base_forward.14} parent=50 // pred_region
          %s470 = smul.u32 4, %s19
        $region67: #{vgg_base_forward.14} parent=50 // pred_fallthru
          _
        // Predicated region
        $region68: #{vgg_base_forward.14} parent=50 // pred_check
          %p471 = pneg %p135
        $region69: #{vgg_base_forward.14} parent=50 // pred_check_branch
          %473 = sbr.rel (%p471) target = $region71
        $region70: #{vgg_base_forward.14} parent=50 // pred_region
          %s474 = smul.u32 4, %s19
          %p475 = scmp.lt.s32.totalorder %s474, 3
          %s476 = scalar_select %p475, %s474, 3
          %p477 = scmp.lt.s32.totalorder %s20, 0
          %s478 = scalar_select %p477, %s20, 0
          %s479 = sadd.s32 %s478, %s476
          %s480 = smul.addr %s479, 8
          %s481 = scalar_lea.vmem %s3, %s480
        $region71: #{vgg_base_forward.14} parent=50 // pred_fallthru
          _
      $region51: #{vgg_base_forward.14} parent=5 // pred_fallthru
        _
      %p482 = scmp.le.s32.totalorder 2, %s9
      // Predicated region
      $region72: #{vgg_base_forward.14} parent=5 // pred_check
        %p483 = pneg %p482
      $region73: #{vgg_base_forward.14} parent=5 // pred_check_branch
        %485 = sbr.rel (%p483) target = $region75
      $region74: #{vgg_base_forward.14} parent=5 // pred_region
        %s486 = ssub.s32 %s9, 2
      $region75: #{vgg_base_forward.14} parent=5 // pred_fallthru
        _
    $region6: #{vgg_base_forward.14} parent=1 // loop_footer
      %s13 = sadd.s32 1, %s9
    $region7: #{vgg_base_forward.14} parent=1 // loop_footer_branch
      %8 = sbr.rel target = $region3
    $region8: #{vgg_base_forward.14} parent=1 // loop_exit
      _

// kernel: vgg_base_forward.16
$region0: #{vgg_base_forward.16}
  #allocation0 [shape = 'u32[]', space=smem, size = 0x4, offset = 0x4, fixed_abs, tag = 'smem constant byte address 0x4 - core index']
  #allocation1 [shape = 'u32[144,128]{1,0:T(1,128)}', space=vmem, size = 0x12000, scoped, tag = 'internal scratch']
  #allocation2 [shape = 'f32[8,128]{1,0:T(8,128)}', space=vmem, size = 0x1000, scoped, tag = 'scratch operand']
  %s0 = inlined_call_operand.vmem [shape: f32[8,128], index: 0, kind: input, shape index: {}]
  %s1 = inlined_call_operand.vmem [shape: f32[128,128], index: 1, kind: input, shape index: {}]
  %s2 = inlined_call_operand.vmem [shape: f32[1,128], index: 2, kind: input, shape index: {}]
  %s3 = inlined_call_operand.vmem [shape: f32[8,128], index: 3, kind: output, shape index: {}]
  %s4 = sld [smem:[#allocation0]]
  $region30: #{vgg_base_forward.16} parent=0
    _
  %s6 = ssub.s32 1, %s4
  %s7 = scalar_select 0, %s6, %s4
  // Predicated region
  $region2: #{vgg_base_forward.16} parent=0 // pred_check
    _
  $region3: #{vgg_base_forward.16} parent=0 // pred_check_branch
    %9 = sbr.rel (0) target = $region5
  $region4: #{vgg_base_forward.16} parent=0 // pred_region
    _
  $region5: #{vgg_base_forward.16} parent=0 // pred_fallthru
    _
  // Predicated region
  $region6: #{vgg_base_forward.16} parent=0 // pred_check
    _
  $region7: #{vgg_base_forward.16} parent=0 // pred_check_branch
    %11 = sbr.rel (0) target = $region9
  $region8: #{vgg_base_forward.16} parent=0 // pred_region
    _
  $region9: #{vgg_base_forward.16} parent=0 // pred_fallthru
    _
  // Predicated region
  $region10: #{vgg_base_forward.16} parent=0 // pred_check
    _
  $region11: #{vgg_base_forward.16} parent=0 // pred_check_branch
    %13 = sbr.rel (0) target = $region13
  $region12: #{vgg_base_forward.16} parent=0 // pred_region
    _
  $region13: #{vgg_base_forward.16} parent=0 // pred_fallthru
    _
  %p14 = scmp.eq.s32.totalorder 0, 0
  // Predicated region
  $region14: #{vgg_base_forward.16} parent=0 // pred_check
    %p15 = pneg %p14
  $region15: #{vgg_base_forward.16} parent=0 // pred_check_branch
    %17 = sbr.rel (%p15) target = $region17
  $region16: #{vgg_base_forward.16} parent=0 // pred_region
    %18 = vst [vmem:[#allocation2] sm:$0xff] 0.0
  $region17: #{vgg_base_forward.16} parent=0 // pred_fallthru
    _
  %v19 = vld [vmem:[#allocation2] sm:$0xff]
  %v20 = vld [vmem:[%s0] sm:$0xff]
  %v21 = vld [vmem:[%s1] sm:$0xff]
  %v22 = vld [vmem:[%s1 + $0x8] sm:$0xff]
  %v23 = vld [vmem:[%s1 + $0x10] sm:$0xff]
  %v24 = vld [vmem:[%s1 + $0x18] sm:$0xff]
  %v25 = vld [vmem:[%s1 + $0x20] sm:$0xff]
  %v26 = vld [vmem:[%s1 + $0x28] sm:$0xff]
  %v27 = vld [vmem:[%s1 + $0x30] sm:$0xff]
  %v28 = vld [vmem:[%s1 + $0x38] sm:$0xff]
  %v29 = vld [vmem:[%s1 + $0x40] sm:$0xff]
  %v30 = vld [vmem:[%s1 + $0x48] sm:$0xff]
  %v31 = vld [vmem:[%s1 + $0x50] sm:$0xff]
  %v32 = vld [vmem:[%s1 + $0x58] sm:$0xff]
  %v33 = vld [vmem:[%s1 + $0x60] sm:$0xff]
  %v34 = vld [vmem:[%s1 + $0x68] sm:$0xff]
  %v35 = vld [vmem:[%s1 + $0x70] sm:$0xff]
  %v36 = vld [vmem:[%s1 + $0x78] sm:$0xff]
  %37 = vmatprep.subr.mxu0 0.0
  %38 = vmatpush1.msra.mxu0 %v36
  %39 = vmatprep.subr.mxu0 0.0
  %40 = vmatpush1.msra.mxu0 %v35
  %41 = vmatprep.subr.mxu0 0.0
  %42 = vmatpush1.msra.mxu0 %v34
  %43 = vmatprep.subr.mxu0 0.0
  %44 = vmatpush1.msra.mxu0 %v33
  %45 = vmatprep.subr.mxu0 0.0
  %46 = vmatpush1.msra.mxu0 %v32
  %47 = vmatprep.subr.mxu0 0.0
  %48 = vmatpush1.msra.mxu0 %v31
  %49 = vmatprep.subr.mxu0 0.0
  %50 = vmatpush1.msra.mxu0 %v30
  %51 = vmatprep.subr.mxu0 0.0
  %52 = vmatpush1.msra.mxu0 %v29
  %53 = vmatprep.subr.mxu0 0.0
  %54 = vmatpush1.msra.mxu0 %v28
  %55 = vmatprep.subr.mxu0 0.0
  %56 = vmatpush1.msra.mxu0 %v27
  %57 = vmatprep.subr.mxu0 0.0
  %58 = vmatpush1.msra.mxu0 %v26
  %59 = vmatprep.subr.mxu0 0.0
  %60 = vmatpush1.msra.mxu0 %v25
  %61 = vmatprep.subr.mxu0 0.0
  %62 = vmatpush1.msra.mxu0 %v24
  %63 = vmatprep.subr.mxu0 0.0
  %64 = vmatpush1.msra.mxu0 %v23
  %65 = vmatprep.subr.mxu0 0.0
  %66 = vmatpush1.msra.mxu0 %v22
  %67 = vmatprep.subr.mxu0 0.0
  %68 = vmatpush1.msra.mxu0 %v21
  %69 = vmatprep.subr.mxu0 0.0
  %70 = vmatpush2.msra.mxu0 0.0
  %71 = vmatprep.subr.mxu0 0.0
  %72 = vmatpush2.msra.mxu0 0.0
  %73 = vmatprep.subr.mxu0 0.0
  %74 = vmatpush2.msra.mxu0 0.0
  %75 = vmatprep.subr.mxu0 0.0
  %76 = vmatpush2.msra.mxu0 0.0
  %77 = vmatprep.subr.mxu0 0.0
  %78 = vmatpush2.msra.mxu0 0.0
  %79 = vmatprep.subr.mxu0 0.0
  %80 = vmatpush2.msra.mxu0 0.0
  %81 = vmatprep.subr.mxu0 0.0
  %82 = vmatpush2.msra.mxu0 0.0
  %83 = vmatprep.subr.mxu0 0.0
  %84 = vmatpush2.msra.mxu0 0.0
  %85 = vmatprep.subr.mxu0 0.0
  %86 = vmatpush2.msra.mxu0 0.0
  %87 = vmatprep.subr.mxu0 0.0
  %88 = vmatpush2.msra.mxu0 0.0
  %89 = vmatprep.subr.mxu0 0.0
  %90 = vmatpush2.msra.mxu0 0.0
  %91 = vmatprep.subr.mxu0 0.0
  %92 = vmatpush2.msra.mxu0 0.0
  %93 = vmatprep.subr.mxu0 0.0
  %94 = vmatpush2.msra.mxu0 0.0
  %95 = vmatprep.subr.mxu0 0.0
  %96 = vmatpush2.msra.mxu0 0.0
  %97 = vmatprep.subr.mxu0 0.0
  %98 = vmatpush2.msra.mxu0 0.0
  %99 = vmatprep.subr.mxu0 0.0
  %100 = vmatpush2.msra.mxu0 0.0
  %101 = vmatprep.mubr.f32.mxu0 0.0
  %102 = vmatmul.mubr.f32.gmra.mxu0 %v20
  %v103 = vpop.f32.mrf.mxu0
  %v104 = vadd.f32 0.0, %v103
  %v105 = vpop.f32.mrf.mxu0
  %106 = vdwg.mxu0
  %v107 = vadd.f32 %v19, %v104
  %108 = vst [vmem:[#allocation2] sm:$0xff] %v107
  // Predicated region
  $region18: #{vgg_base_forward.16} parent=0 // pred_check
    %p109 = pneg %p14
  $region19: #{vgg_base_forward.16} parent=0 // pred_check_branch
    %111 = sbr.rel (%p109) target = $region21
  $region20: #{vgg_base_forward.16} parent=0 // pred_region
    %v112 = vld [vmem:[#allocation2] sm:$0xff]
    %v113 = vld [vmem:[%s2] sm:$0x1]
    %v115 = vlaneseq
    %v116 = vshrl.u32 %v115, 7
    %v117 = vsub.s32 0, %v116
    %v118 = vrot.slane %v113, %v117
    %v120 = vadd.f32 %v112, %v118
    %v121 = vmax.f32 %v120, 0.0
    %122 = vst [vmem:[%s3] sm:$0xff] %v121
  $region21: #{vgg_base_forward.16} parent=0 // pred_fallthru
    _
  // Predicated region
  $region22: #{vgg_base_forward.16} parent=0 // pred_check
    _
  $region23: #{vgg_base_forward.16} parent=0 // pred_check_branch
    %124 = sbr.rel (0) target = $region25
  $region24: #{vgg_base_forward.16} parent=0 // pred_region
    _
  $region25: #{vgg_base_forward.16} parent=0 // pred_fallthru
    _
  // Predicated region
  $region26: #{vgg_base_forward.16} parent=0 // pred_check
    _
  $region27: #{vgg_base_forward.16} parent=0 // pred_check_branch
    %126 = sbr.rel (0) target = $region29
  $region28: #{vgg_base_forward.16} parent=0 // pred_region
    _
  $region29: #{vgg_base_forward.16} parent=0 // pred_fallthru
    _

</llo_original>
